<compile_context>
chip_gen: v7x
topology: tpu7x:2x2x1
jax: 0.10.0
libtpu: 0.0.40
codegen_flags: <defaults>
</compile_context>

<pallas_src>
import jax
import jax.numpy as jnp
from jax.experimental import pallas as pl
from jax.experimental.pallas import tpu as pltpu

# ----------------------------- config (small synthetic PSMConfig) -----------
B, L = 2, 16                  # batch, sequence length
D = 32                        # encoder_embed_dim == embedding_dim
K = 32                        # num_3d_bias_kernel
H = 8                         # num_attention_heads
NUM_EDGES = 512               # num_edges
NUM_ATOM_FEATURES = 64        # num_atom_features
NUM_TIMESTEPS = 100           # num_timesteps
LL = L * L
SCALING = float(K) ** (-0.5)
SQRT_2PI = 2.5066282746310002
MIN_F32 = float(jnp.finfo(jnp.float32).min)
INV_SQRT2 = 0.7071067811865476

# exact-erf GELU (PyTorch F.gelu default) from Mosaic-supported primitives
_ERF_P = 0.3275911
_ERF_A1 = 0.254829592
_ERF_A2 = -0.284496736
_ERF_A3 = 1.421413741
_ERF_A4 = -1.453152027
_ERF_A5 = 1.061405429


def _erf(z):
    az = jnp.abs(z)
    t = 1.0 / (1.0 + _ERF_P * az)
    poly = t * (_ERF_A1 + t * (_ERF_A2 + t * (_ERF_A3 + t * (_ERF_A4 + t * _ERF_A5))))
    y = 1.0 - poly * jnp.exp(-az * az)
    return jnp.where(z < 0.0, -y, y)


def _gelu_exact(x):
    return 0.5 * x * (1.0 + _erf(x * INV_SQRT2))


# ----------------------------- fused kernel (one grid step per batch) -------
def _pos_emb_fused_kernel(packed_ref, sel_ref, cmask_ref, pos_ref, pad_ref,
                          ei_ref, ej_ref, gauss_ref, w1_ref, b1_ref,
                          w2_ref, b2_ref, wpos_ref, wcat_ref, bcat_ref,
                          gab_ref, out_ref, cat_ref):
    packed = packed_ref[0]                       # [LL, 4] = mul | bias | (pad_j|~adj) | pad_i
    mul = packed[:, 0:1]
    bias = packed[:, 1:2]
    neg_mask = packed[:, 2:3]
    pad_i = packed[:, 3:4]

    pos = pos_ref[0]                             # [L, 3]
    ei = ei_ref[...]                             # [LL, L] constant gather (i = m // L)
    ej = ej_ref[...]                             # [LL, L] constant gather (j = m % L)

    # pairwise distance: exact norm(pos_i - pos_j) with MXU constant gathers
    pos_i = jnp.dot(ei, pos, preferred_element_type=jnp.float32)         # [LL, 3]
    pos_j = jnp.dot(ej, pos, preferred_element_type=jnp.float32)         # [LL, 3]
    delta = pos_i - pos_j
    dist = jnp.sqrt(jnp.sum(delta * delta, axis=-1, keepdims=True))      # [LL, 1]

    # GaussianLayer (inv_std / coeff precomputed in the wrapper -> no divides)
    x = mul * dist + bias                                                # [LL, 1]
    mean = gauss_ref[0:1, :]                                             # [1, K]
    inv_std = gauss_ref[1:2, :]
    coeff = gauss_ref[2:3, :]
    a = (x - mean) * inv_std                                             # [LL, K]
    ef = jnp.exp(-0.5 * a * a) * coeff                                   # [LL, K]

    # gbf_proj (NonLinear).  w2 is augmented with a sum-over-heads column, so
    # graph_attn_bias and the (pre-mask) attention logits share one matmul.
    hidden = _gelu_exact(
        jnp.dot(ef, w1_ref[...], preferred_element_type=jnp.float32) + b1_ref[...])
    ghs = jnp.dot(hidden, w2_ref[...], preferred_element_type=jnp.float32) + b2_ref[...]
    gab = ghs[:, :H]                                                     # [LL, H]
    logit_col = ghs[:, H:H + 1]                                          # [LL, 1] = sum_h gab

    # graph_attn_bias masking (reference order): -inf at (pad_j | ~adj), then
    # 0.0 at pad_i rows.  -inf kept to match masked_fill(float('-inf')).
    gab_m = jnp.where(neg_mask > 0.5, -jnp.inf, gab)
    gab_m = jnp.where(pad_i > 0.5, 0.0, gab_m)
    gab_ref[0] = gab_m

    # edge_feature masked at pad_j and summed over j: (1 - pad_j) is folded
    # into the selector matrix, so this is a single MXU grouped-sum.
    sel = sel_ref[0]                                                     # [L, LL]
    edge_sum = jnp.dot(sel, ef, preferred_element_type=jnp.float32)      # [L, K]

    # attention logits as an [L, L] matrix (unflatten via selector matmul),
    # then the reference's min-dtype fill at (pad_i | pad_j | ~adj).
    logit_mat = jnp.dot(sel, logit_col * ej,
                        preferred_element_type=jnp.float32)              # [L, L]
    logit_mat = jnp.where(cmask_ref[0] > 0.5, MIN_F32, logit_mat)

    # softmax over neighbours (float32)
    z = logit_mat * SCALING
    z = z - jnp.max(z, axis=-1, keepdims=True)
    e = jnp.exp(z)
    attn = e / jnp.sum(e, axis=-1, keepdims=True)                        # [L, L]

    # pos_emb = pos @ W_pos (3-wide contraction as broadcasted outer products),
    # masked at padded nodes
    pad = pad_ref[0]                                                     # [L, 1]
    wpos = wpos_ref[...]                                                 # [3, K]
    pos_emb = (pos[:, 0:1] * wpos[0:1, :] + pos[:, 1:2] * wpos[1:2, :]
               + pos[:, 2:3] * wpos[2:3, :])                             # [L, K]
    pos_emb = pos_emb * (1.0 - pad)

    pos_feat = jnp.dot(attn, pos_emb, preferred_element_type=jnp.float32)  # [L, K]

    # fused output projection: [pos_feat | edge_sum] @ [W_pfe ; W_proj] + b_proj
    cat_ref[:, 0:K] = pos_feat
    cat_ref[:, K:2 * K] = edge_sum
    outp = jnp.dot(cat_ref[...], wcat_ref[...],
                   preferred_element_type=jnp.float32) + bcat_ref[...]   # [L, D]
    out_ref[0] = outp * (1.0 - pad)


def _pos_emb_call(packed, sel_masked, cmask, pos, pad_col, consts):
    per_b3 = lambda b: (b, 0, 0)
    shared2 = lambda b: (0, 0)
    in_specs = [
        pl.BlockSpec((1, LL, 4), per_b3),       # packed per-pair scalars
        pl.BlockSpec((1, L, LL), per_b3),       # selector with (1-pad_j) folded in
        pl.BlockSpec((1, L, L), per_b3),        # combined logits mask
        pl.BlockSpec((1, L, 3), per_b3),        # pos
        pl.BlockSpec((1, L, 1), per_b3),        # padding (per node)
        pl.BlockSpec((LL, L), shared2),         # E_i (constant)
        pl.BlockSpec((LL, L), shared2),         # E_j (constant)
        pl.BlockSpec((3, K), shared2),          # [mean; inv_std; coeff]
        pl.BlockSpec((K, K), shared2),          # gbf_proj layer1 W
        pl.BlockSpec((1, K), shared2),          # gbf_proj layer1 b
        pl.BlockSpec((K, H + 1), shared2),      # gbf_proj layer2 W (+ head-sum col)
        pl.BlockSpec((1, H + 1), shared2),      # gbf_proj layer2 b (+ head-sum)
        pl.BlockSpec((3, K), shared2),          # pos_emb W
        pl.BlockSpec((2 * K, D), shared2),      # [W_pos_feature ; W_proj]
        pl.BlockSpec((1, D), shared2),          # proj bias
    ]
    out_specs = (
        pl.BlockSpec((1, LL, H), per_b3),
        pl.BlockSpec((1, L, D), per_b3),
    )
    out_shape = (
        jax.ShapeDtypeStruct((B, LL, H), jnp.float32),
        jax.ShapeDtypeStruct((B, L, D), jnp.float32),
    )
    return pl.pallas_call(
        _pos_emb_fused_kernel,
        out_shape=out_shape,
        grid=(B,),
        in_specs=in_specs,
        out_specs=out_specs,
        scratch_shapes=[pltpu.VMEM((L, 2 * K), jnp.float32)],
        compiler_params=pltpu.CompilerParams(
            dimension_semantics=("parallel",)),   # batch axis is independent -> v7x 2-TC sharding
    )(packed, sel_masked, cmask, pos, pad_col,
      consts["e_i"], consts["e_j"], consts["gauss"],
      consts["w1"], consts["b1"], consts["w2aug"], consts["b2aug"],
      consts["wpos"], consts["wcat"], consts["bcat"])


# ----------------------------- _pos_emb (non-PBC path) ----------------------
def pos_emb_module(params, pos, adj, clean_mask, molecule_mask, padding_mask,
                   node_type_edge):
    pos = pos.astype(jnp.float32)

    # adj = adj | ~molecule_mask[i] | clean_mask[i]
    adj_eff = adj | (~molecule_mask)[:, :, None]
    if clean_mask is not None:
        adj_eff = adj_eff | clean_mask[:, :, None]

    padf = padding_mask.astype(jnp.float32)                                # (B, L)
    pad_i = jnp.broadcast_to(padding_mask[:, :, None], (B, L, L))
    pad_j = jnp.broadcast_to(padding_mask[:, None, :], (B, L, L))
    neg_pair = pad_j | (~adj_eff)
    combined = (neg_pair | pad_i).astype(jnp.float32)                      # (B, L, L)

    # GaussianLayer edge-type gathers (glue): embeddings summed over the type pair
    mul = params["gbf_mul"][node_type_edge].sum(axis=-2)[..., 0]           # (B, L, L)
    bias = params["gbf_bias"][node_type_edge].sum(axis=-2)[..., 0]         # (B, L, L)

    # pack all per-pair scalars into one lane-packed array
    packed = jnp.stack(
        [mul.reshape(B, LL), bias.reshape(B, LL),
         neg_pair.astype(jnp.float32).reshape(B, LL),
         pad_i.astype(jnp.float32).reshape(B, LL)], axis=-1)               # (B, LL, 4)

    # hoisted constants: pair-index gather / selector matrices
    m_idx = jnp.arange(LL, dtype=jnp.int32)
    j_idx = jnp.arange(L, dtype=jnp.int32)
    e_i = (m_idx[:, None] // L == j_idx[None, :]).astype(jnp.float32)      # (LL, L)
    e_j = (m_idx[:, None] % L == j_idx[None, :]).astype(jnp.float32)       # (LL, L)
    keep_j = jnp.tile(1.0 - padf, (1, L))                                  # (B, LL): entry i*L+j -> 1-pad[j]
    sel_masked = e_i.T[None, :, :] * keep_j[:, None, :]                    # (B, L, LL)

    inv_std = 1.0 / (jnp.abs(params["gbf_stds"]) + 1e-5)
    consts = {
        "e_i": e_i,
        "e_j": e_j,
        "gauss": jnp.concatenate(
            [params["gbf_means"], inv_std, inv_std / SQRT_2PI], axis=0),   # (3, K)
        "w1": params["gbf_proj_w1"],
        "b1": params["gbf_proj_b1"],
        "w2aug": jnp.concatenate(
            [params["gbf_proj_w2"],
             params["gbf_proj_w2"].sum(axis=1, keepdims=True)], axis=1),   # (K, H+1)
        "b2aug": jnp.concatenate(
            [params["gbf_proj_b2"],
             params["gbf_proj_b2"].sum(axis=1, keepdims=True)], axis=1),   # (1, H+1)
        "wpos": params["pos_emb_w"],
        "wcat": jnp.concatenate(
            [params["pos_feature_emb_w"], params["pos_embedding_proj_w"]], axis=0),  # (2K, D)
        "bcat": params["pos_embedding_proj_b"],
    }

    gab_flat, pos_feature_emb = _pos_emb_call(
        packed, sel_masked, combined, pos, padf[:, :, None], consts)

    graph_attn_bias = gab_flat.reshape(B, L, L, H).transpose(0, 3, 1, 2)   # (B, H, L, L)
    return pos_feature_emb, graph_attn_bias


# ----------------------------- full forward ---------------------------------
def psm_mix3d_embedding_forward(params, batched_data, time_step=None,
                                clean_mask=None, aa_mask=None):
    token_id = batched_data["token_id"]
    padding_mask = token_id == 0
    is_periodic = batched_data["is_periodic"]
    molecule_mask = (token_id <= 129) & (~is_periodic)[:, None]

    if aa_mask is not None:
        mask_token_type = jnp.where(aa_mask, 157, token_id)
    else:
        mask_token_type = token_id

    x = params["embed"][mask_token_type]                                   # (B, L, D)

    # TODO(synk): TimeStepEncoder internals are not in the reference snippet;
    # modeled as a learnable per-timestep embedding, zeroed at clean positions.
    time_embed = params["time_embed"][time_step]
    if clean_mask is not None:
        time_embed = jnp.where(clean_mask[:, :, None], 0.0, time_embed)

    # 2D atom features (use_2d_atom_features=True path) — gather glue
    node_attr = batched_data["node_attr"]
    atom_feature_embedding = params["atom_feature_embed"][node_attr[:, :, 1:]].sum(axis=-2)
    atom_feature_embedding = jnp.where(molecule_mask[:, :, None], atom_feature_embedding, 0.0)
    x = x + atom_feature_embedding

    pos_embedding, pos_attn_bias = pos_emb_module(
        params, batched_data["pos"], batched_data["adj"], clean_mask,
        molecule_mask, padding_mask, batched_data["node_type_edge"])

    x = x + time_embed
    # ('init_pos' branch skipped: key not present in batched_data)
    x = x + pos_embedding
    return x, padding_mask, time_embed, pos_attn_bias, pos_embedding


# ----------------------------- main ------------------------------------------
if __name__ == "__main__":
    keys = jax.random.split(jax.random.PRNGKey(0), 20)

    params = {
        "embed": 0.02 * jax.random.normal(keys[0], (160, D), jnp.float32),
        "atom_feature_embed": 0.02 * jax.random.normal(keys[1], (NUM_ATOM_FEATURES, D), jnp.float32),
        "time_embed": 0.02 * jax.random.normal(keys[2], (NUM_TIMESTEPS, D), jnp.float32),
        "gbf_means": jax.random.normal(keys[3], (1, K), jnp.float32),
        "gbf_stds": jax.random.normal(keys[4], (1, K), jnp.float32),
        "gbf_mul": jax.random.normal(keys[5], (NUM_EDGES, 1), jnp.float32),
        "gbf_bias": jax.random.normal(keys[6], (NUM_EDGES, 1), jnp.float32),
        "gbf_proj_w1": 0.1 * jax.random.normal(keys[7], (K, K), jnp.float32),
        "gbf_proj_b1": jnp.zeros((1, K), jnp.float32),
        "gbf_proj_w2": 0.1 * jax.random.normal(keys[8], (K, H), jnp.float32),
        "gbf_proj_b2": jnp.zeros((1, H), jnp.float32),
        "pos_emb_w": 0.1 * jax.random.normal(keys[9], (3, K), jnp.float32),
        "pos_feature_emb_w": 0.1 * jax.random.normal(keys[10], (K, D), jnp.float32),
        "pos_embedding_proj_w": 0.1 * jax.random.normal(keys[11], (K, D), jnp.float32),
        "pos_embedding_proj_b": jnp.zeros((1, D), jnp.float32),
    }

    token_id = jax.random.randint(keys[12], (B, L), 1, 160)
    token_id = token_id.at[:, L - 2:].set(0)            # padding tail
    batched_data = {
        "token_id": token_id,
        "is_periodic": jnp.array([False, True]),
        "pos": jax.random.normal(keys[13], (B, L, 3), jnp.float32),
        "adj": jax.random.bernoulli(keys[14], 0.5, (B, L, L)),
        "node_type_edge": jax.random.randint(keys[15], (B, L, L, 2), 0, NUM_EDGES),
        "node_attr": jax.random.randint(keys[16], (B, L, 5), 0, NUM_ATOM_FEATURES),
    }
    time_step = jax.random.randint(keys[17], (B, L), 0, NUM_TIMESTEPS)
    clean_mask = jax.random.bernoulli(keys[18], 0.3, (B, L))
    aa_mask = jax.random.bernoulli(keys[19], 0.2, (B, L))

    fwd = jax.jit(psm_mix3d_embedding_forward)
    out = fwd(params, batched_data, time_step, clean_mask, aa_mask)
    out = jax.block_until_ready(out)
    x, padding_mask, time_embed, pos_attn_bias, pos_embedding = out
    assert x.shape == (B, L, D)
    assert padding_mask.shape == (B, L)
    assert time_embed.shape == (B, L, D)
    assert pos_attn_bias.shape == (B, H, L, L)
    assert pos_embedding.shape == (B, L, D)
    # -inf lives only in pos_attn_bias (as in the reference); x must be finite
    assert bool(jnp.isfinite(x).all())
    assert bool(jnp.isfinite(pos_embedding).all())
    print("KERNEL_OK")
</pallas_src>

<mosaic_0001>
module attributes {stable_mosaic.version = 11 : i64} {
  func.func @_pos_emb_fused_kernel(%arg0: i32, %arg1: memref<1x256x4xf32, #tpu.memory_space<vmem>>, %arg2: memref<1x16x256xf32, #tpu.memory_space<vmem>>, %arg3: memref<1x16x16xf32, #tpu.memory_space<vmem>>, %arg4: memref<1x16x3xf32, #tpu.memory_space<vmem>>, %arg5: memref<1x16x1xf32, #tpu.memory_space<vmem>>, %arg6: memref<256x16xf32, #tpu.memory_space<vmem>>, %arg7: memref<256x16xf32, #tpu.memory_space<vmem>>, %arg8: memref<3x32xf32, #tpu.memory_space<vmem>>, %arg9: memref<32x32xf32, #tpu.memory_space<vmem>>, %arg10: memref<1x32xf32, #tpu.memory_space<vmem>>, %arg11: memref<32x9xf32, #tpu.memory_space<vmem>>, %arg12: memref<1x9xf32, #tpu.memory_space<vmem>>, %arg13: memref<3x32xf32, #tpu.memory_space<vmem>>, %arg14: memref<64x32xf32, #tpu.memory_space<vmem>>, %arg15: memref<1x32xf32, #tpu.memory_space<vmem>>, %arg16: memref<1x256x8xf32, #tpu.memory_space<vmem>>, %arg17: memref<1x16x32xf32, #tpu.memory_space<vmem>>, %arg18: memref<16x64xf32, #tpu.memory_space<vmem>>) attributes {dimension_semantics = [#tpu.dimension_semantics<parallel>], iteration_bounds = array<i64: 2>, scalar_prefetch = 0 : i64, scratch_operands = 1 : i64, tpu.core_type = #tpu.core_type<tc>, window_params = [{transform_indices = @transform_0, window_bounds = array<i64: 1, 256, 4>}, {transform_indices = @transform_1, window_bounds = array<i64: 1, 16, 256>}, {transform_indices = @transform_2, window_bounds = array<i64: 1, 16, 16>}, {transform_indices = @transform_3, window_bounds = array<i64: 1, 16, 3>}, {transform_indices = @transform_4, window_bounds = array<i64: 1, 16, 1>}, {pipeline_mode = #tpu.pipeline_mode<synchronous>, transform_indices = @transform_5, window_bounds = array<i64: 256, 16>}, {pipeline_mode = #tpu.pipeline_mode<synchronous>, transform_indices = @transform_6, window_bounds = array<i64: 256, 16>}, {pipeline_mode = #tpu.pipeline_mode<synchronous>, transform_indices = @transform_7, window_bounds = array<i64: 3, 32>}, {pipeline_mode = #tpu.pipeline_mode<synchronous>, transform_indices = @transform_8, window_bounds = array<i64: 32, 32>}, {pipeline_mode = #tpu.pipeline_mode<synchronous>, transform_indices = @transform_9, window_bounds = array<i64: 1, 32>}, {pipeline_mode = #tpu.pipeline_mode<synchronous>, transform_indices = @transform_10, window_bounds = array<i64: 32, 9>}, {pipeline_mode = #tpu.pipeline_mode<synchronous>, transform_indices = @transform_11, window_bounds = array<i64: 1, 9>}, {pipeline_mode = #tpu.pipeline_mode<synchronous>, transform_indices = @transform_12, window_bounds = array<i64: 3, 32>}, {pipeline_mode = #tpu.pipeline_mode<synchronous>, transform_indices = @transform_13, window_bounds = array<i64: 64, 32>}, {pipeline_mode = #tpu.pipeline_mode<synchronous>, transform_indices = @transform_14, window_bounds = array<i64: 1, 32>}, {transform_indices = @transform_15, window_bounds = array<i64: 1, 256, 8>}, {transform_indices = @transform_16, window_bounds = array<i64: 1, 16, 32>}]} {
    %c0 = arith.constant 0 : index
    %c0_0 = arith.constant 0 : index
    %c0_1 = arith.constant 0 : index
    %0 = vector.load %arg1[%c0, %c0_0, %c0_1] : memref<1x256x4xf32, #tpu.memory_space<vmem>>, vector<1x256x4xf32>
    %1 = vector.shape_cast %0 : vector<1x256x4xf32> to vector<256x4xf32>
    %2 = vector.extract_strided_slice %1 {offsets = [0, 0], sizes = [256, 1], strides = [1, 1]} : vector<256x4xf32> to vector<256x1xf32>
    %3 = vector.extract_strided_slice %1 {offsets = [0, 1], sizes = [256, 1], strides = [1, 1]} : vector<256x4xf32> to vector<256x1xf32>
    %4 = vector.extract_strided_slice %1 {offsets = [0, 2], sizes = [256, 1], strides = [1, 1]} : vector<256x4xf32> to vector<256x1xf32>
    %5 = vector.extract_strided_slice %1 {offsets = [0, 3], sizes = [256, 1], strides = [1, 1]} : vector<256x4xf32> to vector<256x1xf32>
    %c0_2 = arith.constant 0 : index
    %c0_3 = arith.constant 0 : index
    %c0_4 = arith.constant 0 : index
    %6 = vector.load %arg4[%c0_2, %c0_3, %c0_4] : memref<1x16x3xf32, #tpu.memory_space<vmem>>, vector<1x16x3xf32>
    %7 = vector.shape_cast %6 : vector<1x16x3xf32> to vector<16x3xf32>
    %c0_5 = arith.constant 0 : index
    %c0_6 = arith.constant 0 : index
    %8 = vector.load %arg6[%c0_5, %c0_6] : memref<256x16xf32, #tpu.memory_space<vmem>>, vector<256x16xf32>
    %c0_7 = arith.constant 0 : index
    %c0_8 = arith.constant 0 : index
    %9 = vector.load %arg7[%c0_7, %c0_8] : memref<256x16xf32, #tpu.memory_space<vmem>>, vector<256x16xf32>
    %cst = arith.constant dense<0.000000e+00> : vector<256x3xf32>
    %10 = tpu.matmul %8, %7, %cst {dimension_numbers = #tpu.dot_dimension_numbers<[1], [0], [0], [1], [0, 0, 1, 1], [], []>} : vector<256x16xf32>, vector<16x3xf32>, vector<256x3xf32> -> vector<256x3xf32>
    %cst_9 = arith.constant dense<0.000000e+00> : vector<256x3xf32>
    %11 = tpu.matmul %9, %7, %cst_9 {dimension_numbers = #tpu.dot_dimension_numbers<[1], [0], [0], [1], [0, 0, 1, 1], [], []>} : vector<256x16xf32>, vector<16x3xf32>, vector<256x3xf32> -> vector<256x3xf32>
    %12 = arith.subf %10, %11 : vector<256x3xf32>
    %13 = arith.mulf %12, %12 : vector<256x3xf32>
    %cst_10 = arith.constant dense<0.000000e+00> : vector<256xf32>
    %14 = vector.multi_reduction <add>, %13, %cst_10 [1] : vector<256x3xf32> to vector<256xf32>
    %15 = vector.shape_cast %14 : vector<256xf32> to vector<256x1xf32>
    %16 = math.sqrt %15 : vector<256x1xf32>
    %17 = arith.mulf %2, %16 : vector<256x1xf32>
    %18 = arith.addf %17, %3 : vector<256x1xf32>
    %c0_11 = arith.constant 0 : index
    %c0_12 = arith.constant 0 : index
    %19 = vector.load %arg8[%c0_11, %c0_12] : memref<3x32xf32, #tpu.memory_space<vmem>>, vector<1x32xf32>
    %c1 = arith.constant 1 : index
    %c0_13 = arith.constant 0 : index
    %20 = vector.load %arg8[%c1, %c0_13] : memref<3x32xf32, #tpu.memory_space<vmem>>, vector<1x32xf32>
    %c2 = arith.constant 2 : index
    %c0_14 = arith.constant 0 : index
    %21 = vector.load %arg8[%c2, %c0_14] : memref<3x32xf32, #tpu.memory_space<vmem>>, vector<1x32xf32>
    %22 = vector.broadcast %18 : vector<256x1xf32> to vector<256x32xf32>
    %23 = vector.broadcast %19 : vector<1x32xf32> to vector<256x32xf32>
    %24 = arith.subf %22, %23 : vector<256x32xf32>
    %25 = vector.broadcast %20 : vector<1x32xf32> to vector<256x32xf32>
    %26 = arith.mulf %24, %25 : vector<256x32xf32>
    %cst_15 = arith.constant -5.000000e-01 : f32
    %27 = vector.broadcast %cst_15 : f32 to vector<256x32xf32>
    %28 = arith.mulf %27, %26 : vector<256x32xf32>
    %29 = arith.mulf %28, %26 : vector<256x32xf32>
    %30 = math.exp %29 : vector<256x32xf32>
    %31 = vector.broadcast %21 : vector<1x32xf32> to vector<256x32xf32>
    %32 = arith.mulf %30, %31 : vector<256x32xf32>
    %c0_16 = arith.constant 0 : index
    %c0_17 = arith.constant 0 : index
    %33 = vector.load %arg9[%c0_16, %c0_17] : memref<32x32xf32, #tpu.memory_space<vmem>>, vector<32x32xf32>
    %cst_18 = arith.constant dense<0.000000e+00> : vector<256x32xf32>
    %34 = tpu.matmul %32, %33, %cst_18 {dimension_numbers = #tpu.dot_dimension_numbers<[1], [0], [0], [1], [0, 0, 1, 1], [], []>} : vector<256x32xf32>, vector<32x32xf32>, vector<256x32xf32> -> vector<256x32xf32>
    %c0_19 = arith.constant 0 : index
    %c0_20 = arith.constant 0 : index
    %35 = vector.load %arg10[%c0_19, %c0_20] : memref<1x32xf32, #tpu.memory_space<vmem>>, vector<1x32xf32>
    %36 = vector.broadcast %35 : vector<1x32xf32> to vector<256x32xf32>
    %37 = arith.addf %34, %36 : vector<256x32xf32>
    %cst_21 = arith.constant 5.000000e-01 : f32
    %38 = vector.broadcast %cst_21 : f32 to vector<256x32xf32>
    %39 = arith.mulf %38, %37 : vector<256x32xf32>
    %cst_22 = arith.constant 0.707106769 : f32
    %40 = vector.broadcast %cst_22 : f32 to vector<256x32xf32>
    %41 = arith.mulf %37, %40 : vector<256x32xf32>
    %42 = math.absf %41 : vector<256x32xf32>
    %cst_23 = arith.constant 0.327591091 : f32
    %43 = vector.broadcast %cst_23 : f32 to vector<256x32xf32>
    %44 = arith.mulf %43, %42 : vector<256x32xf32>
    %cst_24 = arith.constant 1.000000e+00 : f32
    %45 = vector.broadcast %cst_24 : f32 to vector<256x32xf32>
    %46 = arith.addf %45, %44 : vector<256x32xf32>
    %cst_25 = arith.constant 1.000000e+00 : f32
    %47 = vector.broadcast %cst_25 : f32 to vector<256x32xf32>
    %48 = arith.divf %47, %46 : vector<256x32xf32>
    %cst_26 = arith.constant 1.06140542 : f32
    %49 = vector.broadcast %cst_26 : f32 to vector<256x32xf32>
    %50 = arith.mulf %48, %49 : vector<256x32xf32>
    %cst_27 = arith.constant -1.45315206 : f32
    %51 = vector.broadcast %cst_27 : f32 to vector<256x32xf32>
    %52 = arith.addf %51, %50 : vector<256x32xf32>
    %53 = arith.mulf %48, %52 : vector<256x32xf32>
    %cst_28 = arith.constant 1.42141378 : f32
    %54 = vector.broadcast %cst_28 : f32 to vector<256x32xf32>
    %55 = arith.addf %54, %53 : vector<256x32xf32>
    %56 = arith.mulf %48, %55 : vector<256x32xf32>
    %cst_29 = arith.constant -0.284496725 : f32
    %57 = vector.broadcast %cst_29 : f32 to vector<256x32xf32>
    %58 = arith.addf %57, %56 : vector<256x32xf32>
    %59 = arith.mulf %48, %58 : vector<256x32xf32>
    %cst_30 = arith.constant 0.254829586 : f32
    %60 = vector.broadcast %cst_30 : f32 to vector<256x32xf32>
    %61 = arith.addf %60, %59 : vector<256x32xf32>
    %62 = arith.mulf %48, %61 : vector<256x32xf32>
    %cst_31 = arith.constant 0.000000e+00 : f32
    %63 = vector.broadcast %cst_31 : f32 to vector<256x32xf32>
    %64 = arith.subf %63, %42 : vector<256x32xf32>
    %65 = arith.mulf %64, %42 : vector<256x32xf32>
    %66 = math.exp %65 : vector<256x32xf32>
    %67 = arith.mulf %62, %66 : vector<256x32xf32>
    %cst_32 = arith.constant 1.000000e+00 : f32
    %68 = vector.broadcast %cst_32 : f32 to vector<256x32xf32>
    %69 = arith.subf %68, %67 : vector<256x32xf32>
    %cst_33 = arith.constant 0.000000e+00 : f32
    %70 = vector.broadcast %cst_33 : f32 to vector<256x32xf32>
    %71 = arith.cmpf olt, %41, %70 : vector<256x32xf32>
    %cst_34 = arith.constant 0.000000e+00 : f32
    %72 = vector.broadcast %cst_34 : f32 to vector<256x32xf32>
    %73 = arith.subf %72, %69 : vector<256x32xf32>
    %74 = arith.select %71, %73, %69 : vector<256x32xi1>, vector<256x32xf32>
    %cst_35 = arith.constant 1.000000e+00 : f32
    %75 = vector.broadcast %cst_35 : f32 to vector<256x32xf32>
    %76 = arith.addf %75, %74 : vector<256x32xf32>
    %77 = arith.mulf %39, %76 : vector<256x32xf32>
    %c0_36 = arith.constant 0 : index
    %c0_37 = arith.constant 0 : index
    %78 = vector.load %arg11[%c0_36, %c0_37] : memref<32x9xf32, #tpu.memory_space<vmem>>, vector<32x9xf32>
    %cst_38 = arith.constant dense<0.000000e+00> : vector<256x9xf32>
    %79 = tpu.matmul %77, %78, %cst_38 {dimension_numbers = #tpu.dot_dimension_numbers<[1], [0], [0], [1], [0, 0, 1, 1], [], []>} : vector<256x32xf32>, vector<32x9xf32>, vector<256x9xf32> -> vector<256x9xf32>
    %c0_39 = arith.constant 0 : index
    %c0_40 = arith.constant 0 : index
    %80 = vector.load %arg12[%c0_39, %c0_40] : memref<1x9xf32, #tpu.memory_space<vmem>>, vector<1x9xf32>
    %81 = vector.broadcast %80 : vector<1x9xf32> to vector<256x9xf32>
    %82 = arith.addf %79, %81 : vector<256x9xf32>
    %83 = vector.extract_strided_slice %82 {offsets = [0, 0], sizes = [256, 8], strides = [1, 1]} : vector<256x9xf32> to vector<256x8xf32>
    %84 = vector.extract_strided_slice %82 {offsets = [0, 8], sizes = [256, 1], strides = [1, 1]} : vector<256x9xf32> to vector<256x1xf32>
    %cst_41 = arith.constant 5.000000e-01 : f32
    %85 = vector.broadcast %cst_41 : f32 to vector<256x1xf32>
    %86 = arith.cmpf ogt, %4, %85 : vector<256x1xf32>
    %cst_42 = arith.constant 0xFF800000 : f32
    %87 = vector.shape_cast %86 : vector<256x1xi1> to vector<256x1xi1>
    %88 = vector.broadcast %87 : vector<256x1xi1> to vector<256x8xi1>
    %89 = vector.broadcast %cst_42 : f32 to vector<256x8xf32>
    %90 = arith.select %88, %89, %83 : vector<256x8xi1>, vector<256x8xf32>
    %cst_43 = arith.constant 5.000000e-01 : f32
    %91 = vector.broadcast %cst_43 : f32 to vector<256x1xf32>
    %92 = arith.cmpf ogt, %5, %91 : vector<256x1xf32>
    %cst_44 = arith.constant 0.000000e+00 : f32
    %93 = vector.shape_cast %92 : vector<256x1xi1> to vector<256x1xi1>
    %94 = vector.broadcast %93 : vector<256x1xi1> to vector<256x8xi1>
    %95 = vector.broadcast %cst_44 : f32 to vector<256x8xf32>
    %96 = arith.select %94, %95, %90 : vector<256x8xi1>, vector<256x8xf32>
    %c0_45 = arith.constant 0 : index
    %c0_46 = arith.constant 0 : index
    %c0_47 = arith.constant 0 : index
    %97 = vector.load %arg16[%c0_45, %c0_46, %c0_47] : memref<1x256x8xf32, #tpu.memory_space<vmem>>, vector<1x256x8xf32>
    %98 = vector.shape_cast %97 : vector<1x256x8xf32> to vector<256x8xf32>
    %99 = vector.shape_cast %96 : vector<256x8xf32> to vector<1x256x8xf32>
    tpu.vector_store %arg16[%c0_45, %c0_46, %c0_47], %99 {strides = array<i32>} : memref<1x256x8xf32, #tpu.memory_space<vmem>>, vector<1x256x8xf32>,
    %c0_48 = arith.constant 0 : index
    %c0_49 = arith.constant 0 : index
    %c0_50 = arith.constant 0 : index
    %100 = vector.load %arg2[%c0_48, %c0_49, %c0_50] : memref<1x16x256xf32, #tpu.memory_space<vmem>>, vector<1x16x256xf32>
    %101 = vector.shape_cast %100 : vector<1x16x256xf32> to vector<16x256xf32>
    %cst_51 = arith.constant dense<0.000000e+00> : vector<16x32xf32>
    %102 = tpu.matmul %101, %32, %cst_51 {dimension_numbers = #tpu.dot_dimension_numbers<[1], [0], [0], [1], [0, 0, 1, 1], [], []>} : vector<16x256xf32>, vector<256x32xf32>, vector<16x32xf32> -> vector<16x32xf32>
    %103 = vector.broadcast %84 : vector<256x1xf32> to vector<256x16xf32>
    %104 = arith.mulf %103, %9 : vector<256x16xf32>
    %cst_52 = arith.constant dense<0.000000e+00> : vector<16x16xf32>
    %105 = tpu.matmul %101, %104, %cst_52 {dimension_numbers = #tpu.dot_dimension_numbers<[1], [0], [0], [1], [0, 0, 1, 1], [], []>} : vector<16x256xf32>, vector<256x16xf32>, vector<16x16xf32> -> vector<16x16xf32>
    %c0_53 = arith.constant 0 : index
    %c0_54 = arith.constant 0 : index
    %c0_55 = arith.constant 0 : index
    %106 = vector.load %arg3[%c0_53, %c0_54, %c0_55] : memref<1x16x16xf32, #tpu.memory_space<vmem>>, vector<1x16x16xf32>
    %107 = vector.shape_cast %106 : vector<1x16x16xf32> to vector<16x16xf32>
    %cst_56 = arith.constant 5.000000e-01 : f32
    %108 = vector.broadcast %cst_56 : f32 to vector<16x16xf32>
    %109 = arith.cmpf ogt, %107, %108 : vector<16x16xf32>
    %cst_57 = arith.constant -3.40282347E+38 : f32
    %110 = vector.broadcast %cst_57 : f32 to vector<16x16xf32>
    %111 = arith.select %109, %110, %105 : vector<16x16xi1>, vector<16x16xf32>
    %cst_58 = arith.constant 0.176776692 : f32
    %112 = vector.broadcast %cst_58 : f32 to vector<16x16xf32>
    %113 = arith.mulf %111, %112 : vector<16x16xf32>
    %cst_59 = arith.constant dense<0xFF800000> : vector<16xf32>
    %114 = vector.multi_reduction <maximumf>, %113, %cst_59 [1] : vector<16x16xf32> to vector<16xf32>
    %115 = vector.shape_cast %114 : vector<16xf32> to vector<16x1xf32>
    %116 = vector.broadcast %115 : vector<16x1xf32> to vector<16x16xf32>
    %117 = arith.subf %113, %116 : vector<16x16xf32>
    %118 = math.exp %117 : vector<16x16xf32>
    %cst_60 = arith.constant dense<0.000000e+00> : vector<16xf32>
    %119 = vector.multi_reduction <add>, %118, %cst_60 [1] : vector<16x16xf32> to vector<16xf32>
    %120 = vector.shape_cast %119 : vector<16xf32> to vector<16x1xf32>
    %121 = vector.broadcast %120 : vector<16x1xf32> to vector<16x16xf32>
    %122 = arith.divf %118, %121 : vector<16x16xf32>
    %c0_61 = arith.constant 0 : index
    %c0_62 = arith.constant 0 : index
    %c0_63 = arith.constant 0 : index
    %123 = vector.load %arg5[%c0_61, %c0_62, %c0_63] : memref<1x16x1xf32, #tpu.memory_space<vmem>>, vector<1x16x1xf32>
    %124 = vector.shape_cast %123 : vector<1x16x1xf32> to vector<16x1xf32>
    %c0_64 = arith.constant 0 : index
    %c0_65 = arith.constant 0 : index
    %125 = vector.load %arg13[%c0_64, %c0_65] : memref<3x32xf32, #tpu.memory_space<vmem>>, vector<3x32xf32>
    %126 = vector.extract_strided_slice %7 {offsets = [0, 0], sizes = [16, 1], strides = [1, 1]} : vector<16x3xf32> to vector<16x1xf32>
    %127 = vector.extract_strided_slice %125 {offsets = [0, 0], sizes = [1, 32], strides = [1, 1]} : vector<3x32xf32> to vector<1x32xf32>
    %128 = vector.broadcast %126 : vector<16x1xf32> to vector<16x32xf32>
    %129 = vector.broadcast %127 : vector<1x32xf32> to vector<16x32xf32>
    %130 = arith.mulf %128, %129 : vector<16x32xf32>
    %131 = vector.extract_strided_slice %7 {offsets = [0, 1], sizes = [16, 1], strides = [1, 1]} : vector<16x3xf32> to vector<16x1xf32>
    %132 = vector.extract_strided_slice %125 {offsets = [1, 0], sizes = [1, 32], strides = [1, 1]} : vector<3x32xf32> to vector<1x32xf32>
    %133 = vector.broadcast %131 : vector<16x1xf32> to vector<16x32xf32>
    %134 = vector.broadcast %132 : vector<1x32xf32> to vector<16x32xf32>
    %135 = arith.mulf %133, %134 : vector<16x32xf32>
    %136 = arith.addf %130, %135 : vector<16x32xf32>
    %137 = vector.extract_strided_slice %7 {offsets = [0, 2], sizes = [16, 1], strides = [1, 1]} : vector<16x3xf32> to vector<16x1xf32>
    %138 = vector.extract_strided_slice %125 {offsets = [2, 0], sizes = [1, 32], strides = [1, 1]} : vector<3x32xf32> to vector<1x32xf32>
    %139 = vector.broadcast %137 : vector<16x1xf32> to vector<16x32xf32>
    %140 = vector.broadcast %138 : vector<1x32xf32> to vector<16x32xf32>
    %141 = arith.mulf %139, %140 : vector<16x32xf32>
    %142 = arith.addf %136, %141 : vector<16x32xf32>
    %cst_66 = arith.constant 1.000000e+00 : f32
    %143 = vector.broadcast %cst_66 : f32 to vector<16x1xf32>
    %144 = arith.subf %143, %124 : vector<16x1xf32>
    %145 = vector.broadcast %144 : vector<16x1xf32> to vector<16x32xf32>
    %146 = arith.mulf %142, %145 : vector<16x32xf32>
    %cst_67 = arith.constant dense<0.000000e+00> : vector<16x32xf32>
    %147 = tpu.matmul %122, %146, %cst_67 {dimension_numbers = #tpu.dot_dimension_numbers<[1], [0], [0], [1], [0, 0, 1, 1], [], []>} : vector<16x16xf32>, vector<16x32xf32>, vector<16x32xf32> -> vector<16x32xf32>
    %c0_68 = arith.constant 0 : index
    %c0_69 = arith.constant 0 : index
    %148 = vector.load %arg18[%c0_68, %c0_69] : memref<16x64xf32, #tpu.memory_space<vmem>>, vector<16x32xf32>
    tpu.vector_store %arg18[%c0_68, %c0_69], %147 {strides = array<i32>} : memref<16x64xf32, #tpu.memory_space<vmem>>, vector<16x32xf32>,
    %c0_70 = arith.constant 0 : index
    %c32 = arith.constant 32 : index
    %149 = vector.load %arg18[%c0_70, %c32] : memref<16x64xf32, #tpu.memory_space<vmem>>, vector<16x32xf32>
    tpu.vector_store %arg18[%c0_70, %c32], %102 {strides = array<i32>} : memref<16x64xf32, #tpu.memory_space<vmem>>, vector<16x32xf32>,
    %c0_71 = arith.constant 0 : index
    %c0_72 = arith.constant 0 : index
    %150 = vector.load %arg18[%c0_71, %c0_72] : memref<16x64xf32, #tpu.memory_space<vmem>>, vector<16x64xf32>
    %c0_73 = arith.constant 0 : index
    %c0_74 = arith.constant 0 : index
    %151 = vector.load %arg14[%c0_73, %c0_74] : memref<64x32xf32, #tpu.memory_space<vmem>>, vector<64x32xf32>
    %cst_75 = arith.constant dense<0.000000e+00> : vector<16x32xf32>
    %152 = tpu.matmul %150, %151, %cst_75 {dimension_numbers = #tpu.dot_dimension_numbers<[1], [0], [0], [1], [0, 0, 1, 1], [], []>} : vector<16x64xf32>, vector<64x32xf32>, vector<16x32xf32> -> vector<16x32xf32>
    %c0_76 = arith.constant 0 : index
    %c0_77 = arith.constant 0 : index
    %153 = vector.load %arg15[%c0_76, %c0_77] : memref<1x32xf32, #tpu.memory_space<vmem>>, vector<1x32xf32>
    %154 = vector.broadcast %153 : vector<1x32xf32> to vector<16x32xf32>
    %155 = arith.addf %152, %154 : vector<16x32xf32>
    %cst_78 = arith.constant 1.000000e+00 : f32
    %156 = vector.broadcast %cst_78 : f32 to vector<16x1xf32>
    %157 = arith.subf %156, %124 : vector<16x1xf32>
    %158 = vector.broadcast %157 : vector<16x1xf32> to vector<16x32xf32>
    %159 = arith.mulf %155, %158 : vector<16x32xf32>
    %c0_79 = arith.constant 0 : index
    %c0_80 = arith.constant 0 : index
    %c0_81 = arith.constant 0 : index
    %160 = vector.load %arg17[%c0_79, %c0_80, %c0_81] : memref<1x16x32xf32, #tpu.memory_space<vmem>>, vector<1x16x32xf32>
    %161 = vector.shape_cast %160 : vector<1x16x32xf32> to vector<16x32xf32>
    %162 = vector.shape_cast %159 : vector<16x32xf32> to vector<1x16x32xf32>
    tpu.vector_store %arg17[%c0_79, %c0_80, %c0_81], %162 {strides = array<i32>} : memref<1x16x32xf32, #tpu.memory_space<vmem>>, vector<1x16x32xf32>,
    return
  }
  func.func @transform_0(%arg0: i32) -> (i32, i32, i32) {
    %c0_i32 = arith.constant 0 : i32
    %c0_i32_0 = arith.constant 0 : i32
    %c0_i32_1 = arith.constant 0 : i32
    return %arg0, %c0_i32, %c0_i32_0 : i32, i32, i32
  }
  func.func @transform_1(%arg0: i32) -> (i32, i32, i32) {
    %c0_i32 = arith.constant 0 : i32
    %c0_i32_0 = arith.constant 0 : i32
    %c0_i32_1 = arith.constant 0 : i32
    return %arg0, %c0_i32, %c0_i32_0 : i32, i32, i32
  }
  func.func @transform_2(%arg0: i32) -> (i32, i32, i32) {
    %c0_i32 = arith.constant 0 : i32
    %c0_i32_0 = arith.constant 0 : i32
    %c0_i32_1 = arith.constant 0 : i32
    return %arg0, %c0_i32, %c0_i32_0 : i32, i32, i32
  }
  func.func @transform_3(%arg0: i32) -> (i32, i32, i32) {
    %c0_i32 = arith.constant 0 : i32
    %c0_i32_0 = arith.constant 0 : i32
    %c0_i32_1 = arith.constant 0 : i32
    return %arg0, %c0_i32, %c0_i32_0 : i32, i32, i32
  }
  func.func @transform_4(%arg0: i32) -> (i32, i32, i32) {
    %c0_i32 = arith.constant 0 : i32
    %c0_i32_0 = arith.constant 0 : i32
    %c0_i32_1 = arith.constant 0 : i32
    return %arg0, %c0_i32, %c0_i32_0 : i32, i32, i32
  }
  func.func @transform_5(%arg0: i32) -> (i32, i32) {
    %c0_i32 = arith.constant 0 : i32
    %c0_i32_0 = arith.constant 0 : i32
    %c0_i32_1 = arith.constant 0 : i32
    return %c0_i32, %c0_i32_0 : i32, i32
  }
  func.func @transform_6(%arg0: i32) -> (i32, i32) {
    %c0_i32 = arith.constant 0 : i32
    %c0_i32_0 = arith.constant 0 : i32
    %c0_i32_1 = arith.constant 0 : i32
    return %c0_i32, %c0_i32_0 : i32, i32
  }
  func.func @transform_7(%arg0: i32) -> (i32, i32) {
    %c0_i32 = arith.constant 0 : i32
    %c0_i32_0 = arith.constant 0 : i32
    %c0_i32_1 = arith.constant 0 : i32
    return %c0_i32, %c0_i32_0 : i32, i32
  }
  func.func @transform_8(%arg0: i32) -> (i32, i32) {
    %c0_i32 = arith.constant 0 : i32
    %c0_i32_0 = arith.constant 0 : i32
    %c0_i32_1 = arith.constant 0 : i32
    return %c0_i32, %c0_i32_0 : i32, i32
  }
  func.func @transform_9(%arg0: i32) -> (i32, i32) {
    %c0_i32 = arith.constant 0 : i32
    %c0_i32_0 = arith.constant 0 : i32
    %c0_i32_1 = arith.constant 0 : i32
    return %c0_i32, %c0_i32_0 : i32, i32
  }
  func.func @transform_10(%arg0: i32) -> (i32, i32) {
    %c0_i32 = arith.constant 0 : i32
    %c0_i32_0 = arith.constant 0 : i32
    %c0_i32_1 = arith.constant 0 : i32
    return %c0_i32, %c0_i32_0 : i32, i32
  }
  func.func @transform_11(%arg0: i32) -> (i32, i32) {
    %c0_i32 = arith.constant 0 : i32
    %c0_i32_0 = arith.constant 0 : i32
    %c0_i32_1 = arith.constant 0 : i32
    return %c0_i32, %c0_i32_0 : i32, i32
  }
  func.func @transform_12(%arg0: i32) -> (i32, i32) {
    %c0_i32 = arith.constant 0 : i32
    %c0_i32_0 = arith.constant 0 : i32
    %c0_i32_1 = arith.constant 0 : i32
    return %c0_i32, %c0_i32_0 : i32, i32
  }
  func.func @transform_13(%arg0: i32) -> (i32, i32) {
    %c0_i32 = arith.constant 0 : i32
    %c0_i32_0 = arith.constant 0 : i32
    %c0_i32_1 = arith.constant 0 : i32
    return %c0_i32, %c0_i32_0 : i32, i32
  }
  func.func @transform_14(%arg0: i32) -> (i32, i32) {
    %c0_i32 = arith.constant 0 : i32
    %c0_i32_0 = arith.constant 0 : i32
    %c0_i32_1 = arith.constant 0 : i32
    return %c0_i32, %c0_i32_0 : i32, i32
  }
  func.func @transform_15(%arg0: i32) -> (i32, i32, i32) {
    %c0_i32 = arith.constant 0 : i32
    %c0_i32_0 = arith.constant 0 : i32
    %c0_i32_1 = arith.constant 0 : i32
    return %arg0, %c0_i32, %c0_i32_0 : i32, i32, i32
  }
  func.func @transform_16(%arg0: i32) -> (i32, i32, i32) {
    %c0_i32 = arith.constant 0 : i32
    %c0_i32_0 = arith.constant 0 : i32
    %c0_i32_1 = arith.constant 0 : i32
    return %arg0, %c0_i32, %c0_i32_0 : i32, i32, i32
  }
}

</mosaic_0001>

<llo_original>
// kernel: squeeze.0
$region0: #{squeeze.0}
  %s0 = inlined_call_operand.vmem [shape: f32[2,16,16], index: 0, kind: input, shape index: {}]
  %s1 = inlined_call_operand.vmem [shape: f32[2,256,1], index: 1, kind: output, shape index: {}]
  %v2 = vld [vmem:[%s0] sm:$0xff]
  %vm3 = vcmask 7168
  %4 = vst.msk [vmem:[%s1] ss:$16 sm:$0x3] %vm3, %v2
  %5 = vst.msk [vmem:[%s1] ss:$16 sm:$0xc] %vm3, %v2
  %6 = vst.msk [vmem:[%s1] ss:$16 sm:$0x30] %vm3, %v2
  %7 = vst.msk [vmem:[%s1] ss:$16 sm:$0xc0] %vm3, %v2
  %s8 = scalar_lea.vmem %s0, 8
  %v9 = vld [vmem:[%s8] sm:$0xff]
  %vm10 = vcmask 7168
  %s11 = scalar_lea.vmem %s1, 128
  %12 = vst.msk [vmem:[%s11] ss:$16 sm:$0x3] %vm10, %v9
  %s13 = scalar_lea.vmem %s1, 128
  %14 = vst.msk [vmem:[%s13] ss:$16 sm:$0xc] %vm10, %v9
  %s15 = scalar_lea.vmem %s1, 128
  %16 = vst.msk [vmem:[%s15] ss:$16 sm:$0x30] %vm10, %v9
  %s17 = scalar_lea.vmem %s1, 128
  %18 = vst.msk [vmem:[%s17] ss:$16 sm:$0xc0] %vm10, %v9
  %s19 = scalar_lea.vmem %s0, 16
  %v20 = vld [vmem:[%s19] sm:$0xff]
  %vm21 = vcmask 7168
  %s22 = scalar_lea.vmem %s1, 256
  %23 = vst.msk [vmem:[%s22] ss:$16 sm:$0x3] %vm21, %v20
  %s24 = scalar_lea.vmem %s1, 256
  %25 = vst.msk [vmem:[%s24] ss:$16 sm:$0xc] %vm21, %v20
  %s26 = scalar_lea.vmem %s1, 256
  %27 = vst.msk [vmem:[%s26] ss:$16 sm:$0x30] %vm21, %v20
  %s28 = scalar_lea.vmem %s1, 256
  %29 = vst.msk [vmem:[%s28] ss:$16 sm:$0xc0] %vm21, %v20
  %s30 = scalar_lea.vmem %s0, 24
  %v31 = vld [vmem:[%s30] sm:$0xff]
  %vm32 = vcmask 7168
  %s33 = scalar_lea.vmem %s1, 384
  %34 = vst.msk [vmem:[%s33] ss:$16 sm:$0x3] %vm32, %v31
  %s35 = scalar_lea.vmem %s1, 384
  %36 = vst.msk [vmem:[%s35] ss:$16 sm:$0xc] %vm32, %v31
  %s37 = scalar_lea.vmem %s1, 384
  %38 = vst.msk [vmem:[%s37] ss:$16 sm:$0x30] %vm32, %v31
  %s39 = scalar_lea.vmem %s1, 384
  %40 = vst.msk [vmem:[%s39] ss:$16 sm:$0xc0] %vm32, %v31
  %v41 = vld [vmem:[%s0] sm:$0xff]
  %42 = vrot.lane.b32.xlu0 %v41, 127
  %v43 = vpop.permute.xlu0 %42
  %vm44 = vcmask 7168
  %s45 = scalar_lea.vmem %s1, 1
  %46 = vst.msk [vmem:[%s45] ss:$16 sm:$0x3] %vm44, %v43
  %s47 = scalar_lea.vmem %s1, 1
  %48 = vst.msk [vmem:[%s47] ss:$16 sm:$0xc] %vm44, %v43
  %s49 = scalar_lea.vmem %s1, 1
  %50 = vst.msk [vmem:[%s49] ss:$16 sm:$0x30] %vm44, %v43
  %s51 = scalar_lea.vmem %s1, 1
  %52 = vst.msk [vmem:[%s51] ss:$16 sm:$0xc0] %vm44, %v43
  %s53 = scalar_lea.vmem %s0, 8
  %v54 = vld [vmem:[%s53] sm:$0xff]
  %55 = vrot.lane.b32.xlu0 %v54, 127
  %v56 = vpop.permute.xlu0 %55
  %vm57 = vcmask 7168
  %s58 = scalar_lea.vmem %s1, 129
  %59 = vst.msk [vmem:[%s58] ss:$16 sm:$0x3] %vm57, %v56
  %s60 = scalar_lea.vmem %s1, 129
  %61 = vst.msk [vmem:[%s60] ss:$16 sm:$0xc] %vm57, %v56
  %s62 = scalar_lea.vmem %s1, 129
  %63 = vst.msk [vmem:[%s62] ss:$16 sm:$0x30] %vm57, %v56
  %s64 = scalar_lea.vmem %s1, 129
  %65 = vst.msk [vmem:[%s64] ss:$16 sm:$0xc0] %vm57, %v56
  %s66 = scalar_lea.vmem %s0, 16
  %v67 = vld [vmem:[%s66] sm:$0xff]
  %68 = vrot.lane.b32.xlu0 %v67, 127
  %v69 = vpop.permute.xlu0 %68
  %vm70 = vcmask 7168
  %s71 = scalar_lea.vmem %s1, 257
  %72 = vst.msk [vmem:[%s71] ss:$16 sm:$0x3] %vm70, %v69
  %s73 = scalar_lea.vmem %s1, 257
  %74 = vst.msk [vmem:[%s73] ss:$16 sm:$0xc] %vm70, %v69
  %s75 = scalar_lea.vmem %s1, 257
  %76 = vst.msk [vmem:[%s75] ss:$16 sm:$0x30] %vm70, %v69
  %s77 = scalar_lea.vmem %s1, 257
  %78 = vst.msk [vmem:[%s77] ss:$16 sm:$0xc0] %vm70, %v69
  %s79 = scalar_lea.vmem %s0, 24
  %v80 = vld [vmem:[%s79] sm:$0xff]
  %81 = vrot.lane.b32.xlu0 %v80, 127
  %v82 = vpop.permute.xlu0 %81
  %vm83 = vcmask 7168
  %s84 = scalar_lea.vmem %s1, 385
  %85 = vst.msk [vmem:[%s84] ss:$16 sm:$0x3] %vm83, %v82
  %s86 = scalar_lea.vmem %s1, 385
  %87 = vst.msk [vmem:[%s86] ss:$16 sm:$0xc] %vm83, %v82
  %s88 = scalar_lea.vmem %s1, 385
  %89 = vst.msk [vmem:[%s88] ss:$16 sm:$0x30] %vm83, %v82
  %s90 = scalar_lea.vmem %s1, 385
  %91 = vst.msk [vmem:[%s90] ss:$16 sm:$0xc0] %vm83, %v82
  %v92 = vld [vmem:[%s0] sm:$0xff]
  %93 = vrot.lane.b32.xlu0 %v92, 126
  %v94 = vpop.permute.xlu0 %93
  %vm95 = vcmask 7168
  %s96 = scalar_lea.vmem %s1, 2
  %97 = vst.msk [vmem:[%s96] ss:$16 sm:$0x3] %vm95, %v94
  %s98 = scalar_lea.vmem %s1, 2
  %99 = vst.msk [vmem:[%s98] ss:$16 sm:$0xc] %vm95, %v94
  %s100 = scalar_lea.vmem %s1, 2
  %101 = vst.msk [vmem:[%s100] ss:$16 sm:$0x30] %vm95, %v94
  %s102 = scalar_lea.vmem %s1, 2
  %103 = vst.msk [vmem:[%s102] ss:$16 sm:$0xc0] %vm95, %v94
  %s104 = scalar_lea.vmem %s0, 8
  %v105 = vld [vmem:[%s104] sm:$0xff]
  %106 = vrot.lane.b32.xlu0 %v105, 126
  %v107 = vpop.permute.xlu0 %106
  %vm108 = vcmask 7168
  %s109 = scalar_lea.vmem %s1, 130
  %110 = vst.msk [vmem:[%s109] ss:$16 sm:$0x3] %vm108, %v107
  %s111 = scalar_lea.vmem %s1, 130
  %112 = vst.msk [vmem:[%s111] ss:$16 sm:$0xc] %vm108, %v107
  %s113 = scalar_lea.vmem %s1, 130
  %114 = vst.msk [vmem:[%s113] ss:$16 sm:$0x30] %vm108, %v107
  %s115 = scalar_lea.vmem %s1, 130
  %116 = vst.msk [vmem:[%s115] ss:$16 sm:$0xc0] %vm108, %v107
  %s117 = scalar_lea.vmem %s0, 16
  %v118 = vld [vmem:[%s117] sm:$0xff]
  %119 = vrot.lane.b32.xlu0 %v118, 126
  %v120 = vpop.permute.xlu0 %119
  %vm121 = vcmask 7168
  %s122 = scalar_lea.vmem %s1, 258
  %123 = vst.msk [vmem:[%s122] ss:$16 sm:$0x3] %vm121, %v120
  %s124 = scalar_lea.vmem %s1, 258
  %125 = vst.msk [vmem:[%s124] ss:$16 sm:$0xc] %vm121, %v120
  %s126 = scalar_lea.vmem %s1, 258
  %127 = vst.msk [vmem:[%s126] ss:$16 sm:$0x30] %vm121, %v120
  %s128 = scalar_lea.vmem %s1, 258
  %129 = vst.msk [vmem:[%s128] ss:$16 sm:$0xc0] %vm121, %v120
  %s130 = scalar_lea.vmem %s0, 24
  %v131 = vld [vmem:[%s130] sm:$0xff]
  %132 = vrot.lane.b32.xlu0 %v131, 126
  %v133 = vpop.permute.xlu0 %132
  %vm134 = vcmask 7168
  %s135 = scalar_lea.vmem %s1, 386
  %136 = vst.msk [vmem:[%s135] ss:$16 sm:$0x3] %vm134, %v133
  %s137 = scalar_lea.vmem %s1, 386
  %138 = vst.msk [vmem:[%s137] ss:$16 sm:$0xc] %vm134, %v133
  %s139 = scalar_lea.vmem %s1, 386
  %140 = vst.msk [vmem:[%s139] ss:$16 sm:$0x30] %vm134, %v133
  %s141 = scalar_lea.vmem %s1, 386
  %142 = vst.msk [vmem:[%s141] ss:$16 sm:$0xc0] %vm134, %v133
  %v143 = vld [vmem:[%s0] sm:$0xff]
  %144 = vrot.lane.b32.xlu0 %v143, 125
  %v145 = vpop.permute.xlu0 %144
  %vm146 = vcmask 7168
  %s147 = scalar_lea.vmem %s1, 3
  %148 = vst.msk [vmem:[%s147] ss:$16 sm:$0x3] %vm146, %v145
  %s149 = scalar_lea.vmem %s1, 3
  %150 = vst.msk [vmem:[%s149] ss:$16 sm:$0xc] %vm146, %v145
  %s151 = scalar_lea.vmem %s1, 3
  %152 = vst.msk [vmem:[%s151] ss:$16 sm:$0x30] %vm146, %v145
  %s153 = scalar_lea.vmem %s1, 3
  %154 = vst.msk [vmem:[%s153] ss:$16 sm:$0xc0] %vm146, %v145
  %s155 = scalar_lea.vmem %s0, 8
  %v156 = vld [vmem:[%s155] sm:$0xff]
  %157 = vrot.lane.b32.xlu0 %v156, 125
  %v158 = vpop.permute.xlu0 %157
  %vm159 = vcmask 7168
  %s160 = scalar_lea.vmem %s1, 131
  %161 = vst.msk [vmem:[%s160] ss:$16 sm:$0x3] %vm159, %v158
  %s162 = scalar_lea.vmem %s1, 131
  %163 = vst.msk [vmem:[%s162] ss:$16 sm:$0xc] %vm159, %v158
  %s164 = scalar_lea.vmem %s1, 131
  %165 = vst.msk [vmem:[%s164] ss:$16 sm:$0x30] %vm159, %v158
  %s166 = scalar_lea.vmem %s1, 131
  %167 = vst.msk [vmem:[%s166] ss:$16 sm:$0xc0] %vm159, %v158
  %s168 = scalar_lea.vmem %s0, 16
  %v169 = vld [vmem:[%s168] sm:$0xff]
  %170 = vrot.lane.b32.xlu0 %v169, 125
  %v171 = vpop.permute.xlu0 %170
  %vm172 = vcmask 7168
  %s173 = scalar_lea.vmem %s1, 259
  %174 = vst.msk [vmem:[%s173] ss:$16 sm:$0x3] %vm172, %v171
  %s175 = scalar_lea.vmem %s1, 259
  %176 = vst.msk [vmem:[%s175] ss:$16 sm:$0xc] %vm172, %v171
  %s177 = scalar_lea.vmem %s1, 259
  %178 = vst.msk [vmem:[%s177] ss:$16 sm:$0x30] %vm172, %v171
  %s179 = scalar_lea.vmem %s1, 259
  %180 = vst.msk [vmem:[%s179] ss:$16 sm:$0xc0] %vm172, %v171
  %s181 = scalar_lea.vmem %s0, 24
  %v182 = vld [vmem:[%s181] sm:$0xff]
  %183 = vrot.lane.b32.xlu0 %v182, 125
  %v184 = vpop.permute.xlu0 %183
  %vm185 = vcmask 7168
  %s186 = scalar_lea.vmem %s1, 387
  %187 = vst.msk [vmem:[%s186] ss:$16 sm:$0x3] %vm185, %v184
  %s188 = scalar_lea.vmem %s1, 387
  %189 = vst.msk [vmem:[%s188] ss:$16 sm:$0xc] %vm185, %v184
  %s190 = scalar_lea.vmem %s1, 387
  %191 = vst.msk [vmem:[%s190] ss:$16 sm:$0x30] %vm185, %v184
  %s192 = scalar_lea.vmem %s1, 387
  %193 = vst.msk [vmem:[%s192] ss:$16 sm:$0xc0] %vm185, %v184
  %v194 = vld [vmem:[%s0] sm:$0xff]
  %195 = vrot.lane.b32.xlu0 %v194, 124
  %v196 = vpop.permute.xlu0 %195
  %vm197 = vcmask 7168
  %s198 = scalar_lea.vmem %s1, 4
  %199 = vst.msk [vmem:[%s198] ss:$16 sm:$0x3] %vm197, %v196
  %s200 = scalar_lea.vmem %s1, 4
  %201 = vst.msk [vmem:[%s200] ss:$16 sm:$0xc] %vm197, %v196
  %s202 = scalar_lea.vmem %s1, 4
  %203 = vst.msk [vmem:[%s202] ss:$16 sm:$0x30] %vm197, %v196
  %s204 = scalar_lea.vmem %s1, 4
  %205 = vst.msk [vmem:[%s204] ss:$16 sm:$0xc0] %vm197, %v196
  %s206 = scalar_lea.vmem %s0, 8
  %v207 = vld [vmem:[%s206] sm:$0xff]
  %208 = vrot.lane.b32.xlu0 %v207, 124
  %v209 = vpop.permute.xlu0 %208
  %vm210 = vcmask 7168
  %s211 = scalar_lea.vmem %s1, 132
  %212 = vst.msk [vmem:[%s211] ss:$16 sm:$0x3] %vm210, %v209
  %s213 = scalar_lea.vmem %s1, 132
  %214 = vst.msk [vmem:[%s213] ss:$16 sm:$0xc] %vm210, %v209
  %s215 = scalar_lea.vmem %s1, 132
  %216 = vst.msk [vmem:[%s215] ss:$16 sm:$0x30] %vm210, %v209
  %s217 = scalar_lea.vmem %s1, 132
  %218 = vst.msk [vmem:[%s217] ss:$16 sm:$0xc0] %vm210, %v209
  %s219 = scalar_lea.vmem %s0, 16
  %v220 = vld [vmem:[%s219] sm:$0xff]
  %221 = vrot.lane.b32.xlu0 %v220, 124
  %v222 = vpop.permute.xlu0 %221
  %vm223 = vcmask 7168
  %s224 = scalar_lea.vmem %s1, 260
  %225 = vst.msk [vmem:[%s224] ss:$16 sm:$0x3] %vm223, %v222
  %s226 = scalar_lea.vmem %s1, 260
  %227 = vst.msk [vmem:[%s226] ss:$16 sm:$0xc] %vm223, %v222
  %s228 = scalar_lea.vmem %s1, 260
  %229 = vst.msk [vmem:[%s228] ss:$16 sm:$0x30] %vm223, %v222
  %s230 = scalar_lea.vmem %s1, 260
  %231 = vst.msk [vmem:[%s230] ss:$16 sm:$0xc0] %vm223, %v222
  %s232 = scalar_lea.vmem %s0, 24
  %v233 = vld [vmem:[%s232] sm:$0xff]
  %234 = vrot.lane.b32.xlu0 %v233, 124
  %v235 = vpop.permute.xlu0 %234
  %vm236 = vcmask 7168
  %s237 = scalar_lea.vmem %s1, 388
  %238 = vst.msk [vmem:[%s237] ss:$16 sm:$0x3] %vm236, %v235
  %s239 = scalar_lea.vmem %s1, 388
  %240 = vst.msk [vmem:[%s239] ss:$16 sm:$0xc] %vm236, %v235
  %s241 = scalar_lea.vmem %s1, 388
  %242 = vst.msk [vmem:[%s241] ss:$16 sm:$0x30] %vm236, %v235
  %s243 = scalar_lea.vmem %s1, 388
  %244 = vst.msk [vmem:[%s243] ss:$16 sm:$0xc0] %vm236, %v235
  %v245 = vld [vmem:[%s0] sm:$0xff]
  %246 = vrot.lane.b32.xlu0 %v245, 123
  %v247 = vpop.permute.xlu0 %246
  %vm248 = vcmask 7168
  %s249 = scalar_lea.vmem %s1, 5
  %250 = vst.msk [vmem:[%s249] ss:$16 sm:$0x3] %vm248, %v247
  %s251 = scalar_lea.vmem %s1, 5
  %252 = vst.msk [vmem:[%s251] ss:$16 sm:$0xc] %vm248, %v247
  %s253 = scalar_lea.vmem %s1, 5
  %254 = vst.msk [vmem:[%s253] ss:$16 sm:$0x30] %vm248, %v247
  %s255 = scalar_lea.vmem %s1, 5
  %256 = vst.msk [vmem:[%s255] ss:$16 sm:$0xc0] %vm248, %v247
  %s257 = scalar_lea.vmem %s0, 8
  %v258 = vld [vmem:[%s257] sm:$0xff]
  %259 = vrot.lane.b32.xlu0 %v258, 123
  %v260 = vpop.permute.xlu0 %259
  %vm261 = vcmask 7168
  %s262 = scalar_lea.vmem %s1, 133
  %263 = vst.msk [vmem:[%s262] ss:$16 sm:$0x3] %vm261, %v260
  %s264 = scalar_lea.vmem %s1, 133
  %265 = vst.msk [vmem:[%s264] ss:$16 sm:$0xc] %vm261, %v260
  %s266 = scalar_lea.vmem %s1, 133
  %267 = vst.msk [vmem:[%s266] ss:$16 sm:$0x30] %vm261, %v260
  %s268 = scalar_lea.vmem %s1, 133
  %269 = vst.msk [vmem:[%s268] ss:$16 sm:$0xc0] %vm261, %v260
  %s270 = scalar_lea.vmem %s0, 16
  %v271 = vld [vmem:[%s270] sm:$0xff]
  %272 = vrot.lane.b32.xlu0 %v271, 123
  %v273 = vpop.permute.xlu0 %272
  %vm274 = vcmask 7168
  %s275 = scalar_lea.vmem %s1, 261
  %276 = vst.msk [vmem:[%s275] ss:$16 sm:$0x3] %vm274, %v273
  %s277 = scalar_lea.vmem %s1, 261
  %278 = vst.msk [vmem:[%s277] ss:$16 sm:$0xc] %vm274, %v273
  %s279 = scalar_lea.vmem %s1, 261
  %280 = vst.msk [vmem:[%s279] ss:$16 sm:$0x30] %vm274, %v273
  %s281 = scalar_lea.vmem %s1, 261
  %282 = vst.msk [vmem:[%s281] ss:$16 sm:$0xc0] %vm274, %v273
  %s283 = scalar_lea.vmem %s0, 24
  %v284 = vld [vmem:[%s283] sm:$0xff]
  %285 = vrot.lane.b32.xlu0 %v284, 123
  %v286 = vpop.permute.xlu0 %285
  %vm287 = vcmask 7168
  %s288 = scalar_lea.vmem %s1, 389
  %289 = vst.msk [vmem:[%s288] ss:$16 sm:$0x3] %vm287, %v286
  %s290 = scalar_lea.vmem %s1, 389
  %291 = vst.msk [vmem:[%s290] ss:$16 sm:$0xc] %vm287, %v286
  %s292 = scalar_lea.vmem %s1, 389
  %293 = vst.msk [vmem:[%s292] ss:$16 sm:$0x30] %vm287, %v286
  %s294 = scalar_lea.vmem %s1, 389
  %295 = vst.msk [vmem:[%s294] ss:$16 sm:$0xc0] %vm287, %v286
  %v296 = vld [vmem:[%s0] sm:$0xff]
  %297 = vrot.lane.b32.xlu0 %v296, 122
  %v298 = vpop.permute.xlu0 %297
  %vm299 = vcmask 7168
  %s300 = scalar_lea.vmem %s1, 6
  %301 = vst.msk [vmem:[%s300] ss:$16 sm:$0x3] %vm299, %v298
  %s302 = scalar_lea.vmem %s1, 6
  %303 = vst.msk [vmem:[%s302] ss:$16 sm:$0xc] %vm299, %v298
  %s304 = scalar_lea.vmem %s1, 6
  %305 = vst.msk [vmem:[%s304] ss:$16 sm:$0x30] %vm299, %v298
  %s306 = scalar_lea.vmem %s1, 6
  %307 = vst.msk [vmem:[%s306] ss:$16 sm:$0xc0] %vm299, %v298
  %s308 = scalar_lea.vmem %s0, 8
  %v309 = vld [vmem:[%s308] sm:$0xff]
  %310 = vrot.lane.b32.xlu0 %v309, 122
  %v311 = vpop.permute.xlu0 %310
  %vm312 = vcmask 7168
  %s313 = scalar_lea.vmem %s1, 134
  %314 = vst.msk [vmem:[%s313] ss:$16 sm:$0x3] %vm312, %v311
  %s315 = scalar_lea.vmem %s1, 134
  %316 = vst.msk [vmem:[%s315] ss:$16 sm:$0xc] %vm312, %v311
  %s317 = scalar_lea.vmem %s1, 134
  %318 = vst.msk [vmem:[%s317] ss:$16 sm:$0x30] %vm312, %v311
  %s319 = scalar_lea.vmem %s1, 134
  %320 = vst.msk [vmem:[%s319] ss:$16 sm:$0xc0] %vm312, %v311
  %s321 = scalar_lea.vmem %s0, 16
  %v322 = vld [vmem:[%s321] sm:$0xff]
  %323 = vrot.lane.b32.xlu0 %v322, 122
  %v324 = vpop.permute.xlu0 %323
  %vm325 = vcmask 7168
  %s326 = scalar_lea.vmem %s1, 262
  %327 = vst.msk [vmem:[%s326] ss:$16 sm:$0x3] %vm325, %v324
  %s328 = scalar_lea.vmem %s1, 262
  %329 = vst.msk [vmem:[%s328] ss:$16 sm:$0xc] %vm325, %v324
  %s330 = scalar_lea.vmem %s1, 262
  %331 = vst.msk [vmem:[%s330] ss:$16 sm:$0x30] %vm325, %v324
  %s332 = scalar_lea.vmem %s1, 262
  %333 = vst.msk [vmem:[%s332] ss:$16 sm:$0xc0] %vm325, %v324
  %s334 = scalar_lea.vmem %s0, 24
  %v335 = vld [vmem:[%s334] sm:$0xff]
  %336 = vrot.lane.b32.xlu0 %v335, 122
  %v337 = vpop.permute.xlu0 %336
  %vm338 = vcmask 7168
  %s339 = scalar_lea.vmem %s1, 390
  %340 = vst.msk [vmem:[%s339] ss:$16 sm:$0x3] %vm338, %v337
  %s341 = scalar_lea.vmem %s1, 390
  %342 = vst.msk [vmem:[%s341] ss:$16 sm:$0xc] %vm338, %v337
  %s343 = scalar_lea.vmem %s1, 390
  %344 = vst.msk [vmem:[%s343] ss:$16 sm:$0x30] %vm338, %v337
  %s345 = scalar_lea.vmem %s1, 390
  %346 = vst.msk [vmem:[%s345] ss:$16 sm:$0xc0] %vm338, %v337
  %v347 = vld [vmem:[%s0] sm:$0xff]
  %348 = vrot.lane.b32.xlu0 %v347, 121
  %v349 = vpop.permute.xlu0 %348
  %vm350 = vcmask 7168
  %s351 = scalar_lea.vmem %s1, 7
  %352 = vst.msk [vmem:[%s351] ss:$16 sm:$0x3] %vm350, %v349
  %s353 = scalar_lea.vmem %s1, 7
  %354 = vst.msk [vmem:[%s353] ss:$16 sm:$0xc] %vm350, %v349
  %s355 = scalar_lea.vmem %s1, 7
  %356 = vst.msk [vmem:[%s355] ss:$16 sm:$0x30] %vm350, %v349
  %s357 = scalar_lea.vmem %s1, 7
  %358 = vst.msk [vmem:[%s357] ss:$16 sm:$0xc0] %vm350, %v349
  %s359 = scalar_lea.vmem %s0, 8
  %v360 = vld [vmem:[%s359] sm:$0xff]
  %361 = vrot.lane.b32.xlu0 %v360, 121
  %v362 = vpop.permute.xlu0 %361
  %vm363 = vcmask 7168
  %s364 = scalar_lea.vmem %s1, 135
  %365 = vst.msk [vmem:[%s364] ss:$16 sm:$0x3] %vm363, %v362
  %s366 = scalar_lea.vmem %s1, 135
  %367 = vst.msk [vmem:[%s366] ss:$16 sm:$0xc] %vm363, %v362
  %s368 = scalar_lea.vmem %s1, 135
  %369 = vst.msk [vmem:[%s368] ss:$16 sm:$0x30] %vm363, %v362
  %s370 = scalar_lea.vmem %s1, 135
  %371 = vst.msk [vmem:[%s370] ss:$16 sm:$0xc0] %vm363, %v362
  %s372 = scalar_lea.vmem %s0, 16
  %v373 = vld [vmem:[%s372] sm:$0xff]
  %374 = vrot.lane.b32.xlu0 %v373, 121
  %v375 = vpop.permute.xlu0 %374
  %vm376 = vcmask 7168
  %s377 = scalar_lea.vmem %s1, 263
  %378 = vst.msk [vmem:[%s377] ss:$16 sm:$0x3] %vm376, %v375
  %s379 = scalar_lea.vmem %s1, 263
  %380 = vst.msk [vmem:[%s379] ss:$16 sm:$0xc] %vm376, %v375
  %s381 = scalar_lea.vmem %s1, 263
  %382 = vst.msk [vmem:[%s381] ss:$16 sm:$0x30] %vm376, %v375
  %s383 = scalar_lea.vmem %s1, 263
  %384 = vst.msk [vmem:[%s383] ss:$16 sm:$0xc0] %vm376, %v375
  %s385 = scalar_lea.vmem %s0, 24
  %v386 = vld [vmem:[%s385] sm:$0xff]
  %387 = vrot.lane.b32.xlu0 %v386, 121
  %v388 = vpop.permute.xlu0 %387
  %vm389 = vcmask 7168
  %s390 = scalar_lea.vmem %s1, 391
  %391 = vst.msk [vmem:[%s390] ss:$16 sm:$0x3] %vm389, %v388
  %s392 = scalar_lea.vmem %s1, 391
  %393 = vst.msk [vmem:[%s392] ss:$16 sm:$0xc] %vm389, %v388
  %s394 = scalar_lea.vmem %s1, 391
  %395 = vst.msk [vmem:[%s394] ss:$16 sm:$0x30] %vm389, %v388
  %s396 = scalar_lea.vmem %s1, 391
  %397 = vst.msk [vmem:[%s396] ss:$16 sm:$0xc0] %vm389, %v388
  %v398 = vld [vmem:[%s0] sm:$0xff]
  %399 = vrot.lane.b32.xlu0 %v398, 120
  %v400 = vpop.permute.xlu0 %399
  %vm401 = vcmask 7168
  %s402 = scalar_lea.vmem %s1, 8
  %403 = vst.msk [vmem:[%s402] ss:$16 sm:$0x3] %vm401, %v400
  %s404 = scalar_lea.vmem %s1, 8
  %405 = vst.msk [vmem:[%s404] ss:$16 sm:$0xc] %vm401, %v400
  %s406 = scalar_lea.vmem %s1, 8
  %407 = vst.msk [vmem:[%s406] ss:$16 sm:$0x30] %vm401, %v400
  %s408 = scalar_lea.vmem %s1, 8
  %409 = vst.msk [vmem:[%s408] ss:$16 sm:$0xc0] %vm401, %v400
  %s410 = scalar_lea.vmem %s0, 8
  %v411 = vld [vmem:[%s410] sm:$0xff]
  %412 = vrot.lane.b32.xlu0 %v411, 120
  %v413 = vpop.permute.xlu0 %412
  %vm414 = vcmask 7168
  %s415 = scalar_lea.vmem %s1, 136
  %416 = vst.msk [vmem:[%s415] ss:$16 sm:$0x3] %vm414, %v413
  %s417 = scalar_lea.vmem %s1, 136
  %418 = vst.msk [vmem:[%s417] ss:$16 sm:$0xc] %vm414, %v413
  %s419 = scalar_lea.vmem %s1, 136
  %420 = vst.msk [vmem:[%s419] ss:$16 sm:$0x30] %vm414, %v413
  %s421 = scalar_lea.vmem %s1, 136
  %422 = vst.msk [vmem:[%s421] ss:$16 sm:$0xc0] %vm414, %v413
  %s423 = scalar_lea.vmem %s0, 16
  %v424 = vld [vmem:[%s423] sm:$0xff]
  %425 = vrot.lane.b32.xlu0 %v424, 120
  %v426 = vpop.permute.xlu0 %425
  %vm427 = vcmask 7168
  %s428 = scalar_lea.vmem %s1, 264
  %429 = vst.msk [vmem:[%s428] ss:$16 sm:$0x3] %vm427, %v426
  %s430 = scalar_lea.vmem %s1, 264
  %431 = vst.msk [vmem:[%s430] ss:$16 sm:$0xc] %vm427, %v426
  %s432 = scalar_lea.vmem %s1, 264
  %433 = vst.msk [vmem:[%s432] ss:$16 sm:$0x30] %vm427, %v426
  %s434 = scalar_lea.vmem %s1, 264
  %435 = vst.msk [vmem:[%s434] ss:$16 sm:$0xc0] %vm427, %v426
  %s436 = scalar_lea.vmem %s0, 24
  %v437 = vld [vmem:[%s436] sm:$0xff]
  %438 = vrot.lane.b32.xlu0 %v437, 120
  %v439 = vpop.permute.xlu0 %438
  %vm440 = vcmask 7168
  %s441 = scalar_lea.vmem %s1, 392
  %442 = vst.msk [vmem:[%s441] ss:$16 sm:$0x3] %vm440, %v439
  %s443 = scalar_lea.vmem %s1, 392
  %444 = vst.msk [vmem:[%s443] ss:$16 sm:$0xc] %vm440, %v439
  %s445 = scalar_lea.vmem %s1, 392
  %446 = vst.msk [vmem:[%s445] ss:$16 sm:$0x30] %vm440, %v439
  %s447 = scalar_lea.vmem %s1, 392
  %448 = vst.msk [vmem:[%s447] ss:$16 sm:$0xc0] %vm440, %v439
  %v449 = vld [vmem:[%s0] sm:$0xff]
  %450 = vrot.lane.b32.xlu0 %v449, 119
  %v451 = vpop.permute.xlu0 %450
  %vm452 = vcmask 7168
  %s453 = scalar_lea.vmem %s1, 9
  %454 = vst.msk [vmem:[%s453] ss:$16 sm:$0x3] %vm452, %v451
  %s455 = scalar_lea.vmem %s1, 9
  %456 = vst.msk [vmem:[%s455] ss:$16 sm:$0xc] %vm452, %v451
  %s457 = scalar_lea.vmem %s1, 9
  %458 = vst.msk [vmem:[%s457] ss:$16 sm:$0x30] %vm452, %v451
  %s459 = scalar_lea.vmem %s1, 9
  %460 = vst.msk [vmem:[%s459] ss:$16 sm:$0xc0] %vm452, %v451
  %s461 = scalar_lea.vmem %s0, 8
  %v462 = vld [vmem:[%s461] sm:$0xff]
  %463 = vrot.lane.b32.xlu0 %v462, 119
  %v464 = vpop.permute.xlu0 %463
  %vm465 = vcmask 7168
  %s466 = scalar_lea.vmem %s1, 137
  %467 = vst.msk [vmem:[%s466] ss:$16 sm:$0x3] %vm465, %v464
  %s468 = scalar_lea.vmem %s1, 137
  %469 = vst.msk [vmem:[%s468] ss:$16 sm:$0xc] %vm465, %v464
  %s470 = scalar_lea.vmem %s1, 137
  %471 = vst.msk [vmem:[%s470] ss:$16 sm:$0x30] %vm465, %v464
  %s472 = scalar_lea.vmem %s1, 137
  %473 = vst.msk [vmem:[%s472] ss:$16 sm:$0xc0] %vm465, %v464
  %s474 = scalar_lea.vmem %s0, 16
  %v475 = vld [vmem:[%s474] sm:$0xff]
  %476 = vrot.lane.b32.xlu0 %v475, 119
  %v477 = vpop.permute.xlu0 %476
  %vm478 = vcmask 7168
  %s479 = scalar_lea.vmem %s1, 265
  %480 = vst.msk [vmem:[%s479] ss:$16 sm:$0x3] %vm478, %v477
  %s481 = scalar_lea.vmem %s1, 265
  %482 = vst.msk [vmem:[%s481] ss:$16 sm:$0xc] %vm478, %v477
  %s483 = scalar_lea.vmem %s1, 265
  %484 = vst.msk [vmem:[%s483] ss:$16 sm:$0x30] %vm478, %v477
  %s485 = scalar_lea.vmem %s1, 265
  %486 = vst.msk [vmem:[%s485] ss:$16 sm:$0xc0] %vm478, %v477
  %s487 = scalar_lea.vmem %s0, 24
  %v488 = vld [vmem:[%s487] sm:$0xff]
  %489 = vrot.lane.b32.xlu0 %v488, 119
  %v490 = vpop.permute.xlu0 %489
  %vm491 = vcmask 7168
  %s492 = scalar_lea.vmem %s1, 393
  %493 = vst.msk [vmem:[%s492] ss:$16 sm:$0x3] %vm491, %v490
  %s494 = scalar_lea.vmem %s1, 393
  %495 = vst.msk [vmem:[%s494] ss:$16 sm:$0xc] %vm491, %v490
  %s496 = scalar_lea.vmem %s1, 393
  %497 = vst.msk [vmem:[%s496] ss:$16 sm:$0x30] %vm491, %v490
  %s498 = scalar_lea.vmem %s1, 393
  %499 = vst.msk [vmem:[%s498] ss:$16 sm:$0xc0] %vm491, %v490
  %v500 = vld [vmem:[%s0] sm:$0xff]
  %501 = vrot.lane.b32.xlu0 %v500, 118
  %v502 = vpop.permute.xlu0 %501
  %vm503 = vcmask 7168
  %s504 = scalar_lea.vmem %s1, 10
  %505 = vst.msk [vmem:[%s504] ss:$16 sm:$0x3] %vm503, %v502
  %s506 = scalar_lea.vmem %s1, 10
  %507 = vst.msk [vmem:[%s506] ss:$16 sm:$0xc] %vm503, %v502
  %s508 = scalar_lea.vmem %s1, 10
  %509 = vst.msk [vmem:[%s508] ss:$16 sm:$0x30] %vm503, %v502
  %s510 = scalar_lea.vmem %s1, 10
  %511 = vst.msk [vmem:[%s510] ss:$16 sm:$0xc0] %vm503, %v502
  %s512 = scalar_lea.vmem %s0, 8
  %v513 = vld [vmem:[%s512] sm:$0xff]
  %514 = vrot.lane.b32.xlu0 %v513, 118
  %v515 = vpop.permute.xlu0 %514
  %vm516 = vcmask 7168
  %s517 = scalar_lea.vmem %s1, 138
  %518 = vst.msk [vmem:[%s517] ss:$16 sm:$0x3] %vm516, %v515
  %s519 = scalar_lea.vmem %s1, 138
  %520 = vst.msk [vmem:[%s519] ss:$16 sm:$0xc] %vm516, %v515
  %s521 = scalar_lea.vmem %s1, 138
  %522 = vst.msk [vmem:[%s521] ss:$16 sm:$0x30] %vm516, %v515
  %s523 = scalar_lea.vmem %s1, 138
  %524 = vst.msk [vmem:[%s523] ss:$16 sm:$0xc0] %vm516, %v515
  %s525 = scalar_lea.vmem %s0, 16
  %v526 = vld [vmem:[%s525] sm:$0xff]
  %527 = vrot.lane.b32.xlu0 %v526, 118
  %v528 = vpop.permute.xlu0 %527
  %vm529 = vcmask 7168
  %s530 = scalar_lea.vmem %s1, 266
  %531 = vst.msk [vmem:[%s530] ss:$16 sm:$0x3] %vm529, %v528
  %s532 = scalar_lea.vmem %s1, 266
  %533 = vst.msk [vmem:[%s532] ss:$16 sm:$0xc] %vm529, %v528
  %s534 = scalar_lea.vmem %s1, 266
  %535 = vst.msk [vmem:[%s534] ss:$16 sm:$0x30] %vm529, %v528
  %s536 = scalar_lea.vmem %s1, 266
  %537 = vst.msk [vmem:[%s536] ss:$16 sm:$0xc0] %vm529, %v528
  %s538 = scalar_lea.vmem %s0, 24
  %v539 = vld [vmem:[%s538] sm:$0xff]
  %540 = vrot.lane.b32.xlu0 %v539, 118
  %v541 = vpop.permute.xlu0 %540
  %vm542 = vcmask 7168
  %s543 = scalar_lea.vmem %s1, 394
  %544 = vst.msk [vmem:[%s543] ss:$16 sm:$0x3] %vm542, %v541
  %s545 = scalar_lea.vmem %s1, 394
  %546 = vst.msk [vmem:[%s545] ss:$16 sm:$0xc] %vm542, %v541
  %s547 = scalar_lea.vmem %s1, 394
  %548 = vst.msk [vmem:[%s547] ss:$16 sm:$0x30] %vm542, %v541
  %s549 = scalar_lea.vmem %s1, 394
  %550 = vst.msk [vmem:[%s549] ss:$16 sm:$0xc0] %vm542, %v541
  %v551 = vld [vmem:[%s0] sm:$0xff]
  %552 = vrot.lane.b32.xlu0 %v551, 117
  %v553 = vpop.permute.xlu0 %552
  %vm554 = vcmask 7168
  %s555 = scalar_lea.vmem %s1, 11
  %556 = vst.msk [vmem:[%s555] ss:$16 sm:$0x3] %vm554, %v553
  %s557 = scalar_lea.vmem %s1, 11
  %558 = vst.msk [vmem:[%s557] ss:$16 sm:$0xc] %vm554, %v553
  %s559 = scalar_lea.vmem %s1, 11
  %560 = vst.msk [vmem:[%s559] ss:$16 sm:$0x30] %vm554, %v553
  %s561 = scalar_lea.vmem %s1, 11
  %562 = vst.msk [vmem:[%s561] ss:$16 sm:$0xc0] %vm554, %v553
  %s563 = scalar_lea.vmem %s0, 8
  %v564 = vld [vmem:[%s563] sm:$0xff]
  %565 = vrot.lane.b32.xlu0 %v564, 117
  %v566 = vpop.permute.xlu0 %565
  %vm567 = vcmask 7168
  %s568 = scalar_lea.vmem %s1, 139
  %569 = vst.msk [vmem:[%s568] ss:$16 sm:$0x3] %vm567, %v566
  %s570 = scalar_lea.vmem %s1, 139
  %571 = vst.msk [vmem:[%s570] ss:$16 sm:$0xc] %vm567, %v566
  %s572 = scalar_lea.vmem %s1, 139
  %573 = vst.msk [vmem:[%s572] ss:$16 sm:$0x30] %vm567, %v566
  %s574 = scalar_lea.vmem %s1, 139
  %575 = vst.msk [vmem:[%s574] ss:$16 sm:$0xc0] %vm567, %v566
  %s576 = scalar_lea.vmem %s0, 16
  %v577 = vld [vmem:[%s576] sm:$0xff]
  %578 = vrot.lane.b32.xlu0 %v577, 117
  %v579 = vpop.permute.xlu0 %578
  %vm580 = vcmask 7168
  %s581 = scalar_lea.vmem %s1, 267
  %582 = vst.msk [vmem:[%s581] ss:$16 sm:$0x3] %vm580, %v579
  %s583 = scalar_lea.vmem %s1, 267
  %584 = vst.msk [vmem:[%s583] ss:$16 sm:$0xc] %vm580, %v579
  %s585 = scalar_lea.vmem %s1, 267
  %586 = vst.msk [vmem:[%s585] ss:$16 sm:$0x30] %vm580, %v579
  %s587 = scalar_lea.vmem %s1, 267
  %588 = vst.msk [vmem:[%s587] ss:$16 sm:$0xc0] %vm580, %v579
  %s589 = scalar_lea.vmem %s0, 24
  %v590 = vld [vmem:[%s589] sm:$0xff]
  %591 = vrot.lane.b32.xlu0 %v590, 117
  %v592 = vpop.permute.xlu0 %591
  %vm593 = vcmask 7168
  %s594 = scalar_lea.vmem %s1, 395
  %595 = vst.msk [vmem:[%s594] ss:$16 sm:$0x3] %vm593, %v592
  %s596 = scalar_lea.vmem %s1, 395
  %597 = vst.msk [vmem:[%s596] ss:$16 sm:$0xc] %vm593, %v592
  %s598 = scalar_lea.vmem %s1, 395
  %599 = vst.msk [vmem:[%s598] ss:$16 sm:$0x30] %vm593, %v592
  %s600 = scalar_lea.vmem %s1, 395
  %601 = vst.msk [vmem:[%s600] ss:$16 sm:$0xc0] %vm593, %v592
  %v602 = vld [vmem:[%s0] sm:$0xff]
  %603 = vrot.lane.b32.xlu0 %v602, 116
  %v604 = vpop.permute.xlu0 %603
  %vm605 = vcmask 7168
  %s606 = scalar_lea.vmem %s1, 12
  %607 = vst.msk [vmem:[%s606] ss:$16 sm:$0x3] %vm605, %v604
  %s608 = scalar_lea.vmem %s1, 12
  %609 = vst.msk [vmem:[%s608] ss:$16 sm:$0xc] %vm605, %v604
  %s610 = scalar_lea.vmem %s1, 12
  %611 = vst.msk [vmem:[%s610] ss:$16 sm:$0x30] %vm605, %v604
  %s612 = scalar_lea.vmem %s1, 12
  %613 = vst.msk [vmem:[%s612] ss:$16 sm:$0xc0] %vm605, %v604
  %s614 = scalar_lea.vmem %s0, 8
  %v615 = vld [vmem:[%s614] sm:$0xff]
  %616 = vrot.lane.b32.xlu0 %v615, 116
  %v617 = vpop.permute.xlu0 %616
  %vm618 = vcmask 7168
  %s619 = scalar_lea.vmem %s1, 140
  %620 = vst.msk [vmem:[%s619] ss:$16 sm:$0x3] %vm618, %v617
  %s621 = scalar_lea.vmem %s1, 140
  %622 = vst.msk [vmem:[%s621] ss:$16 sm:$0xc] %vm618, %v617
  %s623 = scalar_lea.vmem %s1, 140
  %624 = vst.msk [vmem:[%s623] ss:$16 sm:$0x30] %vm618, %v617
  %s625 = scalar_lea.vmem %s1, 140
  %626 = vst.msk [vmem:[%s625] ss:$16 sm:$0xc0] %vm618, %v617
  %s627 = scalar_lea.vmem %s0, 16
  %v628 = vld [vmem:[%s627] sm:$0xff]
  %629 = vrot.lane.b32.xlu0 %v628, 116
  %v630 = vpop.permute.xlu0 %629
  %vm631 = vcmask 7168
  %s632 = scalar_lea.vmem %s1, 268
  %633 = vst.msk [vmem:[%s632] ss:$16 sm:$0x3] %vm631, %v630
  %s634 = scalar_lea.vmem %s1, 268
  %635 = vst.msk [vmem:[%s634] ss:$16 sm:$0xc] %vm631, %v630
  %s636 = scalar_lea.vmem %s1, 268
  %637 = vst.msk [vmem:[%s636] ss:$16 sm:$0x30] %vm631, %v630
  %s638 = scalar_lea.vmem %s1, 268
  %639 = vst.msk [vmem:[%s638] ss:$16 sm:$0xc0] %vm631, %v630
  %s640 = scalar_lea.vmem %s0, 24
  %v641 = vld [vmem:[%s640] sm:$0xff]
  %642 = vrot.lane.b32.xlu0 %v641, 116
  %v643 = vpop.permute.xlu0 %642
  %vm644 = vcmask 7168
  %s645 = scalar_lea.vmem %s1, 396
  %646 = vst.msk [vmem:[%s645] ss:$16 sm:$0x3] %vm644, %v643
  %s647 = scalar_lea.vmem %s1, 396
  %648 = vst.msk [vmem:[%s647] ss:$16 sm:$0xc] %vm644, %v643
  %s649 = scalar_lea.vmem %s1, 396
  %650 = vst.msk [vmem:[%s649] ss:$16 sm:$0x30] %vm644, %v643
  %s651 = scalar_lea.vmem %s1, 396
  %652 = vst.msk [vmem:[%s651] ss:$16 sm:$0xc0] %vm644, %v643
  %v653 = vld [vmem:[%s0] sm:$0xff]
  %654 = vrot.lane.b32.xlu0 %v653, 115
  %v655 = vpop.permute.xlu0 %654
  %vm656 = vcmask 7168
  %s657 = scalar_lea.vmem %s1, 13
  %658 = vst.msk [vmem:[%s657] ss:$16 sm:$0x3] %vm656, %v655
  %s659 = scalar_lea.vmem %s1, 13
  %660 = vst.msk [vmem:[%s659] ss:$16 sm:$0xc] %vm656, %v655
  %s661 = scalar_lea.vmem %s1, 13
  %662 = vst.msk [vmem:[%s661] ss:$16 sm:$0x30] %vm656, %v655
  %s663 = scalar_lea.vmem %s1, 13
  %664 = vst.msk [vmem:[%s663] ss:$16 sm:$0xc0] %vm656, %v655
  %s665 = scalar_lea.vmem %s0, 8
  %v666 = vld [vmem:[%s665] sm:$0xff]
  %667 = vrot.lane.b32.xlu0 %v666, 115
  %v668 = vpop.permute.xlu0 %667
  %vm669 = vcmask 7168
  %s670 = scalar_lea.vmem %s1, 141
  %671 = vst.msk [vmem:[%s670] ss:$16 sm:$0x3] %vm669, %v668
  %s672 = scalar_lea.vmem %s1, 141
  %673 = vst.msk [vmem:[%s672] ss:$16 sm:$0xc] %vm669, %v668
  %s674 = scalar_lea.vmem %s1, 141
  %675 = vst.msk [vmem:[%s674] ss:$16 sm:$0x30] %vm669, %v668
  %s676 = scalar_lea.vmem %s1, 141
  %677 = vst.msk [vmem:[%s676] ss:$16 sm:$0xc0] %vm669, %v668
  %s678 = scalar_lea.vmem %s0, 16
  %v679 = vld [vmem:[%s678] sm:$0xff]
  %680 = vrot.lane.b32.xlu0 %v679, 115
  %v681 = vpop.permute.xlu0 %680
  %vm682 = vcmask 7168
  %s683 = scalar_lea.vmem %s1, 269
  %684 = vst.msk [vmem:[%s683] ss:$16 sm:$0x3] %vm682, %v681
  %s685 = scalar_lea.vmem %s1, 269
  %686 = vst.msk [vmem:[%s685] ss:$16 sm:$0xc] %vm682, %v681
  %s687 = scalar_lea.vmem %s1, 269
  %688 = vst.msk [vmem:[%s687] ss:$16 sm:$0x30] %vm682, %v681
  %s689 = scalar_lea.vmem %s1, 269
  %690 = vst.msk [vmem:[%s689] ss:$16 sm:$0xc0] %vm682, %v681
  %s691 = scalar_lea.vmem %s0, 24
  %v692 = vld [vmem:[%s691] sm:$0xff]
  %693 = vrot.lane.b32.xlu0 %v692, 115
  %v694 = vpop.permute.xlu0 %693
  %vm695 = vcmask 7168
  %s696 = scalar_lea.vmem %s1, 397
  %697 = vst.msk [vmem:[%s696] ss:$16 sm:$0x3] %vm695, %v694
  %s698 = scalar_lea.vmem %s1, 397
  %699 = vst.msk [vmem:[%s698] ss:$16 sm:$0xc] %vm695, %v694
  %s700 = scalar_lea.vmem %s1, 397
  %701 = vst.msk [vmem:[%s700] ss:$16 sm:$0x30] %vm695, %v694
  %s702 = scalar_lea.vmem %s1, 397
  %703 = vst.msk [vmem:[%s702] ss:$16 sm:$0xc0] %vm695, %v694
  %v704 = vld [vmem:[%s0] sm:$0xff]
  %705 = vrot.lane.b32.xlu0 %v704, 114
  %v706 = vpop.permute.xlu0 %705
  %vm707 = vcmask 7168
  %s708 = scalar_lea.vmem %s1, 14
  %709 = vst.msk [vmem:[%s708] ss:$16 sm:$0x3] %vm707, %v706
  %s710 = scalar_lea.vmem %s1, 14
  %711 = vst.msk [vmem:[%s710] ss:$16 sm:$0xc] %vm707, %v706
  %s712 = scalar_lea.vmem %s1, 14
  %713 = vst.msk [vmem:[%s712] ss:$16 sm:$0x30] %vm707, %v706
  %s714 = scalar_lea.vmem %s1, 14
  %715 = vst.msk [vmem:[%s714] ss:$16 sm:$0xc0] %vm707, %v706
  %s716 = scalar_lea.vmem %s0, 8
  %v717 = vld [vmem:[%s716] sm:$0xff]
  %718 = vrot.lane.b32.xlu0 %v717, 114
  %v719 = vpop.permute.xlu0 %718
  %vm720 = vcmask 7168
  %s721 = scalar_lea.vmem %s1, 142
  %722 = vst.msk [vmem:[%s721] ss:$16 sm:$0x3] %vm720, %v719
  %s723 = scalar_lea.vmem %s1, 142
  %724 = vst.msk [vmem:[%s723] ss:$16 sm:$0xc] %vm720, %v719
  %s725 = scalar_lea.vmem %s1, 142
  %726 = vst.msk [vmem:[%s725] ss:$16 sm:$0x30] %vm720, %v719
  %s727 = scalar_lea.vmem %s1, 142
  %728 = vst.msk [vmem:[%s727] ss:$16 sm:$0xc0] %vm720, %v719
  %s729 = scalar_lea.vmem %s0, 16
  %v730 = vld [vmem:[%s729] sm:$0xff]
  %731 = vrot.lane.b32.xlu0 %v730, 114
  %v732 = vpop.permute.xlu0 %731
  %vm733 = vcmask 7168
  %s734 = scalar_lea.vmem %s1, 270
  %735 = vst.msk [vmem:[%s734] ss:$16 sm:$0x3] %vm733, %v732
  %s736 = scalar_lea.vmem %s1, 270
  %737 = vst.msk [vmem:[%s736] ss:$16 sm:$0xc] %vm733, %v732
  %s738 = scalar_lea.vmem %s1, 270
  %739 = vst.msk [vmem:[%s738] ss:$16 sm:$0x30] %vm733, %v732
  %s740 = scalar_lea.vmem %s1, 270
  %741 = vst.msk [vmem:[%s740] ss:$16 sm:$0xc0] %vm733, %v732
  %s742 = scalar_lea.vmem %s0, 24
  %v743 = vld [vmem:[%s742] sm:$0xff]
  %744 = vrot.lane.b32.xlu0 %v743, 114
  %v745 = vpop.permute.xlu0 %744
  %vm746 = vcmask 7168
  %s747 = scalar_lea.vmem %s1, 398
  %748 = vst.msk [vmem:[%s747] ss:$16 sm:$0x3] %vm746, %v745
  %s749 = scalar_lea.vmem %s1, 398
  %750 = vst.msk [vmem:[%s749] ss:$16 sm:$0xc] %vm746, %v745
  %s751 = scalar_lea.vmem %s1, 398
  %752 = vst.msk [vmem:[%s751] ss:$16 sm:$0x30] %vm746, %v745
  %s753 = scalar_lea.vmem %s1, 398
  %754 = vst.msk [vmem:[%s753] ss:$16 sm:$0xc0] %vm746, %v745
  %v755 = vld [vmem:[%s0] sm:$0xff]
  %756 = vrot.lane.b32.xlu0 %v755, 113
  %v757 = vpop.permute.xlu0 %756
  %vm758 = vcmask 7168
  %s759 = scalar_lea.vmem %s1, 15
  %760 = vst.msk [vmem:[%s759] ss:$16 sm:$0x3] %vm758, %v757
  %s761 = scalar_lea.vmem %s1, 15
  %762 = vst.msk [vmem:[%s761] ss:$16 sm:$0xc] %vm758, %v757
  %s763 = scalar_lea.vmem %s1, 15
  %764 = vst.msk [vmem:[%s763] ss:$16 sm:$0x30] %vm758, %v757
  %s765 = scalar_lea.vmem %s1, 15
  %766 = vst.msk [vmem:[%s765] ss:$16 sm:$0xc0] %vm758, %v757
  %s767 = scalar_lea.vmem %s0, 8
  %v768 = vld [vmem:[%s767] sm:$0xff]
  %769 = vrot.lane.b32.xlu0 %v768, 113
  %v770 = vpop.permute.xlu0 %769
  %vm771 = vcmask 7168
  %s772 = scalar_lea.vmem %s1, 143
  %773 = vst.msk [vmem:[%s772] ss:$16 sm:$0x3] %vm771, %v770
  %s774 = scalar_lea.vmem %s1, 143
  %775 = vst.msk [vmem:[%s774] ss:$16 sm:$0xc] %vm771, %v770
  %s776 = scalar_lea.vmem %s1, 143
  %777 = vst.msk [vmem:[%s776] ss:$16 sm:$0x30] %vm771, %v770
  %s778 = scalar_lea.vmem %s1, 143
  %779 = vst.msk [vmem:[%s778] ss:$16 sm:$0xc0] %vm771, %v770
  %s780 = scalar_lea.vmem %s0, 16
  %v781 = vld [vmem:[%s780] sm:$0xff]
  %782 = vrot.lane.b32.xlu0 %v781, 113
  %v783 = vpop.permute.xlu0 %782
  %vm784 = vcmask 7168
  %s785 = scalar_lea.vmem %s1, 271
  %786 = vst.msk [vmem:[%s785] ss:$16 sm:$0x3] %vm784, %v783
  %s787 = scalar_lea.vmem %s1, 271
  %788 = vst.msk [vmem:[%s787] ss:$16 sm:$0xc] %vm784, %v783
  %s789 = scalar_lea.vmem %s1, 271
  %790 = vst.msk [vmem:[%s789] ss:$16 sm:$0x30] %vm784, %v783
  %s791 = scalar_lea.vmem %s1, 271
  %792 = vst.msk [vmem:[%s791] ss:$16 sm:$0xc0] %vm784, %v783
  %s793 = scalar_lea.vmem %s0, 24
  %v794 = vld [vmem:[%s793] sm:$0xff]
  %795 = vrot.lane.b32.xlu0 %v794, 113
  %v796 = vpop.permute.xlu0 %795
  %vm797 = vcmask 7168
  %s798 = scalar_lea.vmem %s1, 399
  %799 = vst.msk [vmem:[%s798] ss:$16 sm:$0x3] %vm797, %v796
  %s800 = scalar_lea.vmem %s1, 399
  %801 = vst.msk [vmem:[%s800] ss:$16 sm:$0xc] %vm797, %v796
  %s802 = scalar_lea.vmem %s1, 399
  %803 = vst.msk [vmem:[%s802] ss:$16 sm:$0x30] %vm797, %v796
  %s804 = scalar_lea.vmem %s1, 399
  %805 = vst.msk [vmem:[%s804] ss:$16 sm:$0xc0] %vm797, %v796

// kernel: psm_mix3d_embedding_forward.1
$region0: #{psm_mix3d_embedding_forward.1}
  #allocation0 [shape = 'u32[]', space=smem, size = 0x4, offset = 0x4, fixed_abs, tag = 'smem constant byte address 0x4 - core index']
  #allocation1 [shape = 'u32[144,128]{1,0:T(1,128)}', space=vmem, size = 0x12000, scoped, tag = 'internal scratch']
  #allocation2 [shape = 'f32[16,64]{1,0:T(8,128)}', space=vmem, size = 0x2000, scoped, tag = 'scratch operand']
  %s0 = inlined_call_operand.vmem [shape: f32[2,256,4], index: 0, kind: input, shape index: {}]
  %s1 = inlined_call_operand.vmem [shape: f32[2,16,256], index: 1, kind: input, shape index: {}]
  %s2 = inlined_call_operand.vmem [shape: f32[2,16,16], index: 2, kind: input, shape index: {}]
  %s3 = inlined_call_operand.vmem [shape: f32[2,16,3], index: 3, kind: input, shape index: {}]
  %s4 = inlined_call_operand.vmem [shape: f32[2,16,1], index: 4, kind: input, shape index: {}]
  %s5 = inlined_call_operand.vmem [shape: f32[256,16], index: 5, kind: input, shape index: {}]
  %s6 = inlined_call_operand.vmem [shape: f32[256,16], index: 6, kind: input, shape index: {}]
  %s7 = inlined_call_operand.vmem [shape: f32[3,32], index: 7, kind: input, shape index: {}]
  %s8 = inlined_call_operand.vmem [shape: f32[32,32], index: 8, kind: input, shape index: {}]
  %s9 = inlined_call_operand.vmem [shape: f32[1,32], index: 9, kind: input, shape index: {}]
  %s10 = inlined_call_operand.vmem [shape: f32[32,9], index: 10, kind: input, shape index: {}]
  %s11 = inlined_call_operand.vmem [shape: f32[1,9], index: 11, kind: input, shape index: {}]
  %s12 = inlined_call_operand.vmem [shape: f32[3,32], index: 12, kind: input, shape index: {}]
  %s13 = inlined_call_operand.vmem [shape: f32[64,32], index: 13, kind: input, shape index: {}]
  %s14 = inlined_call_operand.vmem [shape: f32[1,32], index: 14, kind: input, shape index: {}]
  %s15 = inlined_call_operand.vmem [shape: f32[2,256,8], index: 15, kind: output, shape index: {0}]
  %s16 = inlined_call_operand.vmem [shape: f32[2,16,32], index: 16, kind: output, shape index: {1}]
  %17 = xla_tuple %s15, %s16
  %s18 = sld [smem:[#allocation0]]
  $region101: #{psm_mix3d_embedding_forward.1} parent=0
    _
  %s20 = ssub.s32 1, %s18
  %s21 = scalar_select 0, %s20, %s18
  loop: start=0, step=1, limit=4
  $region2: #{psm_mix3d_embedding_forward.1} parent=0 // loop_pre_header
    _
  $region3: #{psm_mix3d_embedding_forward.1} parent=0 // loop_header
    %s23 = sphi 0, %s27
    %p24 = scmp.ge.s32.totalorder %s23, 4
    %s33 = sphi 0, %s35
    %s36 = sphi 0, %s33
    %s37 = sphi 0, %s36
    %s53 = sphi 0, %s37
    %s59 = sphi 0, %s61
    %s62 = sphi 0, %s59
    %s63 = sphi 0, %s62
    %s79 = sphi 0, %s63
    %s85 = sphi 0, %s87
    %s88 = sphi 0, %s85
    %s89 = sphi 0, %s88
    %s105 = sphi 0, %s89
    %s111 = sphi 0, %s113
    %s114 = sphi 0, %s111
    %s115 = sphi 0, %s114
    %s131 = sphi 0, %s115
    %s137 = sphi 0, %s139
    %s140 = sphi 0, %s137
    %s141 = sphi 0, %s140
    %s157 = sphi 0, %s141
    %s161 = sphi 0, %s161
    %s163 = sphi 0, %s161
    %s164 = sphi 0, %s163
    %s178 = sphi 0, %s164
    %s182 = sphi 0, %s182
    %s184 = sphi 0, %s182
    %s185 = sphi 0, %s184
    %s199 = sphi 0, %s185
    %s203 = sphi 0, %s203
    %s205 = sphi 0, %s203
    %s206 = sphi 0, %s205
    %s220 = sphi 0, %s206
    %s224 = sphi 0, %s224
    %s226 = sphi 0, %s224
    %s227 = sphi 0, %s226
    %s241 = sphi 0, %s227
    %s245 = sphi 0, %s245
    %s247 = sphi 0, %s245
    %s248 = sphi 0, %s247
    %s262 = sphi 0, %s248
    %s266 = sphi 0, %s266
    %s268 = sphi 0, %s266
    %s269 = sphi 0, %s268
    %s283 = sphi 0, %s269
    %s287 = sphi 0, %s287
    %s289 = sphi 0, %s287
    %s290 = sphi 0, %s289
    %s304 = sphi 0, %s290
    %s308 = sphi 0, %s308
    %s310 = sphi 0, %s308
    %s311 = sphi 0, %s310
    %s325 = sphi 0, %s311
    %s329 = sphi 0, %s329
    %s331 = sphi 0, %s329
    %s332 = sphi 0, %s331
    %s346 = sphi 0, %s332
    %s350 = sphi 0, %s350
    %s352 = sphi 0, %s350
    %s353 = sphi 0, %s352
    %s367 = sphi 0, %s353
    %s373 = sphi 0, %s375
    %s376 = sphi 0, %s373
    %s377 = sphi 0, %s376
    %s393 = sphi 0, %s377
    %s399 = sphi 0, %s401
    %s402 = sphi 0, %s399
    %s403 = sphi 0, %s402
    %s419 = sphi 0, %s403
  $region4: #{psm_mix3d_embedding_forward.1} parent=0 // loop_header_branch
    %26 = sbr.rel (%p24) target = $region8
  $region5: #{psm_mix3d_embedding_forward.1} parent=0 // loop_body
    %s28 = ssub.s32 %s23, 1
    %s29 = ssub.s32 %s23, 2
    %s30 = sadd.s32 %s23, 1
    %s31 = ssub.s32 %s23, %s30
    %p32 = scmp.eq.s32.totalorder %s31, 0
    %s34 = sadd.s32 %s33, 1
    %s35 = scalar_select %p32, %s33, %s34
    %p38 = pneg %p32
    %p39 = scmp.eq.s32.totalorder %s23, 1
    %p40 = por %p38, %p39
    %p41 = scmp.ne.s32.totalorder %s33, %s36
    %p42 = scmp.eq.s32.totalorder %s23, 0
    %p43 = por %p41, %p42
    %p44 = scmp.ne.s32.totalorder %s33, %s36
    %p45 = scmp.eq.s32.totalorder %s28, 1
    %p46 = por %p44, %p45
    %p47 = scmp.ne.s32.totalorder %s36, %s37
    %p48 = scmp.eq.s32.totalorder %s28, 0
    %p49 = por %p47, %p48
    %p50 = scmp.ne.s32.totalorder %s36, %s37
    %p51 = scmp.eq.s32.totalorder %s29, 1
    %p52 = por %p50, %p51
    %p54 = scmp.ne.s32.totalorder %s37, %s53
    %p55 = scmp.eq.s32.totalorder %s29, 0
    %p56 = por %p54, %p55
    %s57 = ssub.s32 %s23, %s30
    %p58 = scmp.eq.s32.totalorder %s57, 0
    %s60 = sadd.s32 %s59, 1
    %s61 = scalar_select %p58, %s59, %s60
    %p64 = pneg %p58
    %p65 = scmp.eq.s32.totalorder %s23, 1
    %p66 = por %p64, %p65
    %p67 = scmp.ne.s32.totalorder %s59, %s62
    %p68 = scmp.eq.s32.totalorder %s23, 0
    %p69 = por %p67, %p68
    %p70 = scmp.ne.s32.totalorder %s59, %s62
    %p71 = scmp.eq.s32.totalorder %s28, 1
    %p72 = por %p70, %p71
    %p73 = scmp.ne.s32.totalorder %s62, %s63
    %p74 = scmp.eq.s32.totalorder %s28, 0
    %p75 = por %p73, %p74
    %p76 = scmp.ne.s32.totalorder %s62, %s63
    %p77 = scmp.eq.s32.totalorder %s29, 1
    %p78 = por %p76, %p77
    %p80 = scmp.ne.s32.totalorder %s63, %s79
    %p81 = scmp.eq.s32.totalorder %s29, 0
    %p82 = por %p80, %p81
    %s83 = ssub.s32 %s23, %s30
    %p84 = scmp.eq.s32.totalorder %s83, 0
    %s86 = sadd.s32 %s85, 1
    %s87 = scalar_select %p84, %s85, %s86
    %p90 = pneg %p84
    %p91 = scmp.eq.s32.totalorder %s23, 1
    %p92 = por %p90, %p91
    %p93 = scmp.ne.s32.totalorder %s85, %s88
    %p94 = scmp.eq.s32.totalorder %s23, 0
    %p95 = por %p93, %p94
    %p96 = scmp.ne.s32.totalorder %s85, %s88
    %p97 = scmp.eq.s32.totalorder %s28, 1
    %p98 = por %p96, %p97
    %p99 = scmp.ne.s32.totalorder %s88, %s89
    %p100 = scmp.eq.s32.totalorder %s28, 0
    %p101 = por %p99, %p100
    %p102 = scmp.ne.s32.totalorder %s88, %s89
    %p103 = scmp.eq.s32.totalorder %s29, 1
    %p104 = por %p102, %p103
    %p106 = scmp.ne.s32.totalorder %s89, %s105
    %p107 = scmp.eq.s32.totalorder %s29, 0
    %p108 = por %p106, %p107
    %s109 = ssub.s32 %s23, %s30
    %p110 = scmp.eq.s32.totalorder %s109, 0
    %s112 = sadd.s32 %s111, 1
    %s113 = scalar_select %p110, %s111, %s112
    %p116 = pneg %p110
    %p117 = scmp.eq.s32.totalorder %s23, 1
    %p118 = por %p116, %p117
    %p119 = scmp.ne.s32.totalorder %s111, %s114
    %p120 = scmp.eq.s32.totalorder %s23, 0
    %p121 = por %p119, %p120
    %p122 = scmp.ne.s32.totalorder %s111, %s114
    %p123 = scmp.eq.s32.totalorder %s28, 1
    %p124 = por %p122, %p123
    %p125 = scmp.ne.s32.totalorder %s114, %s115
    %p126 = scmp.eq.s32.totalorder %s28, 0
    %p127 = por %p125, %p126
    %p128 = scmp.ne.s32.totalorder %s114, %s115
    %p129 = scmp.eq.s32.totalorder %s29, 1
    %p130 = por %p128, %p129
    %p132 = scmp.ne.s32.totalorder %s115, %s131
    %p133 = scmp.eq.s32.totalorder %s29, 0
    %p134 = por %p132, %p133
    %s135 = ssub.s32 %s23, %s30
    %p136 = scmp.eq.s32.totalorder %s135, 0
    %s138 = sadd.s32 %s137, 1
    %s139 = scalar_select %p136, %s137, %s138
    %p142 = pneg %p136
    %p143 = scmp.eq.s32.totalorder %s23, 1
    %p144 = por %p142, %p143
    %p145 = scmp.ne.s32.totalorder %s137, %s140
    %p146 = scmp.eq.s32.totalorder %s23, 0
    %p147 = por %p145, %p146
    %p148 = scmp.ne.s32.totalorder %s137, %s140
    %p149 = scmp.eq.s32.totalorder %s28, 1
    %p150 = por %p148, %p149
    %p151 = scmp.ne.s32.totalorder %s140, %s141
    %p152 = scmp.eq.s32.totalorder %s28, 0
    %p153 = por %p151, %p152
    %p154 = scmp.ne.s32.totalorder %s140, %s141
    %p155 = scmp.eq.s32.totalorder %s29, 1
    %p156 = por %p154, %p155
    %p158 = scmp.ne.s32.totalorder %s141, %s157
    %p159 = scmp.eq.s32.totalorder %s29, 0
    %p160 = por %p158, %p159
    %s162 = sadd.s32 %s161, 1
    %p165 = scmp.eq.s32.totalorder %s23, 1
    %p166 = scmp.ne.s32.totalorder %s161, %s163
    %p167 = scmp.eq.s32.totalorder %s23, 0
    %p168 = por %p166, %p167
    %p169 = scmp.ne.s32.totalorder %s161, %s163
    %p170 = scmp.eq.s32.totalorder %s28, 1
    %p171 = por %p169, %p170
    %p172 = scmp.ne.s32.totalorder %s163, %s164
    %p173 = scmp.eq.s32.totalorder %s28, 0
    %p174 = por %p172, %p173
    %p175 = scmp.ne.s32.totalorder %s163, %s164
    %p176 = scmp.eq.s32.totalorder %s29, 1
    %p177 = por %p175, %p176
    %p179 = scmp.ne.s32.totalorder %s164, %s178
    %p180 = scmp.eq.s32.totalorder %s29, 0
    %p181 = por %p179, %p180
    %s183 = sadd.s32 %s182, 1
    %p186 = scmp.eq.s32.totalorder %s23, 1
    %p187 = scmp.ne.s32.totalorder %s182, %s184
    %p188 = scmp.eq.s32.totalorder %s23, 0
    %p189 = por %p187, %p188
    %p190 = scmp.ne.s32.totalorder %s182, %s184
    %p191 = scmp.eq.s32.totalorder %s28, 1
    %p192 = por %p190, %p191
    %p193 = scmp.ne.s32.totalorder %s184, %s185
    %p194 = scmp.eq.s32.totalorder %s28, 0
    %p195 = por %p193, %p194
    %p196 = scmp.ne.s32.totalorder %s184, %s185
    %p197 = scmp.eq.s32.totalorder %s29, 1
    %p198 = por %p196, %p197
    %p200 = scmp.ne.s32.totalorder %s185, %s199
    %p201 = scmp.eq.s32.totalorder %s29, 0
    %p202 = por %p200, %p201
    %s204 = sadd.s32 %s203, 1
    %p207 = scmp.eq.s32.totalorder %s23, 1
    %p208 = scmp.ne.s32.totalorder %s203, %s205
    %p209 = scmp.eq.s32.totalorder %s23, 0
    %p210 = por %p208, %p209
    %p211 = scmp.ne.s32.totalorder %s203, %s205
    %p212 = scmp.eq.s32.totalorder %s28, 1
    %p213 = por %p211, %p212
    %p214 = scmp.ne.s32.totalorder %s205, %s206
    %p215 = scmp.eq.s32.totalorder %s28, 0
    %p216 = por %p214, %p215
    %p217 = scmp.ne.s32.totalorder %s205, %s206
    %p218 = scmp.eq.s32.totalorder %s29, 1
    %p219 = por %p217, %p218
    %p221 = scmp.ne.s32.totalorder %s206, %s220
    %p222 = scmp.eq.s32.totalorder %s29, 0
    %p223 = por %p221, %p222
    %s225 = sadd.s32 %s224, 1
    %p228 = scmp.eq.s32.totalorder %s23, 1
    %p229 = scmp.ne.s32.totalorder %s224, %s226
    %p230 = scmp.eq.s32.totalorder %s23, 0
    %p231 = por %p229, %p230
    %p232 = scmp.ne.s32.totalorder %s224, %s226
    %p233 = scmp.eq.s32.totalorder %s28, 1
    %p234 = por %p232, %p233
    %p235 = scmp.ne.s32.totalorder %s226, %s227
    %p236 = scmp.eq.s32.totalorder %s28, 0
    %p237 = por %p235, %p236
    %p238 = scmp.ne.s32.totalorder %s226, %s227
    %p239 = scmp.eq.s32.totalorder %s29, 1
    %p240 = por %p238, %p239
    %p242 = scmp.ne.s32.totalorder %s227, %s241
    %p243 = scmp.eq.s32.totalorder %s29, 0
    %p244 = por %p242, %p243
    %s246 = sadd.s32 %s245, 1
    %p249 = scmp.eq.s32.totalorder %s23, 1
    %p250 = scmp.ne.s32.totalorder %s245, %s247
    %p251 = scmp.eq.s32.totalorder %s23, 0
    %p252 = por %p250, %p251
    %p253 = scmp.ne.s32.totalorder %s245, %s247
    %p254 = scmp.eq.s32.totalorder %s28, 1
    %p255 = por %p253, %p254
    %p256 = scmp.ne.s32.totalorder %s247, %s248
    %p257 = scmp.eq.s32.totalorder %s28, 0
    %p258 = por %p256, %p257
    %p259 = scmp.ne.s32.totalorder %s247, %s248
    %p260 = scmp.eq.s32.totalorder %s29, 1
    %p261 = por %p259, %p260
    %p263 = scmp.ne.s32.totalorder %s248, %s262
    %p264 = scmp.eq.s32.totalorder %s29, 0
    %p265 = por %p263, %p264
    %s267 = sadd.s32 %s266, 1
    %p270 = scmp.eq.s32.totalorder %s23, 1
    %p271 = scmp.ne.s32.totalorder %s266, %s268
    %p272 = scmp.eq.s32.totalorder %s23, 0
    %p273 = por %p271, %p272
    %p274 = scmp.ne.s32.totalorder %s266, %s268
    %p275 = scmp.eq.s32.totalorder %s28, 1
    %p276 = por %p274, %p275
    %p277 = scmp.ne.s32.totalorder %s268, %s269
    %p278 = scmp.eq.s32.totalorder %s28, 0
    %p279 = por %p277, %p278
    %p280 = scmp.ne.s32.totalorder %s268, %s269
    %p281 = scmp.eq.s32.totalorder %s29, 1
    %p282 = por %p280, %p281
    %p284 = scmp.ne.s32.totalorder %s269, %s283
    %p285 = scmp.eq.s32.totalorder %s29, 0
    %p286 = por %p284, %p285
    %s288 = sadd.s32 %s287, 1
    %p291 = scmp.eq.s32.totalorder %s23, 1
    %p292 = scmp.ne.s32.totalorder %s287, %s289
    %p293 = scmp.eq.s32.totalorder %s23, 0
    %p294 = por %p292, %p293
    %p295 = scmp.ne.s32.totalorder %s287, %s289
    %p296 = scmp.eq.s32.totalorder %s28, 1
    %p297 = por %p295, %p296
    %p298 = scmp.ne.s32.totalorder %s289, %s290
    %p299 = scmp.eq.s32.totalorder %s28, 0
    %p300 = por %p298, %p299
    %p301 = scmp.ne.s32.totalorder %s289, %s290
    %p302 = scmp.eq.s32.totalorder %s29, 1
    %p303 = por %p301, %p302
    %p305 = scmp.ne.s32.totalorder %s290, %s304
    %p306 = scmp.eq.s32.totalorder %s29, 0
    %p307 = por %p305, %p306
    %s309 = sadd.s32 %s308, 1
    %p312 = scmp.eq.s32.totalorder %s23, 1
    %p313 = scmp.ne.s32.totalorder %s308, %s310
    %p314 = scmp.eq.s32.totalorder %s23, 0
    %p315 = por %p313, %p314
    %p316 = scmp.ne.s32.totalorder %s308, %s310
    %p317 = scmp.eq.s32.totalorder %s28, 1
    %p318 = por %p316, %p317
    %p319 = scmp.ne.s32.totalorder %s310, %s311
    %p320 = scmp.eq.s32.totalorder %s28, 0
    %p321 = por %p319, %p320
    %p322 = scmp.ne.s32.totalorder %s310, %s311
    %p323 = scmp.eq.s32.totalorder %s29, 1
    %p324 = por %p322, %p323
    %p326 = scmp.ne.s32.totalorder %s311, %s325
    %p327 = scmp.eq.s32.totalorder %s29, 0
    %p328 = por %p326, %p327
    %s330 = sadd.s32 %s329, 1
    %p333 = scmp.eq.s32.totalorder %s23, 1
    %p334 = scmp.ne.s32.totalorder %s329, %s331
    %p335 = scmp.eq.s32.totalorder %s23, 0
    %p336 = por %p334, %p335
    %p337 = scmp.ne.s32.totalorder %s329, %s331
    %p338 = scmp.eq.s32.totalorder %s28, 1
    %p339 = por %p337, %p338
    %p340 = scmp.ne.s32.totalorder %s331, %s332
    %p341 = scmp.eq.s32.totalorder %s28, 0
    %p342 = por %p340, %p341
    %p343 = scmp.ne.s32.totalorder %s331, %s332
    %p344 = scmp.eq.s32.totalorder %s29, 1
    %p345 = por %p343, %p344
    %p347 = scmp.ne.s32.totalorder %s332, %s346
    %p348 = scmp.eq.s32.totalorder %s29, 0
    %p349 = por %p347, %p348
    %s351 = sadd.s32 %s350, 1
    %p354 = scmp.eq.s32.totalorder %s23, 1
    %p355 = scmp.ne.s32.totalorder %s350, %s352
    %p356 = scmp.eq.s32.totalorder %s23, 0
    %p357 = por %p355, %p356
    %p358 = scmp.ne.s32.totalorder %s350, %s352
    %p359 = scmp.eq.s32.totalorder %s28, 1
    %p360 = por %p358, %p359
    %p361 = scmp.ne.s32.totalorder %s352, %s353
    %p362 = scmp.eq.s32.totalorder %s28, 0
    %p363 = por %p361, %p362
    %p364 = scmp.ne.s32.totalorder %s352, %s353
    %p365 = scmp.eq.s32.totalorder %s29, 1
    %p366 = por %p364, %p365
    %p368 = scmp.ne.s32.totalorder %s353, %s367
    %p369 = scmp.eq.s32.totalorder %s29, 0
    %p370 = por %p368, %p369
    %s371 = ssub.s32 %s23, %s30
    %p372 = scmp.eq.s32.totalorder %s371, 0
    %s374 = sadd.s32 %s373, 1
    %s375 = scalar_select %p372, %s373, %s374
    %p378 = pneg %p372
    %p379 = scmp.eq.s32.totalorder %s23, 1
    %p380 = por %p378, %p379
    %p381 = scmp.ne.s32.totalorder %s373, %s376
    %p382 = scmp.eq.s32.totalorder %s23, 0
    %p383 = por %p381, %p382
    %p384 = scmp.ne.s32.totalorder %s373, %s376
    %p385 = scmp.eq.s32.totalorder %s28, 1
    %p386 = por %p384, %p385
    %p387 = scmp.ne.s32.totalorder %s376, %s377
    %p388 = scmp.eq.s32.totalorder %s28, 0
    %p389 = por %p387, %p388
    %p390 = scmp.ne.s32.totalorder %s376, %s377
    %p391 = scmp.eq.s32.totalorder %s29, 1
    %p392 = por %p390, %p391
    %p394 = scmp.ne.s32.totalorder %s377, %s393
    %p395 = scmp.eq.s32.totalorder %s29, 0
    %p396 = por %p394, %p395
    %s397 = ssub.s32 %s23, %s30
    %p398 = scmp.eq.s32.totalorder %s397, 0
    %s400 = sadd.s32 %s399, 1
    %s401 = scalar_select %p398, %s399, %s400
    %p404 = pneg %p398
    %p405 = scmp.eq.s32.totalorder %s23, 1
    %p406 = por %p404, %p405
    %p407 = scmp.ne.s32.totalorder %s399, %s402
    %p408 = scmp.eq.s32.totalorder %s23, 0
    %p409 = por %p407, %p408
    %p410 = scmp.ne.s32.totalorder %s399, %s402
    %p411 = scmp.eq.s32.totalorder %s28, 1
    %p412 = por %p410, %p411
    %p413 = scmp.ne.s32.totalorder %s402, %s403
    %p414 = scmp.eq.s32.totalorder %s28, 0
    %p415 = por %p413, %p414
    %p416 = scmp.ne.s32.totalorder %s402, %s403
    %p417 = scmp.eq.s32.totalorder %s29, 1
    %p418 = por %p416, %p417
    %p420 = scmp.ne.s32.totalorder %s403, %s419
    %p421 = scmp.eq.s32.totalorder %s29, 0
    %p422 = por %p420, %p421
    %p423 = scmp.le.s32.totalorder 1, %s23
    %p424 = scmp.lt.s32.totalorder %s23, 3
    %p425 = pnand %p423, %p424
    %p426 = pneg %p425
    // Predicated region
    $region9: #{psm_mix3d_embedding_forward.1} parent=5 // pred_check
      _
    $region10: #{psm_mix3d_embedding_forward.1} parent=5 // pred_check_branch
      %428 = sbr.rel (%p425) target = $region12
    $region11: #{psm_mix3d_embedding_forward.1} parent=5 // pred_region
      %s429 = ssub.s32 %s23, 1
      // Predicated region
      $region13: #{psm_mix3d_embedding_forward.1} parent=11 // pred_check
        %p430 = pneg %p174
      $region14: #{psm_mix3d_embedding_forward.1} parent=11 // pred_check_branch
        %432 = sbr.rel (%p430) target = $region16
      $region15: #{psm_mix3d_embedding_forward.1} parent=11 // pred_region
        _
      $region16: #{psm_mix3d_embedding_forward.1} parent=11 // pred_fallthru
        _
      // Predicated region
      $region17: #{psm_mix3d_embedding_forward.1} parent=11 // pred_check
        %p433 = pneg %p195
      $region18: #{psm_mix3d_embedding_forward.1} parent=11 // pred_check_branch
        %435 = sbr.rel (%p433) target = $region20
      $region19: #{psm_mix3d_embedding_forward.1} parent=11 // pred_region
        _
      $region20: #{psm_mix3d_embedding_forward.1} parent=11 // pred_fallthru
        _
      // Predicated region
      $region21: #{psm_mix3d_embedding_forward.1} parent=11 // pred_check
        %p436 = pneg %p216
      $region22: #{psm_mix3d_embedding_forward.1} parent=11 // pred_check_branch
        %438 = sbr.rel (%p436) target = $region24
      $region23: #{psm_mix3d_embedding_forward.1} parent=11 // pred_region
        _
      $region24: #{psm_mix3d_embedding_forward.1} parent=11 // pred_fallthru
        _
      // Predicated region
      $region25: #{psm_mix3d_embedding_forward.1} parent=11 // pred_check
        %p439 = pneg %p237
      $region26: #{psm_mix3d_embedding_forward.1} parent=11 // pred_check_branch
        %441 = sbr.rel (%p439) target = $region28
      $region27: #{psm_mix3d_embedding_forward.1} parent=11 // pred_region
        _
      $region28: #{psm_mix3d_embedding_forward.1} parent=11 // pred_fallthru
        _
      // Predicated region
      $region29: #{psm_mix3d_embedding_forward.1} parent=11 // pred_check
        %p442 = pneg %p258
      $region30: #{psm_mix3d_embedding_forward.1} parent=11 // pred_check_branch
        %444 = sbr.rel (%p442) target = $region32
      $region31: #{psm_mix3d_embedding_forward.1} parent=11 // pred_region
        _
      $region32: #{psm_mix3d_embedding_forward.1} parent=11 // pred_fallthru
        _
      // Predicated region
      $region33: #{psm_mix3d_embedding_forward.1} parent=11 // pred_check
        %p445 = pneg %p279
      $region34: #{psm_mix3d_embedding_forward.1} parent=11 // pred_check_branch
        %447 = sbr.rel (%p445) target = $region36
      $region35: #{psm_mix3d_embedding_forward.1} parent=11 // pred_region
        _
      $region36: #{psm_mix3d_embedding_forward.1} parent=11 // pred_fallthru
        _
      // Predicated region
      $region37: #{psm_mix3d_embedding_forward.1} parent=11 // pred_check
        %p448 = pneg %p300
      $region38: #{psm_mix3d_embedding_forward.1} parent=11 // pred_check_branch
        %450 = sbr.rel (%p448) target = $region40
      $region39: #{psm_mix3d_embedding_forward.1} parent=11 // pred_region
        _
      $region40: #{psm_mix3d_embedding_forward.1} parent=11 // pred_fallthru
        _
      // Predicated region
      $region41: #{psm_mix3d_embedding_forward.1} parent=11 // pred_check
        %p451 = pneg %p321
      $region42: #{psm_mix3d_embedding_forward.1} parent=11 // pred_check_branch
        %453 = sbr.rel (%p451) target = $region44
      $region43: #{psm_mix3d_embedding_forward.1} parent=11 // pred_region
        _
      $region44: #{psm_mix3d_embedding_forward.1} parent=11 // pred_fallthru
        _
      // Predicated region
      $region45: #{psm_mix3d_embedding_forward.1} parent=11 // pred_check
        %p454 = pneg %p342
      $region46: #{psm_mix3d_embedding_forward.1} parent=11 // pred_check_branch
        %456 = sbr.rel (%p454) target = $region48
      $region47: #{psm_mix3d_embedding_forward.1} parent=11 // pred_region
        _
      $region48: #{psm_mix3d_embedding_forward.1} parent=11 // pred_fallthru
        _
      // Predicated region
      $region49: #{psm_mix3d_embedding_forward.1} parent=11 // pred_check
        %p457 = pneg %p363
      $region50: #{psm_mix3d_embedding_forward.1} parent=11 // pred_check_branch
        %459 = sbr.rel (%p457) target = $region52
      $region51: #{psm_mix3d_embedding_forward.1} parent=11 // pred_region
        _
      $region52: #{psm_mix3d_embedding_forward.1} parent=11 // pred_fallthru
        _
    $region12: #{psm_mix3d_embedding_forward.1} parent=5 // pred_fallthru
      _
    %p460 = scmp.lt.s32.totalorder %s23, 2
    // Predicated region
    $region53: #{psm_mix3d_embedding_forward.1} parent=5 // pred_check
      %p461 = pneg %p460
    $region54: #{psm_mix3d_embedding_forward.1} parent=5 // pred_check_branch
      %463 = sbr.rel (%p461) target = $region56
    $region55: #{psm_mix3d_embedding_forward.1} parent=5 // pred_region
      // Predicated region
      $region57: #{psm_mix3d_embedding_forward.1} parent=55 // pred_check
        %p464 = pneg %p43
      $region58: #{psm_mix3d_embedding_forward.1} parent=55 // pred_check_branch
        %466 = sbr.rel (%p464) target = $region60
      $region59: #{psm_mix3d_embedding_forward.1} parent=55 // pred_region
        %p467 = scmp.lt.s32.totalorder %s23, 1
        %s468 = scalar_select %p467, %s23, 1
        %s469 = smul.addr %s468, 32
        %s470 = smul.addr %s469, 8
        %s471 = scalar_lea.vmem %s0, %s470
      $region60: #{psm_mix3d_embedding_forward.1} parent=55 // pred_fallthru
        _
      // Predicated region
      $region61: #{psm_mix3d_embedding_forward.1} parent=55 // pred_check
        %p472 = pneg %p69
      $region62: #{psm_mix3d_embedding_forward.1} parent=55 // pred_check_branch
        %474 = sbr.rel (%p472) target = $region64
      $region63: #{psm_mix3d_embedding_forward.1} parent=55 // pred_region
        %p475 = scmp.lt.s32.totalorder %s23, 1
        %s476 = scalar_select %p475, %s23, 1
        %s477 = smul.addr %s476, 4
        %s478 = smul.addr %s477, 8
        %s479 = scalar_lea.vmem %s1, %s478
      $region64: #{psm_mix3d_embedding_forward.1} parent=55 // pred_fallthru
        _
      // Predicated region
      $region65: #{psm_mix3d_embedding_forward.1} parent=55 // pred_check
        %p480 = pneg %p95
      $region66: #{psm_mix3d_embedding_forward.1} parent=55 // pred_check_branch
        %482 = sbr.rel (%p480) target = $region68
      $region67: #{psm_mix3d_embedding_forward.1} parent=55 // pred_region
        %p483 = scmp.lt.s32.totalorder %s23, 1
        %s484 = scalar_select %p483, %s23, 1
        %s485 = smul.addr %s484, 2
        %s486 = smul.addr %s485, 8
        %s487 = scalar_lea.vmem %s2, %s486
      $region68: #{psm_mix3d_embedding_forward.1} parent=55 // pred_fallthru
        _
      // Predicated region
      $region69: #{psm_mix3d_embedding_forward.1} parent=55 // pred_check
        %p488 = pneg %p121
      $region70: #{psm_mix3d_embedding_forward.1} parent=55 // pred_check_branch
        %490 = sbr.rel (%p488) target = $region72
      $region71: #{psm_mix3d_embedding_forward.1} parent=55 // pred_region
        %p491 = scmp.lt.s32.totalorder %s23, 1
        %s492 = scalar_select %p491, %s23, 1
        %s493 = smul.addr %s492, 2
        %s494 = smul.addr %s493, 8
        %s495 = scalar_lea.vmem %s3, %s494
      $region72: #{psm_mix3d_embedding_forward.1} parent=55 // pred_fallthru
        _
      // Predicated region
      $region73: #{psm_mix3d_embedding_forward.1} parent=55 // pred_check
        %p496 = pneg %p147
      $region74: #{psm_mix3d_embedding_forward.1} parent=55 // pred_check_branch
        %498 = sbr.rel (%p496) target = $region76
      $region75: #{psm_mix3d_embedding_forward.1} parent=55 // pred_region
        %p499 = scmp.lt.s32.totalorder %s23, 1
        %s500 = scalar_select %p499, %s23, 1
        %s501 = smul.addr %s500, 2
        %s502 = smul.addr %s501, 8
        %s503 = scalar_lea.vmem %s4, %s502
      $region76: #{psm_mix3d_embedding_forward.1} parent=55 // pred_fallthru
        _
    $region56: #{psm_mix3d_embedding_forward.1} parent=5 // pred_fallthru
      _
    %p504 = scmp.le.s32.totalorder 1, %s23
    %p505 = scmp.lt.s32.totalorder %s23, 3
    %p506 = pnand %p504, %p505
    %p507 = pneg %p506
    // Predicated region
    $region77: #{psm_mix3d_embedding_forward.1} parent=5 // pred_check
      _
    $region78: #{psm_mix3d_embedding_forward.1} parent=5 // pred_check_branch
      %509 = sbr.rel (%p506) target = $region80
    $region79: #{psm_mix3d_embedding_forward.1} parent=5 // pred_region
      %s510 = ssub.s32 %s23, 1
      %p511 = scmp.lt.s32.totalorder %s28, 1
      %s512 = scalar_select %p511, %s28, 1
      %s513 = smul.addr %s512, 32
      %s514 = smul.addr %s513, 8
      %s515 = scalar_lea.vmem %s0, %s514
      %p516 = pneg %p49
      %p517 = pneg %p46
      %p518 = scmp.lt.s32.totalorder %s28, 1
      %s519 = scalar_select %p518, %s28, 1
      %s520 = smul.addr %s519, 4
      %s521 = smul.addr %s520, 8
      %s522 = scalar_lea.vmem %s1, %s521
      %p523 = pneg %p75
      %p524 = pneg %p72
      %p525 = scmp.lt.s32.totalorder %s28, 1
      %s526 = scalar_select %p525, %s28, 1
      %s527 = smul.addr %s526, 2
      %s528 = smul.addr %s527, 8
      %s529 = scalar_lea.vmem %s2, %s528
      %p530 = pneg %p101
      %p531 = pneg %p98
      %p532 = scmp.lt.s32.totalorder %s28, 1
      %s533 = scalar_select %p532, %s28, 1
      %s534 = smul.addr %s533, 2
      %s535 = smul.addr %s534, 8
      %s536 = scalar_lea.vmem %s3, %s535
      %p537 = pneg %p127
      %p538 = pneg %p124
      %p539 = scmp.lt.s32.totalorder %s28, 1
      %s540 = scalar_select %p539, %s28, 1
      %s541 = smul.addr %s540, 2
      %s542 = smul.addr %s541, 8
      %s543 = scalar_lea.vmem %s4, %s542
      %p544 = pneg %p153
      %p545 = pneg %p150
      %p546 = pneg %p174
      %p547 = pneg %p171
      %p548 = pneg %p195
      %p549 = pneg %p192
      %p550 = pneg %p216
      %p551 = pneg %p213
      %p552 = pneg %p237
      %p553 = pneg %p234
      %p554 = pneg %p258
      %p555 = pneg %p255
      %p556 = pneg %p279
      %p557 = pneg %p276
      %p558 = pneg %p300
      %p559 = pneg %p297
      %p560 = pneg %p321
      %p561 = pneg %p318
      %p562 = pneg %p342
      %p563 = pneg %p339
      %p564 = pneg %p363
      %p565 = pneg %p360
      %p566 = pneg %p389
      %p567 = pneg %p386
      %p568 = scmp.lt.s32.totalorder %s28, 1
      %s569 = scalar_select %p568, %s28, 1
      %s570 = smul.addr %s569, 32
      %s571 = smul.addr %s570, 8
      %s572 = scalar_lea.vmem %s15, %s571
      %p573 = pneg %p415
      %p574 = pneg %p412
      %p575 = scmp.lt.s32.totalorder %s28, 1
      %s576 = scalar_select %p575, %s28, 1
      %s577 = smul.addr %s576, 2
      %s578 = smul.addr %s577, 8
      %s579 = scalar_lea.vmem %s16, %s578
      %p580 = scmp.lt.s32.totalorder %s28, 1
      %s581 = scalar_select %p580, %s28, 1
      %s582 = smul.addr %s581, 32
      %s583 = smul.addr %s582, 8
      %s584 = scalar_lea.vmem %s0, %s583
      %p585 = scmp.lt.s32.totalorder %s28, 1
      %s586 = scalar_select %p585, %s28, 1
      %s587 = smul.addr %s586, 4
      %s588 = smul.addr %s587, 8
      %s589 = scalar_lea.vmem %s1, %s588
      %p590 = scmp.lt.s32.totalorder %s28, 1
      %s591 = scalar_select %p590, %s28, 1
      %s592 = smul.addr %s591, 2
      %s593 = smul.addr %s592, 8
      %s594 = scalar_lea.vmem %s2, %s593
      %p595 = scmp.lt.s32.totalorder %s28, 1
      %s596 = scalar_select %p595, %s28, 1
      %s597 = smul.addr %s596, 2
      %s598 = smul.addr %s597, 8
      %s599 = scalar_lea.vmem %s3, %s598
      %p600 = scmp.lt.s32.totalorder %s28, 1
      %s601 = scalar_select %p600, %s28, 1
      %s602 = smul.addr %s601, 2
      %s603 = smul.addr %s602, 8
      %s604 = scalar_lea.vmem %s4, %s603
      %p605 = scmp.lt.s32.totalorder %s28, 1
      %s606 = scalar_select %p605, %s28, 1
      %s607 = smul.addr %s606, 32
      %s608 = smul.addr %s607, 8
      %s609 = scalar_lea.vmem %s15, %s608
      %p610 = scmp.lt.s32.totalorder %s28, 1
      %s611 = scalar_select %p610, %s28, 1
      %s612 = smul.addr %s611, 2
      %s613 = smul.addr %s612, 8
      %s614 = scalar_lea.vmem %s16, %s613
      %v615 = vld [vmem:[%s584] sm:$0xff]
      %v616 = vld [vmem:[%s584 + $0x8] sm:$0xff]
      %v617 = vld [vmem:[%s584 + $0x10] sm:$0xff]
      %v618 = vld [vmem:[%s584 + $0x18] sm:$0xff]
      %v619 = vld [vmem:[%s584 + $0x20] sm:$0xff]
      %v620 = vld [vmem:[%s584 + $0x28] sm:$0xff]
      %v621 = vld [vmem:[%s584 + $0x30] sm:$0xff]
      %v622 = vld [vmem:[%s584 + $0x38] sm:$0xff]
      %v623 = vld [vmem:[%s584 + $0x40] sm:$0xff]
      %v624 = vld [vmem:[%s584 + $0x48] sm:$0xff]
      %v625 = vld [vmem:[%s584 + $0x50] sm:$0xff]
      %v626 = vld [vmem:[%s584 + $0x58] sm:$0xff]
      %v627 = vld [vmem:[%s584 + $0x60] sm:$0xff]
      %v628 = vld [vmem:[%s584 + $0x68] sm:$0xff]
      %v629 = vld [vmem:[%s584 + $0x70] sm:$0xff]
      %v630 = vld [vmem:[%s584 + $0x78] sm:$0xff]
      %v631 = vld [vmem:[%s584 + $0x80] sm:$0xff]
      %v632 = vld [vmem:[%s584 + $0x88] sm:$0xff]
      %v633 = vld [vmem:[%s584 + $0x90] sm:$0xff]
      %v634 = vld [vmem:[%s584 + $0x98] sm:$0xff]
      %v635 = vld [vmem:[%s584 + $0xa0] sm:$0xff]
      %v636 = vld [vmem:[%s584 + $0xa8] sm:$0xff]
      %v637 = vld [vmem:[%s584 + $0xb0] sm:$0xff]
      %v638 = vld [vmem:[%s584 + $0xb8] sm:$0xff]
      %v639 = vld [vmem:[%s584 + $0xc0] sm:$0xff]
      %v640 = vld [vmem:[%s584 + $0xc8] sm:$0xff]
      %v641 = vld [vmem:[%s584 + $0xd0] sm:$0xff]
      %v642 = vld [vmem:[%s584 + $0xd8] sm:$0xff]
      %v643 = vld [vmem:[%s584 + $0xe0] sm:$0xff]
      %v644 = vld [vmem:[%s584 + $0xe8] sm:$0xff]
      %v645 = vld [vmem:[%s584 + $0xf0] sm:$0xff]
      %v646 = vld [vmem:[%s584 + $0xf8] sm:$0xff]
      %v647 = vld [vmem:[%s599] sm:$0xff]
      %v648 = vld [vmem:[%s599 + $0x8] sm:$0xff]
      %v649 = vld [vmem:[%s5] sm:$0xff]
      %v650 = vld [vmem:[%s5 + $0x8] sm:$0xff]
      %v651 = vld [vmem:[%s5 + $0x10] sm:$0xff]
      %v652 = vld [vmem:[%s5 + $0x18] sm:$0xff]
      %v653 = vld [vmem:[%s5 + $0x20] sm:$0xff]
      %v654 = vld [vmem:[%s5 + $0x28] sm:$0xff]
      %v655 = vld [vmem:[%s5 + $0x30] sm:$0xff]
      %v656 = vld [vmem:[%s5 + $0x38] sm:$0xff]
      %v657 = vld [vmem:[%s5 + $0x40] sm:$0xff]
      %v658 = vld [vmem:[%s5 + $0x48] sm:$0xff]
      %v659 = vld [vmem:[%s5 + $0x50] sm:$0xff]
      %v660 = vld [vmem:[%s5 + $0x58] sm:$0xff]
      %v661 = vld [vmem:[%s5 + $0x60] sm:$0xff]
      %v662 = vld [vmem:[%s5 + $0x68] sm:$0xff]
      %v663 = vld [vmem:[%s5 + $0x70] sm:$0xff]
      %v664 = vld [vmem:[%s5 + $0x78] sm:$0xff]
      %v665 = vld [vmem:[%s5 + $0x80] sm:$0xff]
      %v666 = vld [vmem:[%s5 + $0x88] sm:$0xff]
      %v667 = vld [vmem:[%s5 + $0x90] sm:$0xff]
      %v668 = vld [vmem:[%s5 + $0x98] sm:$0xff]
      %v669 = vld [vmem:[%s5 + $0xa0] sm:$0xff]
      %v670 = vld [vmem:[%s5 + $0xa8] sm:$0xff]
      %v671 = vld [vmem:[%s5 + $0xb0] sm:$0xff]
      %v672 = vld [vmem:[%s5 + $0xb8] sm:$0xff]
      %v673 = vld [vmem:[%s5 + $0xc0] sm:$0xff]
      %v674 = vld [vmem:[%s5 + $0xc8] sm:$0xff]
      %v675 = vld [vmem:[%s5 + $0xd0] sm:$0xff]
      %v676 = vld [vmem:[%s5 + $0xd8] sm:$0xff]
      %v677 = vld [vmem:[%s5 + $0xe0] sm:$0xff]
      %v678 = vld [vmem:[%s5 + $0xe8] sm:$0xff]
      %v679 = vld [vmem:[%s5 + $0xf0] sm:$0xff]
      %v680 = vld [vmem:[%s5 + $0xf8] sm:$0xff]
      %v681 = vld [vmem:[%s6] sm:$0xff]
      %v682 = vld [vmem:[%s6 + $0x8] sm:$0xff]
      %v683 = vld [vmem:[%s6 + $0x10] sm:$0xff]
      %v684 = vld [vmem:[%s6 + $0x18] sm:$0xff]
      %v685 = vld [vmem:[%s6 + $0x20] sm:$0xff]
      %v686 = vld [vmem:[%s6 + $0x28] sm:$0xff]
      %v687 = vld [vmem:[%s6 + $0x30] sm:$0xff]
      %v688 = vld [vmem:[%s6 + $0x38] sm:$0xff]
      %v689 = vld [vmem:[%s6 + $0x40] sm:$0xff]
      %v690 = vld [vmem:[%s6 + $0x48] sm:$0xff]
      %v691 = vld [vmem:[%s6 + $0x50] sm:$0xff]
      %v692 = vld [vmem:[%s6 + $0x58] sm:$0xff]
      %v693 = vld [vmem:[%s6 + $0x60] sm:$0xff]
      %v694 = vld [vmem:[%s6 + $0x68] sm:$0xff]
      %v695 = vld [vmem:[%s6 + $0x70] sm:$0xff]
      %v696 = vld [vmem:[%s6 + $0x78] sm:$0xff]
      %v697 = vld [vmem:[%s6 + $0x80] sm:$0xff]
      %v698 = vld [vmem:[%s6 + $0x88] sm:$0xff]
      %v699 = vld [vmem:[%s6 + $0x90] sm:$0xff]
      %v700 = vld [vmem:[%s6 + $0x98] sm:$0xff]
      %v701 = vld [vmem:[%s6 + $0xa0] sm:$0xff]
      %v702 = vld [vmem:[%s6 + $0xa8] sm:$0xff]
      %v703 = vld [vmem:[%s6 + $0xb0] sm:$0xff]
      %v704 = vld [vmem:[%s6 + $0xb8] sm:$0xff]
      %v705 = vld [vmem:[%s6 + $0xc0] sm:$0xff]
      %v706 = vld [vmem:[%s6 + $0xc8] sm:$0xff]
      %v707 = vld [vmem:[%s6 + $0xd0] sm:$0xff]
      %v708 = vld [vmem:[%s6 + $0xd8] sm:$0xff]
      %v709 = vld [vmem:[%s6 + $0xe0] sm:$0xff]
      %v710 = vld [vmem:[%s6 + $0xe8] sm:$0xff]
      %v711 = vld [vmem:[%s6 + $0xf0] sm:$0xff]
      %v712 = vld [vmem:[%s6 + $0xf8] sm:$0xff]
      %vm713 = vcmask 130048
      %v715 = vsel %vm713, %v649, 0
      %v718 = vsel %vm713, %v650, 0
      %v721 = vsel %vm713, %v651, 0
      %v724 = vsel %vm713, %v652, 0
      %v727 = vsel %vm713, %v653, 0
      %v730 = vsel %vm713, %v654, 0
      %v733 = vsel %vm713, %v655, 0
      %v736 = vsel %vm713, %v656, 0
      %v739 = vsel %vm713, %v657, 0
      %v742 = vsel %vm713, %v658, 0
      %v745 = vsel %vm713, %v659, 0
      %v748 = vsel %vm713, %v660, 0
      %v751 = vsel %vm713, %v661, 0
      %v754 = vsel %vm713, %v662, 0
      %v757 = vsel %vm713, %v663, 0
      %v760 = vsel %vm713, %v664, 0
      %v763 = vsel %vm713, %v665, 0
      %v766 = vsel %vm713, %v666, 0
      %v769 = vsel %vm713, %v667, 0
      %v772 = vsel %vm713, %v668, 0
      %v775 = vsel %vm713, %v669, 0
      %v778 = vsel %vm713, %v670, 0
      %v781 = vsel %vm713, %v671, 0
      %v784 = vsel %vm713, %v672, 0
      %v787 = vsel %vm713, %v673, 0
      %v790 = vsel %vm713, %v674, 0
      %v793 = vsel %vm713, %v675, 0
      %v796 = vsel %vm713, %v676, 0
      %v799 = vsel %vm713, %v677, 0
      %v802 = vsel %vm713, %v678, 0
      %v805 = vsel %vm713, %v679, 0
      %v808 = vsel %vm713, %v680, 0
      %810 = vmatprep.subr.mxu0 0.0
      %811 = vmatpush1.msra.mxu0 %v647
      %812 = vmatprep.subr.mxu0 0.0
      %813 = vmatpush1.msra.mxu0 %v648
      %814 = vmatprep.subr.mxu0 0.0
      %815 = vmatpush1.msra.mxu0 0.0
      %816 = vmatprep.subr.mxu0 0.0
      %817 = vmatpush1.msra.mxu0 0.0
      %818 = vmatprep.subr.mxu0 0.0
      %819 = vmatpush1.msra.mxu0 0.0
      %820 = vmatprep.subr.mxu0 0.0
      %821 = vmatpush1.msra.mxu0 0.0
      %822 = vmatprep.subr.mxu0 0.0
      %823 = vmatpush1.msra.mxu0 0.0
      %824 = vmatprep.subr.mxu0 0.0
      %825 = vmatpush1.msra.mxu0 0.0
      %826 = vmatprep.subr.mxu0 0.0
      %827 = vmatpush1.msra.mxu0 0.0
      %828 = vmatprep.subr.mxu0 0.0
      %829 = vmatpush1.msra.mxu0 0.0
      %830 = vmatprep.subr.mxu0 0.0
      %831 = vmatpush1.msra.mxu0 0.0
      %832 = vmatprep.subr.mxu0 0.0
      %833 = vmatpush1.msra.mxu0 0.0
      %834 = vmatprep.subr.mxu0 0.0
      %835 = vmatpush1.msra.mxu0 0.0
      %836 = vmatprep.subr.mxu0 0.0
      %837 = vmatpush1.msra.mxu0 0.0
      %838 = vmatprep.subr.mxu0 0.0
      %839 = vmatpush1.msra.mxu0 0.0
      %840 = vmatprep.subr.mxu0 0.0
      %841 = vmatpush1.msra.mxu0 0.0
      %842 = vmatprep.subr.mxu0 0.0
      %843 = vmatpush1.msra.mxu0 0.0
      %844 = vmatprep.subr.mxu0 0.0
      %845 = vmatpush1.msra.mxu0 0.0
      %846 = vmatprep.subr.mxu0 0.0
      %847 = vmatpush1.msra.mxu0 0.0
      %848 = vmatprep.subr.mxu0 0.0
      %849 = vmatpush1.msra.mxu0 0.0
      %850 = vmatprep.subr.mxu0 0.0
      %851 = vmatpush1.msra.mxu0 0.0
      %852 = vmatprep.subr.mxu0 0.0
      %853 = vmatpush1.msra.mxu0 0.0
      %854 = vmatprep.subr.mxu0 0.0
      %855 = vmatpush1.msra.mxu0 0.0
      %856 = vmatprep.subr.mxu0 0.0
      %857 = vmatpush1.msra.mxu0 0.0
      %858 = vmatprep.subr.mxu0 0.0
      %859 = vmatpush1.msra.mxu0 0.0
      %860 = vmatprep.subr.mxu0 0.0
      %861 = vmatpush1.msra.mxu0 0.0
      %862 = vmatprep.subr.mxu0 0.0
      %863 = vmatpush1.msra.mxu0 0.0
      %864 = vmatprep.subr.mxu0 0.0
      %865 = vmatpush1.msra.mxu0 0.0
      %866 = vmatprep.subr.mxu0 0.0
      %867 = vmatpush1.msra.mxu0 0.0
      %868 = vmatprep.subr.mxu0 0.0
      %869 = vmatpush1.msra.mxu0 0.0
      %870 = vmatprep.subr.mxu0 0.0
      %871 = vmatpush1.msra.mxu0 0.0
      %872 = vmatprep.subr.mxu0 0.0
      %873 = vmatpush1.msra.mxu0 0.0
      %874 = vmatprep.mubr.f32.mxu0 0.0
      %875 = vmatmul.mubr.f32.gmra.mrb[0].mxu0 %v715
      %v876 = vpop.f32.mrb[0].mxu0
      %v877 = vadd.f32 0.0, %v876
      %v878 = vpop.f32.mrb[0].mxu0
      %879 = vmatprep.mubr.f32.mxu0 0.0
      %880 = vmatmul.mubr.f32.gmra.mrb[0].mxu0 %v718
      %v881 = vpop.f32.mrb[0].mxu0
      %v882 = vadd.f32 0.0, %v881
      %v883 = vpop.f32.mrb[0].mxu0
      %884 = vmatprep.mubr.f32.mxu0 0.0
      %885 = vmatmul.mubr.f32.gmra.mrb[0].mxu0 %v721
      %v886 = vpop.f32.mrb[0].mxu0
      %v887 = vadd.f32 0.0, %v886
      %v888 = vpop.f32.mrb[0].mxu0
      %889 = vmatprep.mubr.f32.mxu0 0.0
      %890 = vmatmul.mubr.f32.gmra.mrb[0].mxu0 %v724
      %v891 = vpop.f32.mrb[0].mxu0
      %v892 = vadd.f32 0.0, %v891
      %v893 = vpop.f32.mrb[0].mxu0
      %894 = vmatprep.mubr.f32.mxu0 0.0
      %895 = vmatmul.mubr.f32.gmra.mrb[0].mxu0 %v727
      %v896 = vpop.f32.mrb[0].mxu0
      %v897 = vadd.f32 0.0, %v896
      %v898 = vpop.f32.mrb[0].mxu0
      %899 = vmatprep.mubr.f32.mxu0 0.0
      %900 = vmatmul.mubr.f32.gmra.mrb[0].mxu0 %v730
      %v901 = vpop.f32.mrb[0].mxu0
      %v902 = vadd.f32 0.0, %v901
      %v903 = vpop.f32.mrb[0].mxu0
      %904 = vmatprep.mubr.f32.mxu0 0.0
      %905 = vmatmul.mubr.f32.gmra.mrb[0].mxu0 %v733
      %v906 = vpop.f32.mrb[0].mxu0
      %v907 = vadd.f32 0.0, %v906
      %v908 = vpop.f32.mrb[0].mxu0
      %909 = vmatprep.mubr.f32.mxu0 0.0
      %910 = vmatmul.mubr.f32.gmra.mrb[0].mxu0 %v736
      %v911 = vpop.f32.mrb[0].mxu0
      %v912 = vadd.f32 0.0, %v911
      %v913 = vpop.f32.mrb[0].mxu0
      %914 = vmatprep.mubr.f32.mxu0 0.0
      %915 = vmatmul.mubr.f32.gmra.mrb[0].mxu0 %v739
      %v916 = vpop.f32.mrb[0].mxu0
      %v917 = vadd.f32 0.0, %v916
      %v918 = vpop.f32.mrb[0].mxu0
      %919 = vmatprep.mubr.f32.mxu0 0.0
      %920 = vmatmul.mubr.f32.gmra.mrb[0].mxu0 %v742
      %v921 = vpop.f32.mrb[0].mxu0
      %v922 = vadd.f32 0.0, %v921
      %v923 = vpop.f32.mrb[0].mxu0
      %924 = vmatprep.mubr.f32.mxu0 0.0
      %925 = vmatmul.mubr.f32.gmra.mrb[0].mxu0 %v745
      %v926 = vpop.f32.mrb[0].mxu0
      %v927 = vadd.f32 0.0, %v926
      %v928 = vpop.f32.mrb[0].mxu0
      %929 = vmatprep.mubr.f32.mxu0 0.0
      %930 = vmatmul.mubr.f32.gmra.mrb[0].mxu0 %v748
      %v931 = vpop.f32.mrb[0].mxu0
      %v932 = vadd.f32 0.0, %v931
      %v933 = vpop.f32.mrb[0].mxu0
      %934 = vmatprep.mubr.f32.mxu0 0.0
      %935 = vmatmul.mubr.f32.gmra.mrb[0].mxu0 %v751
      %v936 = vpop.f32.mrb[0].mxu0
      %v937 = vadd.f32 0.0, %v936
      %v938 = vpop.f32.mrb[0].mxu0
      %939 = vmatprep.mubr.f32.mxu0 0.0
      %940 = vmatmul.mubr.f32.gmra.mrb[0].mxu0 %v754
      %v941 = vpop.f32.mrb[0].mxu0
      %v942 = vadd.f32 0.0, %v941
      %v943 = vpop.f32.mrb[0].mxu0
      %944 = vmatprep.mubr.f32.mxu0 0.0
      %945 = vmatmul.mubr.f32.gmra.mrb[0].mxu0 %v757
      %v946 = vpop.f32.mrb[0].mxu0
      %v947 = vadd.f32 0.0, %v946
      %v948 = vpop.f32.mrb[0].mxu0
      %949 = vmatprep.mubr.f32.mxu0 0.0
      %950 = vmatmul.mubr.f32.gmra.mrb[0].mxu0 %v760
      %v951 = vpop.f32.mrb[0].mxu0
      %v952 = vadd.f32 0.0, %v951
      %v953 = vpop.f32.mrb[0].mxu0
      %954 = vmatprep.mubr.f32.mxu0 0.0
      %955 = vmatmul.mubr.f32.gmra.mrb[0].mxu0 %v763
      %v956 = vpop.f32.mrb[0].mxu0
      %v957 = vadd.f32 0.0, %v956
      %v958 = vpop.f32.mrb[0].mxu0
      %959 = vmatprep.mubr.f32.mxu0 0.0
      %960 = vmatmul.mubr.f32.gmra.mrb[0].mxu0 %v766
      %v961 = vpop.f32.mrb[0].mxu0
      %v962 = vadd.f32 0.0, %v961
      %v963 = vpop.f32.mrb[0].mxu0
      %964 = vmatprep.mubr.f32.mxu0 0.0
      %965 = vmatmul.mubr.f32.gmra.mrb[0].mxu0 %v769
      %v966 = vpop.f32.mrb[0].mxu0
      %v967 = vadd.f32 0.0, %v966
      %v968 = vpop.f32.mrb[0].mxu0
      %969 = vmatprep.mubr.f32.mxu0 0.0
      %970 = vmatmul.mubr.f32.gmra.mrb[0].mxu0 %v772
      %v971 = vpop.f32.mrb[0].mxu0
      %v972 = vadd.f32 0.0, %v971
      %v973 = vpop.f32.mrb[0].mxu0
      %974 = vmatprep.mubr.f32.mxu0 0.0
      %975 = vmatmul.mubr.f32.gmra.mrb[0].mxu0 %v775
      %v976 = vpop.f32.mrb[0].mxu0
      %v977 = vadd.f32 0.0, %v976
      %v978 = vpop.f32.mrb[0].mxu0
      %979 = vmatprep.mubr.f32.mxu0 0.0
      %980 = vmatmul.mubr.f32.gmra.mrb[0].mxu0 %v778
      %v981 = vpop.f32.mrb[0].mxu0
      %v982 = vadd.f32 0.0, %v981
      %v983 = vpop.f32.mrb[0].mxu0
      %984 = vmatprep.mubr.f32.mxu0 0.0
      %985 = vmatmul.mubr.f32.gmra.mrb[0].mxu0 %v781
      %v986 = vpop.f32.mrb[0].mxu0
      %v987 = vadd.f32 0.0, %v986
      %v988 = vpop.f32.mrb[0].mxu0
      %989 = vmatprep.mubr.f32.mxu0 0.0
      %990 = vmatmul.mubr.f32.gmra.mrb[0].mxu0 %v784
      %v991 = vpop.f32.mrb[0].mxu0
      %v992 = vadd.f32 0.0, %v991
      %v993 = vpop.f32.mrb[0].mxu0
      %994 = vmatprep.mubr.f32.mxu0 0.0
      %995 = vmatmul.mubr.f32.gmra.mrb[0].mxu0 %v787
      %v996 = vpop.f32.mrb[0].mxu0
      %v997 = vadd.f32 0.0, %v996
      %v998 = vpop.f32.mrb[0].mxu0
      %999 = vmatprep.mubr.f32.mxu0 0.0
      %1000 = vmatmul.mubr.f32.gmra.mrb[0].mxu0 %v790
      %v1001 = vpop.f32.mrb[0].mxu0
      %v1002 = vadd.f32 0.0, %v1001
      %v1003 = vpop.f32.mrb[0].mxu0
      %1004 = vmatprep.mubr.f32.mxu0 0.0
      %1005 = vmatmul.mubr.f32.gmra.mrb[0].mxu0 %v793
      %v1006 = vpop.f32.mrb[0].mxu0
      %v1007 = vadd.f32 0.0, %v1006
      %v1008 = vpop.f32.mrb[0].mxu0
      %1009 = vmatprep.mubr.f32.mxu0 0.0
      %1010 = vmatmul.mubr.f32.gmra.mrb[0].mxu0 %v796
      %v1011 = vpop.f32.mrb[0].mxu0
      %v1012 = vadd.f32 0.0, %v1011
      %v1013 = vpop.f32.mrb[0].mxu0
      %1014 = vmatprep.mubr.f32.mxu0 0.0
      %1015 = vmatmul.mubr.f32.gmra.mrb[0].mxu0 %v799
      %v1016 = vpop.f32.mrb[0].mxu0
      %v1017 = vadd.f32 0.0, %v1016
      %v1018 = vpop.f32.mrb[0].mxu0
      %1019 = vmatprep.mubr.f32.mxu0 0.0
      %1020 = vmatmul.mubr.f32.gmra.mrb[0].mxu0 %v802
      %v1021 = vpop.f32.mrb[0].mxu0
      %v1022 = vadd.f32 0.0, %v1021
      %v1023 = vpop.f32.mrb[0].mxu0
      %1024 = vmatprep.mubr.f32.mxu0 0.0
      %1025 = vmatmul.mubr.f32.gmra.mrb[0].mxu0 %v805
      %v1026 = vpop.f32.mrb[0].mxu0
      %v1027 = vadd.f32 0.0, %v1026
      %v1028 = vpop.f32.mrb[0].mxu0
      %1029 = vmatprep.mubr.f32.mxu0 0.0
      %1030 = vmatmul.mubr.f32.gmra.mrb[0].mxu0 %v808
      %v1031 = vpop.f32.mrb[0].mxu0
      %v1032 = vadd.f32 0.0, %v1031
      %v1033 = vpop.f32.mrb[0].mxu0
      %1034 = vdwg.mxu0
      %v1036 = vsel %vm713, %v681, 0
      %v1039 = vsel %vm713, %v682, 0
      %v1042 = vsel %vm713, %v683, 0
      %v1045 = vsel %vm713, %v684, 0
      %v1048 = vsel %vm713, %v685, 0
      %v1051 = vsel %vm713, %v686, 0
      %v1054 = vsel %vm713, %v687, 0
      %v1057 = vsel %vm713, %v688, 0
      %v1060 = vsel %vm713, %v689, 0
      %v1063 = vsel %vm713, %v690, 0
      %v1066 = vsel %vm713, %v691, 0
      %v1069 = vsel %vm713, %v692, 0
      %v1072 = vsel %vm713, %v693, 0
      %v1075 = vsel %vm713, %v694, 0
      %v1078 = vsel %vm713, %v695, 0
      %v1081 = vsel %vm713, %v696, 0
      %v1084 = vsel %vm713, %v697, 0
      %v1087 = vsel %vm713, %v698, 0
      %v1090 = vsel %vm713, %v699, 0
      %v1093 = vsel %vm713, %v700, 0
      %v1096 = vsel %vm713, %v701, 0
      %v1099 = vsel %vm713, %v702, 0
      %v1102 = vsel %vm713, %v703, 0
      %v1105 = vsel %vm713, %v704, 0
      %v1108 = vsel %vm713, %v705, 0
      %v1111 = vsel %vm713, %v706, 0
      %v1114 = vsel %vm713, %v707, 0
      %v1117 = vsel %vm713, %v708, 0
      %v1120 = vsel %vm713, %v709, 0
      %v1123 = vsel %vm713, %v710, 0
      %v1126 = vsel %vm713, %v711, 0
      %v1129 = vsel %vm713, %v712, 0
      %1131 = vmatprep.subr.mxu0 0.0
      %1132 = vmatpush1.msra.mxu0 %v647
      %1133 = vmatprep.subr.mxu0 0.0
      %1134 = vmatpush1.msra.mxu0 %v648
      %1135 = vmatprep.subr.mxu0 0.0
      %1136 = vmatpush1.msra.mxu0 0.0
      %1137 = vmatprep.subr.mxu0 0.0
      %1138 = vmatpush1.msra.mxu0 0.0
      %1139 = vmatprep.subr.mxu0 0.0
      %1140 = vmatpush1.msra.mxu0 0.0
      %1141 = vmatprep.subr.mxu0 0.0
      %1142 = vmatpush1.msra.mxu0 0.0
      %1143 = vmatprep.subr.mxu0 0.0
      %1144 = vmatpush1.msra.mxu0 0.0
      %1145 = vmatprep.subr.mxu0 0.0
      %1146 = vmatpush1.msra.mxu0 0.0
      %1147 = vmatprep.subr.mxu0 0.0
      %1148 = vmatpush1.msra.mxu0 0.0
      %1149 = vmatprep.subr.mxu0 0.0
      %1150 = vmatpush1.msra.mxu0 0.0
      %1151 = vmatprep.subr.mxu0 0.0
      %1152 = vmatpush1.msra.mxu0 0.0
      %1153 = vmatprep.subr.mxu0 0.0
      %1154 = vmatpush1.msra.mxu0 0.0
      %1155 = vmatprep.subr.mxu0 0.0
      %1156 = vmatpush1.msra.mxu0 0.0
      %1157 = vmatprep.subr.mxu0 0.0
      %1158 = vmatpush1.msra.mxu0 0.0
      %1159 = vmatprep.subr.mxu0 0.0
      %1160 = vmatpush1.msra.mxu0 0.0
      %1161 = vmatprep.subr.mxu0 0.0
      %1162 = vmatpush1.msra.mxu0 0.0
      %1163 = vmatprep.subr.mxu0 0.0
      %1164 = vmatpush1.msra.mxu0 0.0
      %1165 = vmatprep.subr.mxu0 0.0
      %1166 = vmatpush1.msra.mxu0 0.0
      %1167 = vmatprep.subr.mxu0 0.0
      %1168 = vmatpush1.msra.mxu0 0.0
      %1169 = vmatprep.subr.mxu0 0.0
      %1170 = vmatpush1.msra.mxu0 0.0
      %1171 = vmatprep.subr.mxu0 0.0
      %1172 = vmatpush1.msra.mxu0 0.0
      %1173 = vmatprep.subr.mxu0 0.0
      %1174 = vmatpush1.msra.mxu0 0.0
      %1175 = vmatprep.subr.mxu0 0.0
      %1176 = vmatpush1.msra.mxu0 0.0
      %1177 = vmatprep.subr.mxu0 0.0
      %1178 = vmatpush1.msra.mxu0 0.0
      %1179 = vmatprep.subr.mxu0 0.0
      %1180 = vmatpush1.msra.mxu0 0.0
      %1181 = vmatprep.subr.mxu0 0.0
      %1182 = vmatpush1.msra.mxu0 0.0
      %1183 = vmatprep.subr.mxu0 0.0
      %1184 = vmatpush1.msra.mxu0 0.0
      %1185 = vmatprep.subr.mxu0 0.0
      %1186 = vmatpush1.msra.mxu0 0.0
      %1187 = vmatprep.subr.mxu0 0.0
      %1188 = vmatpush1.msra.mxu0 0.0
      %1189 = vmatprep.subr.mxu0 0.0
      %1190 = vmatpush1.msra.mxu0 0.0
      %1191 = vmatprep.subr.mxu0 0.0
      %1192 = vmatpush1.msra.mxu0 0.0
      %1193 = vmatprep.subr.mxu0 0.0
      %1194 = vmatpush1.msra.mxu0 0.0
      %1195 = vmatprep.mubr.f32.mxu0 0.0
      %1196 = vmatmul.mubr.f32.gmra.mrb[0].mxu0 %v1036
      %v1197 = vpop.f32.mrb[0].mxu0
      %v1198 = vadd.f32 0.0, %v1197
      %v1199 = vpop.f32.mrb[0].mxu0
      %1200 = vmatprep.mubr.f32.mxu0 0.0
      %1201 = vmatmul.mubr.f32.gmra.mrb[0].mxu0 %v1039
      %v1202 = vpop.f32.mrb[0].mxu0
      %v1203 = vadd.f32 0.0, %v1202
      %v1204 = vpop.f32.mrb[0].mxu0
      %1205 = vmatprep.mubr.f32.mxu0 0.0
      %1206 = vmatmul.mubr.f32.gmra.mrb[0].mxu0 %v1042
      %v1207 = vpop.f32.mrb[0].mxu0
      %v1208 = vadd.f32 0.0, %v1207
      %v1209 = vpop.f32.mrb[0].mxu0
      %1210 = vmatprep.mubr.f32.mxu0 0.0
      %1211 = vmatmul.mubr.f32.gmra.mrb[0].mxu0 %v1045
      %v1212 = vpop.f32.mrb[0].mxu0
      %v1213 = vadd.f32 0.0, %v1212
      %v1214 = vpop.f32.mrb[0].mxu0
      %1215 = vmatprep.mubr.f32.mxu0 0.0
      %1216 = vmatmul.mubr.f32.gmra.mrb[0].mxu0 %v1048
      %v1217 = vpop.f32.mrb[0].mxu0
      %v1218 = vadd.f32 0.0, %v1217
      %v1219 = vpop.f32.mrb[0].mxu0
      %1220 = vmatprep.mubr.f32.mxu0 0.0
      %1221 = vmatmul.mubr.f32.gmra.mrb[0].mxu0 %v1051
      %v1222 = vpop.f32.mrb[0].mxu0
      %v1223 = vadd.f32 0.0, %v1222
      %v1224 = vpop.f32.mrb[0].mxu0
      %1225 = vmatprep.mubr.f32.mxu0 0.0
      %1226 = vmatmul.mubr.f32.gmra.mrb[0].mxu0 %v1054
      %v1227 = vpop.f32.mrb[0].mxu0
      %v1228 = vadd.f32 0.0, %v1227
      %v1229 = vpop.f32.mrb[0].mxu0
      %1230 = vmatprep.mubr.f32.mxu0 0.0
      %1231 = vmatmul.mubr.f32.gmra.mrb[0].mxu0 %v1057
      %v1232 = vpop.f32.mrb[0].mxu0
      %v1233 = vadd.f32 0.0, %v1232
      %v1234 = vpop.f32.mrb[0].mxu0
      %1235 = vmatprep.mubr.f32.mxu0 0.0
      %1236 = vmatmul.mubr.f32.gmra.mrb[0].mxu0 %v1060
      %v1237 = vpop.f32.mrb[0].mxu0
      %v1238 = vadd.f32 0.0, %v1237
      %v1239 = vpop.f32.mrb[0].mxu0
      %1240 = vmatprep.mubr.f32.mxu0 0.0
      %1241 = vmatmul.mubr.f32.gmra.mrb[0].mxu0 %v1063
      %v1242 = vpop.f32.mrb[0].mxu0
      %v1243 = vadd.f32 0.0, %v1242
      %v1244 = vpop.f32.mrb[0].mxu0
      %1245 = vmatprep.mubr.f32.mxu0 0.0
      %1246 = vmatmul.mubr.f32.gmra.mrb[0].mxu0 %v1066
      %v1247 = vpop.f32.mrb[0].mxu0
      %v1248 = vadd.f32 0.0, %v1247
      %v1249 = vpop.f32.mrb[0].mxu0
      %1250 = vmatprep.mubr.f32.mxu0 0.0
      %1251 = vmatmul.mubr.f32.gmra.mrb[0].mxu0 %v1069
      %v1252 = vpop.f32.mrb[0].mxu0
      %v1253 = vadd.f32 0.0, %v1252
      %v1254 = vpop.f32.mrb[0].mxu0
      %1255 = vmatprep.mubr.f32.mxu0 0.0
      %1256 = vmatmul.mubr.f32.gmra.mrb[0].mxu0 %v1072
      %v1257 = vpop.f32.mrb[0].mxu0
      %v1258 = vadd.f32 0.0, %v1257
      %v1259 = vpop.f32.mrb[0].mxu0
      %1260 = vmatprep.mubr.f32.mxu0 0.0
      %1261 = vmatmul.mubr.f32.gmra.mrb[0].mxu0 %v1075
      %v1262 = vpop.f32.mrb[0].mxu0
      %v1263 = vadd.f32 0.0, %v1262
      %v1264 = vpop.f32.mrb[0].mxu0
      %1265 = vmatprep.mubr.f32.mxu0 0.0
      %1266 = vmatmul.mubr.f32.gmra.mrb[0].mxu0 %v1078
      %v1267 = vpop.f32.mrb[0].mxu0
      %v1268 = vadd.f32 0.0, %v1267
      %v1269 = vpop.f32.mrb[0].mxu0
      %1270 = vmatprep.mubr.f32.mxu0 0.0
      %1271 = vmatmul.mubr.f32.gmra.mrb[0].mxu0 %v1081
      %v1272 = vpop.f32.mrb[0].mxu0
      %v1273 = vadd.f32 0.0, %v1272
      %v1274 = vpop.f32.mrb[0].mxu0
      %1275 = vmatprep.mubr.f32.mxu0 0.0
      %1276 = vmatmul.mubr.f32.gmra.mrb[0].mxu0 %v1084
      %v1277 = vpop.f32.mrb[0].mxu0
      %v1278 = vadd.f32 0.0, %v1277
      %v1279 = vpop.f32.mrb[0].mxu0
      %1280 = vmatprep.mubr.f32.mxu0 0.0
      %1281 = vmatmul.mubr.f32.gmra.mrb[0].mxu0 %v1087
      %v1282 = vpop.f32.mrb[0].mxu0
      %v1283 = vadd.f32 0.0, %v1282
      %v1284 = vpop.f32.mrb[0].mxu0
      %1285 = vmatprep.mubr.f32.mxu0 0.0
      %1286 = vmatmul.mubr.f32.gmra.mrb[0].mxu0 %v1090
      %v1287 = vpop.f32.mrb[0].mxu0
      %v1288 = vadd.f32 0.0, %v1287
      %v1289 = vpop.f32.mrb[0].mxu0
      %1290 = vmatprep.mubr.f32.mxu0 0.0
      %1291 = vmatmul.mubr.f32.gmra.mrb[0].mxu0 %v1093
      %v1292 = vpop.f32.mrb[0].mxu0
      %v1293 = vadd.f32 0.0, %v1292
      %v1294 = vpop.f32.mrb[0].mxu0
      %1295 = vmatprep.mubr.f32.mxu0 0.0
      %1296 = vmatmul.mubr.f32.gmra.mrb[0].mxu0 %v1096
      %v1297 = vpop.f32.mrb[0].mxu0
      %v1298 = vadd.f32 0.0, %v1297
      %v1299 = vpop.f32.mrb[0].mxu0
      %1300 = vmatprep.mubr.f32.mxu0 0.0
      %1301 = vmatmul.mubr.f32.gmra.mrb[0].mxu0 %v1099
      %v1302 = vpop.f32.mrb[0].mxu0
      %v1303 = vadd.f32 0.0, %v1302
      %v1304 = vpop.f32.mrb[0].mxu0
      %1305 = vmatprep.mubr.f32.mxu0 0.0
      %1306 = vmatmul.mubr.f32.gmra.mrb[0].mxu0 %v1102
      %v1307 = vpop.f32.mrb[0].mxu0
      %v1308 = vadd.f32 0.0, %v1307
      %v1309 = vpop.f32.mrb[0].mxu0
      %1310 = vmatprep.mubr.f32.mxu0 0.0
      %1311 = vmatmul.mubr.f32.gmra.mrb[0].mxu0 %v1105
      %v1312 = vpop.f32.mrb[0].mxu0
      %v1313 = vadd.f32 0.0, %v1312
      %v1314 = vpop.f32.mrb[0].mxu0
      %1315 = vmatprep.mubr.f32.mxu0 0.0
      %1316 = vmatmul.mubr.f32.gmra.mrb[0].mxu0 %v1108
      %v1317 = vpop.f32.mrb[0].mxu0
      %v1318 = vadd.f32 0.0, %v1317
      %v1319 = vpop.f32.mrb[0].mxu0
      %1320 = vmatprep.mubr.f32.mxu0 0.0
      %1321 = vmatmul.mubr.f32.gmra.mrb[0].mxu0 %v1111
      %v1322 = vpop.f32.mrb[0].mxu0
      %v1323 = vadd.f32 0.0, %v1322
      %v1324 = vpop.f32.mrb[0].mxu0
      %1325 = vmatprep.mubr.f32.mxu0 0.0
      %1326 = vmatmul.mubr.f32.gmra.mrb[0].mxu0 %v1114
      %v1327 = vpop.f32.mrb[0].mxu0
      %v1328 = vadd.f32 0.0, %v1327
      %v1329 = vpop.f32.mrb[0].mxu0
      %1330 = vmatprep.mubr.f32.mxu0 0.0
      %1331 = vmatmul.mubr.f32.gmra.mrb[0].mxu0 %v1117
      %v1332 = vpop.f32.mrb[0].mxu0
      %v1333 = vadd.f32 0.0, %v1332
      %v1334 = vpop.f32.mrb[0].mxu0
      %1335 = vmatprep.mubr.f32.mxu0 0.0
      %1336 = vmatmul.mubr.f32.gmra.mrb[0].mxu0 %v1120
      %v1337 = vpop.f32.mrb[0].mxu0
      %v1338 = vadd.f32 0.0, %v1337
      %v1339 = vpop.f32.mrb[0].mxu0
      %1340 = vmatprep.mubr.f32.mxu0 0.0
      %1341 = vmatmul.mubr.f32.gmra.mrb[0].mxu0 %v1123
      %v1342 = vpop.f32.mrb[0].mxu0
      %v1343 = vadd.f32 0.0, %v1342
      %v1344 = vpop.f32.mrb[0].mxu0
      %1345 = vmatprep.mubr.f32.mxu0 0.0
      %1346 = vmatmul.mubr.f32.gmra.mrb[0].mxu0 %v1126
      %v1347 = vpop.f32.mrb[0].mxu0
      %v1348 = vadd.f32 0.0, %v1347
      %v1349 = vpop.f32.mrb[0].mxu0
      %1350 = vmatprep.mubr.f32.mxu0 0.0
      %1351 = vmatmul.mubr.f32.gmra.mrb[0].mxu0 %v1129
      %v1352 = vpop.f32.mrb[0].mxu0
      %v1353 = vadd.f32 0.0, %v1352
      %v1354 = vpop.f32.mrb[0].mxu0
      %1355 = vdwg.mxu0
      %v1356 = vsub.f32 %v877, %v1198
      %v1357 = vsub.f32 %v882, %v1203
      %v1358 = vsub.f32 %v887, %v1208
      %v1359 = vsub.f32 %v892, %v1213
      %v1360 = vsub.f32 %v897, %v1218
      %v1361 = vsub.f32 %v902, %v1223
      %v1362 = vsub.f32 %v907, %v1228
      %v1363 = vsub.f32 %v912, %v1233
      %v1364 = vsub.f32 %v917, %v1238
      %v1365 = vsub.f32 %v922, %v1243
      %v1366 = vsub.f32 %v927, %v1248
      %v1367 = vsub.f32 %v932, %v1253
      %v1368 = vsub.f32 %v937, %v1258
      %v1369 = vsub.f32 %v942, %v1263
      %v1370 = vsub.f32 %v947, %v1268
      %v1371 = vsub.f32 %v952, %v1273
      %v1372 = vsub.f32 %v957, %v1278
      %v1373 = vsub.f32 %v962, %v1283
      %v1374 = vsub.f32 %v967, %v1288
      %v1375 = vsub.f32 %v972, %v1293
      %v1376 = vsub.f32 %v977, %v1298
      %v1377 = vsub.f32 %v982, %v1303
      %v1378 = vsub.f32 %v987, %v1308
      %v1379 = vsub.f32 %v992, %v1313
      %v1380 = vsub.f32 %v997, %v1318
      %v1381 = vsub.f32 %v1002, %v1323
      %v1382 = vsub.f32 %v1007, %v1328
      %v1383 = vsub.f32 %v1012, %v1333
      %v1384 = vsub.f32 %v1017, %v1338
      %v1385 = vsub.f32 %v1022, %v1343
      %v1386 = vsub.f32 %v1027, %v1348
      %v1387 = vsub.f32 %v1032, %v1353
      %v1388 = vmul.f32 %v1356, %v1356
      %v1389 = vmul.f32 %v1357, %v1357
      %v1390 = vmul.f32 %v1358, %v1358
      %v1391 = vmul.f32 %v1359, %v1359
      %v1392 = vmul.f32 %v1360, %v1360
      %v1393 = vmul.f32 %v1361, %v1361
      %v1394 = vmul.f32 %v1362, %v1362
      %v1395 = vmul.f32 %v1363, %v1363
      %v1396 = vmul.f32 %v1364, %v1364
      %v1397 = vmul.f32 %v1365, %v1365
      %v1398 = vmul.f32 %v1366, %v1366
      %v1399 = vmul.f32 %v1367, %v1367
      %v1400 = vmul.f32 %v1368, %v1368
      %v1401 = vmul.f32 %v1369, %v1369
      %v1402 = vmul.f32 %v1370, %v1370
      %v1403 = vmul.f32 %v1371, %v1371
      %v1404 = vmul.f32 %v1372, %v1372
      %v1405 = vmul.f32 %v1373, %v1373
      %v1406 = vmul.f32 %v1374, %v1374
      %v1407 = vmul.f32 %v1375, %v1375
      %v1408 = vmul.f32 %v1376, %v1376
      %v1409 = vmul.f32 %v1377, %v1377
      %v1410 = vmul.f32 %v1378, %v1378
      %v1411 = vmul.f32 %v1379, %v1379
      %v1412 = vmul.f32 %v1380, %v1380
      %v1413 = vmul.f32 %v1381, %v1381
      %v1414 = vmul.f32 %v1382, %v1382
      %v1415 = vmul.f32 %v1383, %v1383
      %v1416 = vmul.f32 %v1384, %v1384
      %v1417 = vmul.f32 %v1385, %v1385
      %v1418 = vmul.f32 %v1386, %v1386
      %v1419 = vmul.f32 %v1387, %v1387
      %vm1420 = vcmask 23552
      %v1421 = vsel %vm1420, %v1388, 0.0
      %1422 = vadd.xlane.f32.xlu0 %v1421
      %v1423 = vpop.xlane.xlu0 %1422
      %v1424 = vsel %vm1420, %v1389, 0.0
      %1425 = vadd.xlane.f32.xlu0 %v1424
      %v1426 = vpop.xlane.xlu0 %1425
      %v1427 = vsel %vm1420, %v1390, 0.0
      %1428 = vadd.xlane.f32.xlu0 %v1427
      %v1429 = vpop.xlane.xlu0 %1428
      %v1430 = vsel %vm1420, %v1391, 0.0
      %1431 = vadd.xlane.f32.xlu0 %v1430
      %v1432 = vpop.xlane.xlu0 %1431
      %v1433 = vsel %vm1420, %v1392, 0.0
      %1434 = vadd.xlane.f32.xlu0 %v1433
      %v1435 = vpop.xlane.xlu0 %1434
      %v1436 = vsel %vm1420, %v1393, 0.0
      %1437 = vadd.xlane.f32.xlu0 %v1436
      %v1438 = vpop.xlane.xlu0 %1437
      %v1439 = vsel %vm1420, %v1394, 0.0
      %1440 = vadd.xlane.f32.xlu0 %v1439
      %v1441 = vpop.xlane.xlu0 %1440
      %v1442 = vsel %vm1420, %v1395, 0.0
      %1443 = vadd.xlane.f32.xlu0 %v1442
      %v1444 = vpop.xlane.xlu0 %1443
      %v1445 = vsel %vm1420, %v1396, 0.0
      %1446 = vadd.xlane.f32.xlu0 %v1445
      %v1447 = vpop.xlane.xlu0 %1446
      %v1448 = vsel %vm1420, %v1397, 0.0
      %1449 = vadd.xlane.f32.xlu0 %v1448
      %v1450 = vpop.xlane.xlu0 %1449
      %v1451 = vsel %vm1420, %v1398, 0.0
      %1452 = vadd.xlane.f32.xlu0 %v1451
      %v1453 = vpop.xlane.xlu0 %1452
      %v1454 = vsel %vm1420, %v1399, 0.0
      %1455 = vadd.xlane.f32.xlu0 %v1454
      %v1456 = vpop.xlane.xlu0 %1455
      %v1457 = vsel %vm1420, %v1400, 0.0
      %1458 = vadd.xlane.f32.xlu0 %v1457
      %v1459 = vpop.xlane.xlu0 %1458
      %v1460 = vsel %vm1420, %v1401, 0.0
      %1461 = vadd.xlane.f32.xlu0 %v1460
      %v1462 = vpop.xlane.xlu0 %1461
      %v1463 = vsel %vm1420, %v1402, 0.0
      %1464 = vadd.xlane.f32.xlu0 %v1463
      %v1465 = vpop.xlane.xlu0 %1464
      %v1466 = vsel %vm1420, %v1403, 0.0
      %1467 = vadd.xlane.f32.xlu0 %v1466
      %v1468 = vpop.xlane.xlu0 %1467
      %v1469 = vsel %vm1420, %v1404, 0.0
      %1470 = vadd.xlane.f32.xlu0 %v1469
      %v1471 = vpop.xlane.xlu0 %1470
      %v1472 = vsel %vm1420, %v1405, 0.0
      %1473 = vadd.xlane.f32.xlu0 %v1472
      %v1474 = vpop.xlane.xlu0 %1473
      %v1475 = vsel %vm1420, %v1406, 0.0
      %1476 = vadd.xlane.f32.xlu0 %v1475
      %v1477 = vpop.xlane.xlu0 %1476
      %v1478 = vsel %vm1420, %v1407, 0.0
      %1479 = vadd.xlane.f32.xlu0 %v1478
      %v1480 = vpop.xlane.xlu0 %1479
      %v1481 = vsel %vm1420, %v1408, 0.0
      %1482 = vadd.xlane.f32.xlu0 %v1481
      %v1483 = vpop.xlane.xlu0 %1482
      %v1484 = vsel %vm1420, %v1409, 0.0
      %1485 = vadd.xlane.f32.xlu0 %v1484
      %v1486 = vpop.xlane.xlu0 %1485
      %v1487 = vsel %vm1420, %v1410, 0.0
      %1488 = vadd.xlane.f32.xlu0 %v1487
      %v1489 = vpop.xlane.xlu0 %1488
      %v1490 = vsel %vm1420, %v1411, 0.0
      %1491 = vadd.xlane.f32.xlu0 %v1490
      %v1492 = vpop.xlane.xlu0 %1491
      %v1493 = vsel %vm1420, %v1412, 0.0
      %1494 = vadd.xlane.f32.xlu0 %v1493
      %v1495 = vpop.xlane.xlu0 %1494
      %v1496 = vsel %vm1420, %v1413, 0.0
      %1497 = vadd.xlane.f32.xlu0 %v1496
      %v1498 = vpop.xlane.xlu0 %1497
      %v1499 = vsel %vm1420, %v1414, 0.0
      %1500 = vadd.xlane.f32.xlu0 %v1499
      %v1501 = vpop.xlane.xlu0 %1500
      %v1502 = vsel %vm1420, %v1415, 0.0
      %1503 = vadd.xlane.f32.xlu0 %v1502
      %v1504 = vpop.xlane.xlu0 %1503
      %v1505 = vsel %vm1420, %v1416, 0.0
      %1506 = vadd.xlane.f32.xlu0 %v1505
      %v1507 = vpop.xlane.xlu0 %1506
      %v1508 = vsel %vm1420, %v1417, 0.0
      %1509 = vadd.xlane.f32.xlu0 %v1508
      %v1510 = vpop.xlane.xlu0 %1509
      %v1511 = vsel %vm1420, %v1418, 0.0
      %1512 = vadd.xlane.f32.xlu0 %v1511
      %v1513 = vpop.xlane.xlu0 %1512
      %v1514 = vsel %vm1420, %v1419, 0.0
      %1515 = vadd.xlane.f32.xlu0 %v1514
      %v1516 = vpop.xlane.xlu0 %1515
      %v1517 = vrsqrt.pop %v1423
      %v1518 = vmul.f32 %v1423, %v1517
      %vm1519 = vcmp.eq.f32.partialorder %v1423, inf
      %v1520 = vsel %vm1519, %v1423, %v1518
      %vm1521 = vcmp.eq.f32.partialorder %v1423, 0.0
      %v1522 = vand.u32 %v1423, 2147483648
      %v1523 = vsel %vm1521, %v1522, %v1520
      %v1524 = vrsqrt.pop %v1426
      %v1525 = vmul.f32 %v1426, %v1524
      %vm1526 = vcmp.eq.f32.partialorder %v1426, inf
      %v1527 = vsel %vm1526, %v1426, %v1525
      %vm1528 = vcmp.eq.f32.partialorder %v1426, 0.0
      %v1529 = vand.u32 %v1426, 2147483648
      %v1530 = vsel %vm1528, %v1529, %v1527
      %v1531 = vrsqrt.pop %v1429
      %v1532 = vmul.f32 %v1429, %v1531
      %vm1533 = vcmp.eq.f32.partialorder %v1429, inf
      %v1534 = vsel %vm1533, %v1429, %v1532
      %vm1535 = vcmp.eq.f32.partialorder %v1429, 0.0
      %v1536 = vand.u32 %v1429, 2147483648
      %v1537 = vsel %vm1535, %v1536, %v1534
      %v1538 = vrsqrt.pop %v1432
      %v1539 = vmul.f32 %v1432, %v1538
      %vm1540 = vcmp.eq.f32.partialorder %v1432, inf
      %v1541 = vsel %vm1540, %v1432, %v1539
      %vm1542 = vcmp.eq.f32.partialorder %v1432, 0.0
      %v1543 = vand.u32 %v1432, 2147483648
      %v1544 = vsel %vm1542, %v1543, %v1541
      %v1545 = vrsqrt.pop %v1435
      %v1546 = vmul.f32 %v1435, %v1545
      %vm1547 = vcmp.eq.f32.partialorder %v1435, inf
      %v1548 = vsel %vm1547, %v1435, %v1546
      %vm1549 = vcmp.eq.f32.partialorder %v1435, 0.0
      %v1550 = vand.u32 %v1435, 2147483648
      %v1551 = vsel %vm1549, %v1550, %v1548
      %v1552 = vrsqrt.pop %v1438
      %v1553 = vmul.f32 %v1438, %v1552
      %vm1554 = vcmp.eq.f32.partialorder %v1438, inf
      %v1555 = vsel %vm1554, %v1438, %v1553
      %vm1556 = vcmp.eq.f32.partialorder %v1438, 0.0
      %v1557 = vand.u32 %v1438, 2147483648
      %v1558 = vsel %vm1556, %v1557, %v1555
      %v1559 = vrsqrt.pop %v1441
      %v1560 = vmul.f32 %v1441, %v1559
      %vm1561 = vcmp.eq.f32.partialorder %v1441, inf
      %v1562 = vsel %vm1561, %v1441, %v1560
      %vm1563 = vcmp.eq.f32.partialorder %v1441, 0.0
      %v1564 = vand.u32 %v1441, 2147483648
      %v1565 = vsel %vm1563, %v1564, %v1562
      %v1566 = vrsqrt.pop %v1444
      %v1567 = vmul.f32 %v1444, %v1566
      %vm1568 = vcmp.eq.f32.partialorder %v1444, inf
      %v1569 = vsel %vm1568, %v1444, %v1567
      %vm1570 = vcmp.eq.f32.partialorder %v1444, 0.0
      %v1571 = vand.u32 %v1444, 2147483648
      %v1572 = vsel %vm1570, %v1571, %v1569
      %v1573 = vrsqrt.pop %v1447
      %v1574 = vmul.f32 %v1447, %v1573
      %vm1575 = vcmp.eq.f32.partialorder %v1447, inf
      %v1576 = vsel %vm1575, %v1447, %v1574
      %vm1577 = vcmp.eq.f32.partialorder %v1447, 0.0
      %v1578 = vand.u32 %v1447, 2147483648
      %v1579 = vsel %vm1577, %v1578, %v1576
      %v1580 = vrsqrt.pop %v1450
      %v1581 = vmul.f32 %v1450, %v1580
      %vm1582 = vcmp.eq.f32.partialorder %v1450, inf
      %v1583 = vsel %vm1582, %v1450, %v1581
      %vm1584 = vcmp.eq.f32.partialorder %v1450, 0.0
      %v1585 = vand.u32 %v1450, 2147483648
      %v1586 = vsel %vm1584, %v1585, %v1583
      %v1587 = vrsqrt.pop %v1453
      %v1588 = vmul.f32 %v1453, %v1587
      %vm1589 = vcmp.eq.f32.partialorder %v1453, inf
      %v1590 = vsel %vm1589, %v1453, %v1588
      %vm1591 = vcmp.eq.f32.partialorder %v1453, 0.0
      %v1592 = vand.u32 %v1453, 2147483648
      %v1593 = vsel %vm1591, %v1592, %v1590
      %v1594 = vrsqrt.pop %v1456
      %v1595 = vmul.f32 %v1456, %v1594
      %vm1596 = vcmp.eq.f32.partialorder %v1456, inf
      %v1597 = vsel %vm1596, %v1456, %v1595
      %vm1598 = vcmp.eq.f32.partialorder %v1456, 0.0
      %v1599 = vand.u32 %v1456, 2147483648
      %v1600 = vsel %vm1598, %v1599, %v1597
      %v1601 = vrsqrt.pop %v1459
      %v1602 = vmul.f32 %v1459, %v1601
      %vm1603 = vcmp.eq.f32.partialorder %v1459, inf
      %v1604 = vsel %vm1603, %v1459, %v1602
      %vm1605 = vcmp.eq.f32.partialorder %v1459, 0.0
      %v1606 = vand.u32 %v1459, 2147483648
      %v1607 = vsel %vm1605, %v1606, %v1604
      %v1608 = vrsqrt.pop %v1462
      %v1609 = vmul.f32 %v1462, %v1608
      %vm1610 = vcmp.eq.f32.partialorder %v1462, inf
      %v1611 = vsel %vm1610, %v1462, %v1609
      %vm1612 = vcmp.eq.f32.partialorder %v1462, 0.0
      %v1613 = vand.u32 %v1462, 2147483648
      %v1614 = vsel %vm1612, %v1613, %v1611
      %v1615 = vrsqrt.pop %v1465
      %v1616 = vmul.f32 %v1465, %v1615
      %vm1617 = vcmp.eq.f32.partialorder %v1465, inf
      %v1618 = vsel %vm1617, %v1465, %v1616
      %vm1619 = vcmp.eq.f32.partialorder %v1465, 0.0
      %v1620 = vand.u32 %v1465, 2147483648
      %v1621 = vsel %vm1619, %v1620, %v1618
      %v1622 = vrsqrt.pop %v1468
      %v1623 = vmul.f32 %v1468, %v1622
      %vm1624 = vcmp.eq.f32.partialorder %v1468, inf
      %v1625 = vsel %vm1624, %v1468, %v1623
      %vm1626 = vcmp.eq.f32.partialorder %v1468, 0.0
      %v1627 = vand.u32 %v1468, 2147483648
      %v1628 = vsel %vm1626, %v1627, %v1625
      %v1629 = vrsqrt.pop %v1471
      %v1630 = vmul.f32 %v1471, %v1629
      %vm1631 = vcmp.eq.f32.partialorder %v1471, inf
      %v1632 = vsel %vm1631, %v1471, %v1630
      %vm1633 = vcmp.eq.f32.partialorder %v1471, 0.0
      %v1634 = vand.u32 %v1471, 2147483648
      %v1635 = vsel %vm1633, %v1634, %v1632
      %v1636 = vrsqrt.pop %v1474
      %v1637 = vmul.f32 %v1474, %v1636
      %vm1638 = vcmp.eq.f32.partialorder %v1474, inf
      %v1639 = vsel %vm1638, %v1474, %v1637
      %vm1640 = vcmp.eq.f32.partialorder %v1474, 0.0
      %v1641 = vand.u32 %v1474, 2147483648
      %v1642 = vsel %vm1640, %v1641, %v1639
      %v1643 = vrsqrt.pop %v1477
      %v1644 = vmul.f32 %v1477, %v1643
      %vm1645 = vcmp.eq.f32.partialorder %v1477, inf
      %v1646 = vsel %vm1645, %v1477, %v1644
      %vm1647 = vcmp.eq.f32.partialorder %v1477, 0.0
      %v1648 = vand.u32 %v1477, 2147483648
      %v1649 = vsel %vm1647, %v1648, %v1646
      %v1650 = vrsqrt.pop %v1480
      %v1651 = vmul.f32 %v1480, %v1650
      %vm1652 = vcmp.eq.f32.partialorder %v1480, inf
      %v1653 = vsel %vm1652, %v1480, %v1651
      %vm1654 = vcmp.eq.f32.partialorder %v1480, 0.0
      %v1655 = vand.u32 %v1480, 2147483648
      %v1656 = vsel %vm1654, %v1655, %v1653
      %v1657 = vrsqrt.pop %v1483
      %v1658 = vmul.f32 %v1483, %v1657
      %vm1659 = vcmp.eq.f32.partialorder %v1483, inf
      %v1660 = vsel %vm1659, %v1483, %v1658
      %vm1661 = vcmp.eq.f32.partialorder %v1483, 0.0
      %v1662 = vand.u32 %v1483, 2147483648
      %v1663 = vsel %vm1661, %v1662, %v1660
      %v1664 = vrsqrt.pop %v1486
      %v1665 = vmul.f32 %v1486, %v1664
      %vm1666 = vcmp.eq.f32.partialorder %v1486, inf
      %v1667 = vsel %vm1666, %v1486, %v1665
      %vm1668 = vcmp.eq.f32.partialorder %v1486, 0.0
      %v1669 = vand.u32 %v1486, 2147483648
      %v1670 = vsel %vm1668, %v1669, %v1667
      %v1671 = vrsqrt.pop %v1489
      %v1672 = vmul.f32 %v1489, %v1671
      %vm1673 = vcmp.eq.f32.partialorder %v1489, inf
      %v1674 = vsel %vm1673, %v1489, %v1672
      %vm1675 = vcmp.eq.f32.partialorder %v1489, 0.0
      %v1676 = vand.u32 %v1489, 2147483648
      %v1677 = vsel %vm1675, %v1676, %v1674
      %v1678 = vrsqrt.pop %v1492
      %v1679 = vmul.f32 %v1492, %v1678
      %vm1680 = vcmp.eq.f32.partialorder %v1492, inf
      %v1681 = vsel %vm1680, %v1492, %v1679
      %vm1682 = vcmp.eq.f32.partialorder %v1492, 0.0
      %v1683 = vand.u32 %v1492, 2147483648
      %v1684 = vsel %vm1682, %v1683, %v1681
      %v1685 = vrsqrt.pop %v1495
      %v1686 = vmul.f32 %v1495, %v1685
      %vm1687 = vcmp.eq.f32.partialorder %v1495, inf
      %v1688 = vsel %vm1687, %v1495, %v1686
      %vm1689 = vcmp.eq.f32.partialorder %v1495, 0.0
      %v1690 = vand.u32 %v1495, 2147483648
      %v1691 = vsel %vm1689, %v1690, %v1688
      %v1692 = vrsqrt.pop %v1498
      %v1693 = vmul.f32 %v1498, %v1692
      %vm1694 = vcmp.eq.f32.partialorder %v1498, inf
      %v1695 = vsel %vm1694, %v1498, %v1693
      %vm1696 = vcmp.eq.f32.partialorder %v1498, 0.0
      %v1697 = vand.u32 %v1498, 2147483648
      %v1698 = vsel %vm1696, %v1697, %v1695
      %v1699 = vrsqrt.pop %v1501
      %v1700 = vmul.f32 %v1501, %v1699
      %vm1701 = vcmp.eq.f32.partialorder %v1501, inf
      %v1702 = vsel %vm1701, %v1501, %v1700
      %vm1703 = vcmp.eq.f32.partialorder %v1501, 0.0
      %v1704 = vand.u32 %v1501, 2147483648
      %v1705 = vsel %vm1703, %v1704, %v1702
      %v1706 = vrsqrt.pop %v1504
      %v1707 = vmul.f32 %v1504, %v1706
      %vm1708 = vcmp.eq.f32.partialorder %v1504, inf
      %v1709 = vsel %vm1708, %v1504, %v1707
      %vm1710 = vcmp.eq.f32.partialorder %v1504, 0.0
      %v1711 = vand.u32 %v1504, 2147483648
      %v1712 = vsel %vm1710, %v1711, %v1709
      %v1713 = vrsqrt.pop %v1507
      %v1714 = vmul.f32 %v1507, %v1713
      %vm1715 = vcmp.eq.f32.partialorder %v1507, inf
      %v1716 = vsel %vm1715, %v1507, %v1714
      %vm1717 = vcmp.eq.f32.partialorder %v1507, 0.0
      %v1718 = vand.u32 %v1507, 2147483648
      %v1719 = vsel %vm1717, %v1718, %v1716
      %v1720 = vrsqrt.pop %v1510
      %v1721 = vmul.f32 %v1510, %v1720
      %vm1722 = vcmp.eq.f32.partialorder %v1510, inf
      %v1723 = vsel %vm1722, %v1510, %v1721
      %vm1724 = vcmp.eq.f32.partialorder %v1510, 0.0
      %v1725 = vand.u32 %v1510, 2147483648
      %v1726 = vsel %vm1724, %v1725, %v1723
      %v1727 = vrsqrt.pop %v1513
      %v1728 = vmul.f32 %v1513, %v1727
      %vm1729 = vcmp.eq.f32.partialorder %v1513, inf
      %v1730 = vsel %vm1729, %v1513, %v1728
      %vm1731 = vcmp.eq.f32.partialorder %v1513, 0.0
      %v1732 = vand.u32 %v1513, 2147483648
      %v1733 = vsel %vm1731, %v1732, %v1730
      %v1734 = vrsqrt.pop %v1516
      %v1735 = vmul.f32 %v1516, %v1734
      %vm1736 = vcmp.eq.f32.partialorder %v1516, inf
      %v1737 = vsel %vm1736, %v1516, %v1735
      %vm1738 = vcmp.eq.f32.partialorder %v1516, 0.0
      %v1739 = vand.u32 %v1516, 2147483648
      %v1740 = vsel %vm1738, %v1739, %v1737
      %v1741 = vmul.f32 %v615, %v1523
      %v1742 = vmul.f32 %v616, %v1530
      %v1743 = vmul.f32 %v617, %v1537
      %v1744 = vmul.f32 %v618, %v1544
      %v1745 = vmul.f32 %v619, %v1551
      %v1746 = vmul.f32 %v620, %v1558
      %v1747 = vmul.f32 %v621, %v1565
      %v1748 = vmul.f32 %v622, %v1572
      %v1749 = vmul.f32 %v623, %v1579
      %v1750 = vmul.f32 %v624, %v1586
      %v1751 = vmul.f32 %v625, %v1593
      %v1752 = vmul.f32 %v626, %v1600
      %v1753 = vmul.f32 %v627, %v1607
      %v1754 = vmul.f32 %v628, %v1614
      %v1755 = vmul.f32 %v629, %v1621
      %v1756 = vmul.f32 %v630, %v1628
      %v1757 = vmul.f32 %v631, %v1635
      %v1758 = vmul.f32 %v632, %v1642
      %v1759 = vmul.f32 %v633, %v1649
      %v1760 = vmul.f32 %v634, %v1656
      %v1761 = vmul.f32 %v635, %v1663
      %v1762 = vmul.f32 %v636, %v1670
      %v1763 = vmul.f32 %v637, %v1677
      %v1764 = vmul.f32 %v638, %v1684
      %v1765 = vmul.f32 %v639, %v1691
      %v1766 = vmul.f32 %v640, %v1698
      %v1767 = vmul.f32 %v641, %v1705
      %v1768 = vmul.f32 %v642, %v1712
      %v1769 = vmul.f32 %v643, %v1719
      %v1770 = vmul.f32 %v644, %v1726
      %v1771 = vmul.f32 %v645, %v1733
      %v1772 = vmul.f32 %v646, %v1740
      %1805 = vrot.lane.b32.xlu0 %v615, 127
      %v1806 = vpop.permute.xlu0 %1805
      %1807 = vrot.lane.b32.xlu0 %v616, 127
      %v1808 = vpop.permute.xlu0 %1807
      %1809 = vrot.lane.b32.xlu0 %v617, 127
      %v1810 = vpop.permute.xlu0 %1809
      %1811 = vrot.lane.b32.xlu0 %v618, 127
      %v1812 = vpop.permute.xlu0 %1811
      %1813 = vrot.lane.b32.xlu0 %v619, 127
      %v1814 = vpop.permute.xlu0 %1813
      %1815 = vrot.lane.b32.xlu0 %v620, 127
      %v1816 = vpop.permute.xlu0 %1815
      %1817 = vrot.lane.b32.xlu0 %v621, 127
      %v1818 = vpop.permute.xlu0 %1817
      %1819 = vrot.lane.b32.xlu0 %v622, 127
      %v1820 = vpop.permute.xlu0 %1819
      %1821 = vrot.lane.b32.xlu0 %v623, 127
      %v1822 = vpop.permute.xlu0 %1821
      %1823 = vrot.lane.b32.xlu0 %v624, 127
      %v1824 = vpop.permute.xlu0 %1823
      %1825 = vrot.lane.b32.xlu0 %v625, 127
      %v1826 = vpop.permute.xlu0 %1825
      %1827 = vrot.lane.b32.xlu0 %v626, 127
      %v1828 = vpop.permute.xlu0 %1827
      %1829 = vrot.lane.b32.xlu0 %v627, 127
      %v1830 = vpop.permute.xlu0 %1829
      %1831 = vrot.lane.b32.xlu0 %v628, 127
      %v1832 = vpop.permute.xlu0 %1831
      %1833 = vrot.lane.b32.xlu0 %v629, 127
      %v1834 = vpop.permute.xlu0 %1833
      %1835 = vrot.lane.b32.xlu0 %v630, 127
      %v1836 = vpop.permute.xlu0 %1835
      %1837 = vrot.lane.b32.xlu0 %v631, 127
      %v1838 = vpop.permute.xlu0 %1837
      %1839 = vrot.lane.b32.xlu0 %v632, 127
      %v1840 = vpop.permute.xlu0 %1839
      %1841 = vrot.lane.b32.xlu0 %v633, 127
      %v1842 = vpop.permute.xlu0 %1841
      %1843 = vrot.lane.b32.xlu0 %v634, 127
      %v1844 = vpop.permute.xlu0 %1843
      %1845 = vrot.lane.b32.xlu0 %v635, 127
      %v1846 = vpop.permute.xlu0 %1845
      %1847 = vrot.lane.b32.xlu0 %v636, 127
      %v1848 = vpop.permute.xlu0 %1847
      %1849 = vrot.lane.b32.xlu0 %v637, 127
      %v1850 = vpop.permute.xlu0 %1849
      %1851 = vrot.lane.b32.xlu0 %v638, 127
      %v1852 = vpop.permute.xlu0 %1851
      %1853 = vrot.lane.b32.xlu0 %v639, 127
      %v1854 = vpop.permute.xlu0 %1853
      %1855 = vrot.lane.b32.xlu0 %v640, 127
      %v1856 = vpop.permute.xlu0 %1855
      %1857 = vrot.lane.b32.xlu0 %v641, 127
      %v1858 = vpop.permute.xlu0 %1857
      %1859 = vrot.lane.b32.xlu0 %v642, 127
      %v1860 = vpop.permute.xlu0 %1859
      %1861 = vrot.lane.b32.xlu0 %v643, 127
      %v1862 = vpop.permute.xlu0 %1861
      %1863 = vrot.lane.b32.xlu0 %v644, 127
      %v1864 = vpop.permute.xlu0 %1863
      %1865 = vrot.lane.b32.xlu0 %v645, 127
      %v1866 = vpop.permute.xlu0 %1865
      %1867 = vrot.lane.b32.xlu0 %v646, 127
      %v1868 = vpop.permute.xlu0 %1867
      %v1901 = vadd.f32 %v1741, %v1806
      %v1902 = vadd.f32 %v1742, %v1808
      %v1903 = vadd.f32 %v1743, %v1810
      %v1904 = vadd.f32 %v1744, %v1812
      %v1905 = vadd.f32 %v1745, %v1814
      %v1906 = vadd.f32 %v1746, %v1816
      %v1907 = vadd.f32 %v1747, %v1818
      %v1908 = vadd.f32 %v1748, %v1820
      %v1909 = vadd.f32 %v1749, %v1822
      %v1910 = vadd.f32 %v1750, %v1824
      %v1911 = vadd.f32 %v1751, %v1826
      %v1912 = vadd.f32 %v1752, %v1828
      %v1913 = vadd.f32 %v1753, %v1830
      %v1914 = vadd.f32 %v1754, %v1832
      %v1915 = vadd.f32 %v1755, %v1834
      %v1916 = vadd.f32 %v1756, %v1836
      %v1917 = vadd.f32 %v1757, %v1838
      %v1918 = vadd.f32 %v1758, %v1840
      %v1919 = vadd.f32 %v1759, %v1842
      %v1920 = vadd.f32 %v1760, %v1844
      %v1921 = vadd.f32 %v1761, %v1846
      %v1922 = vadd.f32 %v1762, %v1848
      %v1923 = vadd.f32 %v1763, %v1850
      %v1924 = vadd.f32 %v1764, %v1852
      %v1925 = vadd.f32 %v1765, %v1854
      %v1926 = vadd.f32 %v1766, %v1856
      %v1927 = vadd.f32 %v1767, %v1858
      %v1928 = vadd.f32 %v1768, %v1860
      %v1929 = vadd.f32 %v1769, %v1862
      %v1930 = vadd.f32 %v1770, %v1864
      %v1931 = vadd.f32 %v1771, %v1866
      %v1932 = vadd.f32 %v1772, %v1868
      %v1933 = vld [vmem:[%s7] sm:$0x1]
      %v1934 = vld [vmem:[%s7 + $0x1] sm:$0x1]
      %v1935 = vld [vmem:[%s7 + $0x2] sm:$0x1]
      %1937 = vset.pattern.permute.xlu0 0
      %1938 = vperm.xlu0 %1937, %v1901
      %v1939 = vpop.permute.xlu0 %1938
      %1942 = vset.pattern.permute.xlu0 0
      %1943 = vperm.xlu0 %1942, %v1902
      %v1944 = vpop.permute.xlu0 %1943
      %1947 = vset.pattern.permute.xlu0 0
      %1948 = vperm.xlu0 %1947, %v1903
      %v1949 = vpop.permute.xlu0 %1948
      %1952 = vset.pattern.permute.xlu0 0
      %1953 = vperm.xlu0 %1952, %v1904
      %v1954 = vpop.permute.xlu0 %1953
      %1957 = vset.pattern.permute.xlu0 0
      %1958 = vperm.xlu0 %1957, %v1905
      %v1959 = vpop.permute.xlu0 %1958
      %1962 = vset.pattern.permute.xlu0 0
      %1963 = vperm.xlu0 %1962, %v1906
      %v1964 = vpop.permute.xlu0 %1963
      %1967 = vset.pattern.permute.xlu0 0
      %1968 = vperm.xlu0 %1967, %v1907
      %v1969 = vpop.permute.xlu0 %1968
      %1972 = vset.pattern.permute.xlu0 0
      %1973 = vperm.xlu0 %1972, %v1908
      %v1974 = vpop.permute.xlu0 %1973
      %1977 = vset.pattern.permute.xlu0 0
      %1978 = vperm.xlu0 %1977, %v1909
      %v1979 = vpop.permute.xlu0 %1978
      %1982 = vset.pattern.permute.xlu0 0
      %1983 = vperm.xlu0 %1982, %v1910
      %v1984 = vpop.permute.xlu0 %1983
      %1987 = vset.pattern.permute.xlu0 0
      %1988 = vperm.xlu0 %1987, %v1911
      %v1989 = vpop.permute.xlu0 %1988
      %1992 = vset.pattern.permute.xlu0 0
      %1993 = vperm.xlu0 %1992, %v1912
      %v1994 = vpop.permute.xlu0 %1993
      %1997 = vset.pattern.permute.xlu0 0
      %1998 = vperm.xlu0 %1997, %v1913
      %v1999 = vpop.permute.xlu0 %1998
      %2002 = vset.pattern.permute.xlu0 0
      %2003 = vperm.xlu0 %2002, %v1914
      %v2004 = vpop.permute.xlu0 %2003
      %2007 = vset.pattern.permute.xlu0 0
      %2008 = vperm.xlu0 %2007, %v1915
      %v2009 = vpop.permute.xlu0 %2008
      %2012 = vset.pattern.permute.xlu0 0
      %2013 = vperm.xlu0 %2012, %v1916
      %v2014 = vpop.permute.xlu0 %2013
      %2017 = vset.pattern.permute.xlu0 0
      %2018 = vperm.xlu0 %2017, %v1917
      %v2019 = vpop.permute.xlu0 %2018
      %2022 = vset.pattern.permute.xlu0 0
      %2023 = vperm.xlu0 %2022, %v1918
      %v2024 = vpop.permute.xlu0 %2023
      %2027 = vset.pattern.permute.xlu0 0
      %2028 = vperm.xlu0 %2027, %v1919
      %v2029 = vpop.permute.xlu0 %2028
      %2032 = vset.pattern.permute.xlu0 0
      %2033 = vperm.xlu0 %2032, %v1920
      %v2034 = vpop.permute.xlu0 %2033
      %2037 = vset.pattern.permute.xlu0 0
      %2038 = vperm.xlu0 %2037, %v1921
      %v2039 = vpop.permute.xlu0 %2038
      %2042 = vset.pattern.permute.xlu0 0
      %2043 = vperm.xlu0 %2042, %v1922
      %v2044 = vpop.permute.xlu0 %2043
      %2047 = vset.pattern.permute.xlu0 0
      %2048 = vperm.xlu0 %2047, %v1923
      %v2049 = vpop.permute.xlu0 %2048
      %2052 = vset.pattern.permute.xlu0 0
      %2053 = vperm.xlu0 %2052, %v1924
      %v2054 = vpop.permute.xlu0 %2053
      %2057 = vset.pattern.permute.xlu0 0
      %2058 = vperm.xlu0 %2057, %v1925
      %v2059 = vpop.permute.xlu0 %2058
      %2062 = vset.pattern.permute.xlu0 0
      %2063 = vperm.xlu0 %2062, %v1926
      %v2064 = vpop.permute.xlu0 %2063
      %2067 = vset.pattern.permute.xlu0 0
      %2068 = vperm.xlu0 %2067, %v1927
      %v2069 = vpop.permute.xlu0 %2068
      %2072 = vset.pattern.permute.xlu0 0
      %2073 = vperm.xlu0 %2072, %v1928
      %v2074 = vpop.permute.xlu0 %2073
      %2077 = vset.pattern.permute.xlu0 0
      %2078 = vperm.xlu0 %2077, %v1929
      %v2079 = vpop.permute.xlu0 %2078
      %2082 = vset.pattern.permute.xlu0 0
      %2083 = vperm.xlu0 %2082, %v1930
      %v2084 = vpop.permute.xlu0 %2083
      %2087 = vset.pattern.permute.xlu0 0
      %2088 = vperm.xlu0 %2087, %v1931
      %v2089 = vpop.permute.xlu0 %2088
      %2092 = vset.pattern.permute.xlu0 0
      %2093 = vperm.xlu0 %2092, %v1932
      %v2094 = vpop.permute.xlu0 %2093
      %v2096 = vlaneseq
      %v2097 = vshrl.u32 %v2096, 7
      %v2098 = vsub.s32 0, %v2097
      %v2099 = vrot.slane %v1933, %v2098
      %v2100 = vsub.f32 %v1939, %v2099
      %v2101 = vsub.f32 %v1944, %v2099
      %v2102 = vsub.f32 %v1949, %v2099
      %v2103 = vsub.f32 %v1954, %v2099
      %v2104 = vsub.f32 %v1959, %v2099
      %v2105 = vsub.f32 %v1964, %v2099
      %v2106 = vsub.f32 %v1969, %v2099
      %v2107 = vsub.f32 %v1974, %v2099
      %v2108 = vsub.f32 %v1979, %v2099
      %v2109 = vsub.f32 %v1984, %v2099
      %v2110 = vsub.f32 %v1989, %v2099
      %v2111 = vsub.f32 %v1994, %v2099
      %v2112 = vsub.f32 %v1999, %v2099
      %v2113 = vsub.f32 %v2004, %v2099
      %v2114 = vsub.f32 %v2009, %v2099
      %v2115 = vsub.f32 %v2014, %v2099
      %v2116 = vsub.f32 %v2019, %v2099
      %v2117 = vsub.f32 %v2024, %v2099
      %v2118 = vsub.f32 %v2029, %v2099
      %v2119 = vsub.f32 %v2034, %v2099
      %v2120 = vsub.f32 %v2039, %v2099
      %v2121 = vsub.f32 %v2044, %v2099
      %v2122 = vsub.f32 %v2049, %v2099
      %v2123 = vsub.f32 %v2054, %v2099
      %v2124 = vsub.f32 %v2059, %v2099
      %v2125 = vsub.f32 %v2064, %v2099
      %v2126 = vsub.f32 %v2069, %v2099
      %v2127 = vsub.f32 %v2074, %v2099
      %v2128 = vsub.f32 %v2079, %v2099
      %v2129 = vsub.f32 %v2084, %v2099
      %v2130 = vsub.f32 %v2089, %v2099
      %v2131 = vsub.f32 %v2094, %v2099
      %v2132 = vlaneseq
      %v2133 = vshrl.u32 %v2132, 7
      %v2134 = vsub.s32 0, %v2133
      %v2135 = vrot.slane %v1934, %v2134
      %v2136 = vmul.f32 %v2100, %v2135
      %v2137 = vmul.f32 %v2101, %v2135
      %v2138 = vmul.f32 %v2102, %v2135
      %v2139 = vmul.f32 %v2103, %v2135
      %v2140 = vmul.f32 %v2104, %v2135
      %v2141 = vmul.f32 %v2105, %v2135
      %v2142 = vmul.f32 %v2106, %v2135
      %v2143 = vmul.f32 %v2107, %v2135
      %v2144 = vmul.f32 %v2108, %v2135
      %v2145 = vmul.f32 %v2109, %v2135
      %v2146 = vmul.f32 %v2110, %v2135
      %v2147 = vmul.f32 %v2111, %v2135
      %v2148 = vmul.f32 %v2112, %v2135
      %v2149 = vmul.f32 %v2113, %v2135
      %v2150 = vmul.f32 %v2114, %v2135
      %v2151 = vmul.f32 %v2115, %v2135
      %v2152 = vmul.f32 %v2116, %v2135
      %v2153 = vmul.f32 %v2117, %v2135
      %v2154 = vmul.f32 %v2118, %v2135
      %v2155 = vmul.f32 %v2119, %v2135
      %v2156 = vmul.f32 %v2120, %v2135
      %v2157 = vmul.f32 %v2121, %v2135
      %v2158 = vmul.f32 %v2122, %v2135
      %v2159 = vmul.f32 %v2123, %v2135
      %v2160 = vmul.f32 %v2124, %v2135
      %v2161 = vmul.f32 %v2125, %v2135
      %v2162 = vmul.f32 %v2126, %v2135
      %v2163 = vmul.f32 %v2127, %v2135
      %v2164 = vmul.f32 %v2128, %v2135
      %v2165 = vmul.f32 %v2129, %v2135
      %v2166 = vmul.f32 %v2130, %v2135
      %v2167 = vmul.f32 %v2131, %v2135
      %v2168 = vmul.f32 %v2136, -0.5
      %v2169 = vmul.f32 %v2137, -0.5
      %v2170 = vmul.f32 %v2138, -0.5
      %v2171 = vmul.f32 %v2139, -0.5
      %v2172 = vmul.f32 %v2140, -0.5
      %v2173 = vmul.f32 %v2141, -0.5
      %v2174 = vmul.f32 %v2142, -0.5
      %v2175 = vmul.f32 %v2143, -0.5
      %v2176 = vmul.f32 %v2144, -0.5
      %v2177 = vmul.f32 %v2145, -0.5
      %v2178 = vmul.f32 %v2146, -0.5
      %v2179 = vmul.f32 %v2147, -0.5
      %v2180 = vmul.f32 %v2148, -0.5
      %v2181 = vmul.f32 %v2149, -0.5
      %v2182 = vmul.f32 %v2150, -0.5
      %v2183 = vmul.f32 %v2151, -0.5
      %v2184 = vmul.f32 %v2152, -0.5
      %v2185 = vmul.f32 %v2153, -0.5
      %v2186 = vmul.f32 %v2154, -0.5
      %v2187 = vmul.f32 %v2155, -0.5
      %v2188 = vmul.f32 %v2156, -0.5
      %v2189 = vmul.f32 %v2157, -0.5
      %v2190 = vmul.f32 %v2158, -0.5
      %v2191 = vmul.f32 %v2159, -0.5
      %v2192 = vmul.f32 %v2160, -0.5
      %v2193 = vmul.f32 %v2161, -0.5
      %v2194 = vmul.f32 %v2162, -0.5
      %v2195 = vmul.f32 %v2163, -0.5
      %v2196 = vmul.f32 %v2164, -0.5
      %v2197 = vmul.f32 %v2165, -0.5
      %v2198 = vmul.f32 %v2166, -0.5
      %v2199 = vmul.f32 %v2167, -0.5
      %v2200 = vmul.f32 %v2168, %v2136
      %v2201 = vmul.f32 %v2169, %v2137
      %v2202 = vmul.f32 %v2170, %v2138
      %v2203 = vmul.f32 %v2171, %v2139
      %v2204 = vmul.f32 %v2172, %v2140
      %v2205 = vmul.f32 %v2173, %v2141
      %v2206 = vmul.f32 %v2174, %v2142
      %v2207 = vmul.f32 %v2175, %v2143
      %v2208 = vmul.f32 %v2176, %v2144
      %v2209 = vmul.f32 %v2177, %v2145
      %v2210 = vmul.f32 %v2178, %v2146
      %v2211 = vmul.f32 %v2179, %v2147
      %v2212 = vmul.f32 %v2180, %v2148
      %v2213 = vmul.f32 %v2181, %v2149
      %v2214 = vmul.f32 %v2182, %v2150
      %v2215 = vmul.f32 %v2183, %v2151
      %v2216 = vmul.f32 %v2184, %v2152
      %v2217 = vmul.f32 %v2185, %v2153
      %v2218 = vmul.f32 %v2186, %v2154
      %v2219 = vmul.f32 %v2187, %v2155
      %v2220 = vmul.f32 %v2188, %v2156
      %v2221 = vmul.f32 %v2189, %v2157
      %v2222 = vmul.f32 %v2190, %v2158
      %v2223 = vmul.f32 %v2191, %v2159
      %v2224 = vmul.f32 %v2192, %v2160
      %v2225 = vmul.f32 %v2193, %v2161
      %v2226 = vmul.f32 %v2194, %v2162
      %v2227 = vmul.f32 %v2195, %v2163
      %v2228 = vmul.f32 %v2196, %v2164
      %v2229 = vmul.f32 %v2197, %v2165
      %v2230 = vmul.f32 %v2198, %v2166
      %v2231 = vmul.f32 %v2199, %v2167
      %v2232 = vmul.f32 %v2200, 1.442695
      %v2233 = vpow.pop %v2232
      %v2234 = vmul.f32 %v2201, 1.442695
      %v2235 = vpow.pop %v2234
      %v2236 = vmul.f32 %v2202, 1.442695
      %v2237 = vpow.pop %v2236
      %v2238 = vmul.f32 %v2203, 1.442695
      %v2239 = vpow.pop %v2238
      %v2240 = vmul.f32 %v2204, 1.442695
      %v2241 = vpow.pop %v2240
      %v2242 = vmul.f32 %v2205, 1.442695
      %v2243 = vpow.pop %v2242
      %v2244 = vmul.f32 %v2206, 1.442695
      %v2245 = vpow.pop %v2244
      %v2246 = vmul.f32 %v2207, 1.442695
      %v2247 = vpow.pop %v2246
      %v2248 = vmul.f32 %v2208, 1.442695
      %v2249 = vpow.pop %v2248
      %v2250 = vmul.f32 %v2209, 1.442695
      %v2251 = vpow.pop %v2250
      %v2252 = vmul.f32 %v2210, 1.442695
      %v2253 = vpow.pop %v2252
      %v2254 = vmul.f32 %v2211, 1.442695
      %v2255 = vpow.pop %v2254
      %v2256 = vmul.f32 %v2212, 1.442695
      %v2257 = vpow.pop %v2256
      %v2258 = vmul.f32 %v2213, 1.442695
      %v2259 = vpow.pop %v2258
      %v2260 = vmul.f32 %v2214, 1.442695
      %v2261 = vpow.pop %v2260
      %v2262 = vmul.f32 %v2215, 1.442695
      %v2263 = vpow.pop %v2262
      %v2264 = vmul.f32 %v2216, 1.442695
      %v2265 = vpow.pop %v2264
      %v2266 = vmul.f32 %v2217, 1.442695
      %v2267 = vpow.pop %v2266
      %v2268 = vmul.f32 %v2218, 1.442695
      %v2269 = vpow.pop %v2268
      %v2270 = vmul.f32 %v2219, 1.442695
      %v2271 = vpow.pop %v2270
      %v2272 = vmul.f32 %v2220, 1.442695
      %v2273 = vpow.pop %v2272
      %v2274 = vmul.f32 %v2221, 1.442695
      %v2275 = vpow.pop %v2274
      %v2276 = vmul.f32 %v2222, 1.442695
      %v2277 = vpow.pop %v2276
      %v2278 = vmul.f32 %v2223, 1.442695
      %v2279 = vpow.pop %v2278
      %v2280 = vmul.f32 %v2224, 1.442695
      %v2281 = vpow.pop %v2280
      %v2282 = vmul.f32 %v2225, 1.442695
      %v2283 = vpow.pop %v2282
      %v2284 = vmul.f32 %v2226, 1.442695
      %v2285 = vpow.pop %v2284
      %v2286 = vmul.f32 %v2227, 1.442695
      %v2287 = vpow.pop %v2286
      %v2288 = vmul.f32 %v2228, 1.442695
      %v2289 = vpow.pop %v2288
      %v2290 = vmul.f32 %v2229, 1.442695
      %v2291 = vpow.pop %v2290
      %v2292 = vmul.f32 %v2230, 1.442695
      %v2293 = vpow.pop %v2292
      %v2294 = vmul.f32 %v2231, 1.442695
      %v2295 = vpow.pop %v2294
      %v2296 = vlaneseq
      %v2297 = vshrl.u32 %v2296, 7
      %v2298 = vsub.s32 0, %v2297
      %v2299 = vrot.slane %v1935, %v2298
      %v2300 = vmul.f32 %v2233, %v2299
      %v2301 = vmul.f32 %v2235, %v2299
      %v2302 = vmul.f32 %v2237, %v2299
      %v2303 = vmul.f32 %v2239, %v2299
      %v2304 = vmul.f32 %v2241, %v2299
      %v2305 = vmul.f32 %v2243, %v2299
      %v2306 = vmul.f32 %v2245, %v2299
      %v2307 = vmul.f32 %v2247, %v2299
      %v2308 = vmul.f32 %v2249, %v2299
      %v2309 = vmul.f32 %v2251, %v2299
      %v2310 = vmul.f32 %v2253, %v2299
      %v2311 = vmul.f32 %v2255, %v2299
      %v2312 = vmul.f32 %v2257, %v2299
      %v2313 = vmul.f32 %v2259, %v2299
      %v2314 = vmul.f32 %v2261, %v2299
      %v2315 = vmul.f32 %v2263, %v2299
      %v2316 = vmul.f32 %v2265, %v2299
      %v2317 = vmul.f32 %v2267, %v2299
      %v2318 = vmul.f32 %v2269, %v2299
      %v2319 = vmul.f32 %v2271, %v2299
      %v2320 = vmul.f32 %v2273, %v2299
      %v2321 = vmul.f32 %v2275, %v2299
      %v2322 = vmul.f32 %v2277, %v2299
      %v2323 = vmul.f32 %v2279, %v2299
      %v2324 = vmul.f32 %v2281, %v2299
      %v2325 = vmul.f32 %v2283, %v2299
      %v2326 = vmul.f32 %v2285, %v2299
      %v2327 = vmul.f32 %v2287, %v2299
      %v2328 = vmul.f32 %v2289, %v2299
      %v2329 = vmul.f32 %v2291, %v2299
      %v2330 = vmul.f32 %v2293, %v2299
      %v2331 = vmul.f32 %v2295, %v2299
      %v2332 = vld [vmem:[%s8] sm:$0xff]
      %v2333 = vld [vmem:[%s8 + $0x8] sm:$0xff]
      %v2334 = vld [vmem:[%s8 + $0x10] sm:$0xff]
      %v2335 = vld [vmem:[%s8 + $0x18] sm:$0xff]
      %v2336 = vld [vmem:[%s9] sm:$0x1]
      %v2338 = vlaneseq
      %v2339 = vshrl.u32 %v2338, 7
      %v2340 = vsub.s32 0, %v2339
      %v2341 = vrot.slane %v2336, %v2340
      %vm2343 = vcmask 261120
      %v2345 = vsel %vm2343, %v2300, 0
      %v2348 = vsel %vm2343, %v2301, 0
      %v2351 = vsel %vm2343, %v2302, 0
      %v2354 = vsel %vm2343, %v2303, 0
      %v2357 = vsel %vm2343, %v2304, 0
      %v2360 = vsel %vm2343, %v2305, 0
      %v2363 = vsel %vm2343, %v2306, 0
      %v2366 = vsel %vm2343, %v2307, 0
      %v2369 = vsel %vm2343, %v2308, 0
      %v2372 = vsel %vm2343, %v2309, 0
      %v2375 = vsel %vm2343, %v2310, 0
      %v2378 = vsel %vm2343, %v2311, 0
      %v2381 = vsel %vm2343, %v2312, 0
      %v2384 = vsel %vm2343, %v2313, 0
      %v2387 = vsel %vm2343, %v2314, 0
      %v2390 = vsel %vm2343, %v2315, 0
      %v2393 = vsel %vm2343, %v2316, 0
      %v2396 = vsel %vm2343, %v2317, 0
      %v2399 = vsel %vm2343, %v2318, 0
      %v2402 = vsel %vm2343, %v2319, 0
      %v2405 = vsel %vm2343, %v2320, 0
      %v2408 = vsel %vm2343, %v2321, 0
      %v2411 = vsel %vm2343, %v2322, 0
      %v2414 = vsel %vm2343, %v2323, 0
      %v2417 = vsel %vm2343, %v2324, 0
      %v2420 = vsel %vm2343, %v2325, 0
      %v2423 = vsel %vm2343, %v2326, 0
      %v2426 = vsel %vm2343, %v2327, 0
      %v2429 = vsel %vm2343, %v2328, 0
      %v2432 = vsel %vm2343, %v2329, 0
      %v2435 = vsel %vm2343, %v2330, 0
      %v2438 = vsel %vm2343, %v2331, 0
      %2440 = vmatprep.subr.mxu0 0.0
      %2441 = vmatpush1.msra.mxu0 %v2332
      %2442 = vmatprep.subr.mxu0 0.0
      %2443 = vmatpush1.msra.mxu0 %v2333
      %2444 = vmatprep.subr.mxu0 0.0
      %2445 = vmatpush1.msra.mxu0 %v2334
      %2446 = vmatprep.subr.mxu0 0.0
      %2447 = vmatpush1.msra.mxu0 %v2335
      %2448 = vmatprep.subr.mxu0 0.0
      %2449 = vmatpush1.msra.mxu0 0.0
      %2450 = vmatprep.subr.mxu0 0.0
      %2451 = vmatpush1.msra.mxu0 0.0
      %2452 = vmatprep.subr.mxu0 0.0
      %2453 = vmatpush1.msra.mxu0 0.0
      %2454 = vmatprep.subr.mxu0 0.0
      %2455 = vmatpush1.msra.mxu0 0.0
      %2456 = vmatprep.subr.mxu0 0.0
      %2457 = vmatpush1.msra.mxu0 0.0
      %2458 = vmatprep.subr.mxu0 0.0
      %2459 = vmatpush1.msra.mxu0 0.0
      %2460 = vmatprep.subr.mxu0 0.0
      %2461 = vmatpush1.msra.mxu0 0.0
      %2462 = vmatprep.subr.mxu0 0.0
      %2463 = vmatpush1.msra.mxu0 0.0
      %2464 = vmatprep.subr.mxu0 0.0
      %2465 = vmatpush1.msra.mxu0 0.0
      %2466 = vmatprep.subr.mxu0 0.0
      %2467 = vmatpush1.msra.mxu0 0.0
      %2468 = vmatprep.subr.mxu0 0.0
      %2469 = vmatpush1.msra.mxu0 0.0
      %2470 = vmatprep.subr.mxu0 0.0
      %2471 = vmatpush1.msra.mxu0 0.0
      %2472 = vmatprep.subr.mxu0 0.0
      %2473 = vmatpush1.msra.mxu0 0.0
      %2474 = vmatprep.subr.mxu0 0.0
      %2475 = vmatpush1.msra.mxu0 0.0
      %2476 = vmatprep.subr.mxu0 0.0
      %2477 = vmatpush1.msra.mxu0 0.0
      %2478 = vmatprep.subr.mxu0 0.0
      %2479 = vmatpush1.msra.mxu0 0.0
      %2480 = vmatprep.subr.mxu0 0.0
      %2481 = vmatpush1.msra.mxu0 0.0
      %2482 = vmatprep.subr.mxu0 0.0
      %2483 = vmatpush1.msra.mxu0 0.0
      %2484 = vmatprep.subr.mxu0 0.0
      %2485 = vmatpush1.msra.mxu0 0.0
      %2486 = vmatprep.subr.mxu0 0.0
      %2487 = vmatpush1.msra.mxu0 0.0
      %2488 = vmatprep.subr.mxu0 0.0
      %2489 = vmatpush1.msra.mxu0 0.0
      %2490 = vmatprep.subr.mxu0 0.0
      %2491 = vmatpush1.msra.mxu0 0.0
      %2492 = vmatprep.subr.mxu0 0.0
      %2493 = vmatpush1.msra.mxu0 0.0
      %2494 = vmatprep.subr.mxu0 0.0
      %2495 = vmatpush1.msra.mxu0 0.0
      %2496 = vmatprep.subr.mxu0 0.0
      %2497 = vmatpush1.msra.mxu0 0.0
      %2498 = vmatprep.subr.mxu0 0.0
      %2499 = vmatpush1.msra.mxu0 0.0
      %2500 = vmatprep.subr.mxu0 0.0
      %2501 = vmatpush1.msra.mxu0 0.0
      %2502 = vmatprep.subr.mxu0 0.0
      %2503 = vmatpush1.msra.mxu0 0.0
      %2504 = vmatprep.mubr.f32.mxu0 0.0
      %2505 = vmatmul.mubr.f32.gmra.mrb[0].mxu0 %v2345
      %v2506 = vpop.f32.mrb[0].mxu0
      %v2507 = vadd.f32 %v2341, %v2506
      %v2508 = vpop.f32.mrb[0].mxu0
      %2509 = vmatprep.mubr.f32.mxu0 0.0
      %2510 = vmatmul.mubr.f32.gmra.mrb[0].mxu0 %v2348
      %v2511 = vpop.f32.mrb[0].mxu0
      %v2512 = vadd.f32 %v2341, %v2511
      %v2513 = vpop.f32.mrb[0].mxu0
      %2514 = vmatprep.mubr.f32.mxu0 0.0
      %2515 = vmatmul.mubr.f32.gmra.mrb[0].mxu0 %v2351
      %v2516 = vpop.f32.mrb[0].mxu0
      %v2517 = vadd.f32 %v2341, %v2516
      %v2518 = vpop.f32.mrb[0].mxu0
      %2519 = vmatprep.mubr.f32.mxu0 0.0
      %2520 = vmatmul.mubr.f32.gmra.mrb[0].mxu0 %v2354
      %v2521 = vpop.f32.mrb[0].mxu0
      %v2522 = vadd.f32 %v2341, %v2521
      %v2523 = vpop.f32.mrb[0].mxu0
      %2524 = vmatprep.mubr.f32.mxu0 0.0
      %2525 = vmatmul.mubr.f32.gmra.mrb[0].mxu0 %v2357
      %v2526 = vpop.f32.mrb[0].mxu0
      %v2527 = vadd.f32 %v2341, %v2526
      %v2528 = vpop.f32.mrb[0].mxu0
      %2529 = vmatprep.mubr.f32.mxu0 0.0
      %2530 = vmatmul.mubr.f32.gmra.mrb[0].mxu0 %v2360
      %v2531 = vpop.f32.mrb[0].mxu0
      %v2532 = vadd.f32 %v2341, %v2531
      %v2533 = vpop.f32.mrb[0].mxu0
      %2534 = vmatprep.mubr.f32.mxu0 0.0
      %2535 = vmatmul.mubr.f32.gmra.mrb[0].mxu0 %v2363
      %v2536 = vpop.f32.mrb[0].mxu0
      %v2537 = vadd.f32 %v2341, %v2536
      %v2538 = vpop.f32.mrb[0].mxu0
      %2539 = vmatprep.mubr.f32.mxu0 0.0
      %2540 = vmatmul.mubr.f32.gmra.mrb[0].mxu0 %v2366
      %v2541 = vpop.f32.mrb[0].mxu0
      %v2542 = vadd.f32 %v2341, %v2541
      %v2543 = vpop.f32.mrb[0].mxu0
      %2544 = vmatprep.mubr.f32.mxu0 0.0
      %2545 = vmatmul.mubr.f32.gmra.mrb[0].mxu0 %v2369
      %v2546 = vpop.f32.mrb[0].mxu0
      %v2547 = vadd.f32 %v2341, %v2546
      %v2548 = vpop.f32.mrb[0].mxu0
      %2549 = vmatprep.mubr.f32.mxu0 0.0
      %2550 = vmatmul.mubr.f32.gmra.mrb[0].mxu0 %v2372
      %v2551 = vpop.f32.mrb[0].mxu0
      %v2552 = vadd.f32 %v2341, %v2551
      %v2553 = vpop.f32.mrb[0].mxu0
      %2554 = vmatprep.mubr.f32.mxu0 0.0
      %2555 = vmatmul.mubr.f32.gmra.mrb[0].mxu0 %v2375
      %v2556 = vpop.f32.mrb[0].mxu0
      %v2557 = vadd.f32 %v2341, %v2556
      %v2558 = vpop.f32.mrb[0].mxu0
      %2559 = vmatprep.mubr.f32.mxu0 0.0
      %2560 = vmatmul.mubr.f32.gmra.mrb[0].mxu0 %v2378
      %v2561 = vpop.f32.mrb[0].mxu0
      %v2562 = vadd.f32 %v2341, %v2561
      %v2563 = vpop.f32.mrb[0].mxu0
      %2564 = vmatprep.mubr.f32.mxu0 0.0
      %2565 = vmatmul.mubr.f32.gmra.mrb[0].mxu0 %v2381
      %v2566 = vpop.f32.mrb[0].mxu0
      %v2567 = vadd.f32 %v2341, %v2566
      %v2568 = vpop.f32.mrb[0].mxu0
      %2569 = vmatprep.mubr.f32.mxu0 0.0
      %2570 = vmatmul.mubr.f32.gmra.mrb[0].mxu0 %v2384
      %v2571 = vpop.f32.mrb[0].mxu0
      %v2572 = vadd.f32 %v2341, %v2571
      %v2573 = vpop.f32.mrb[0].mxu0
      %2574 = vmatprep.mubr.f32.mxu0 0.0
      %2575 = vmatmul.mubr.f32.gmra.mrb[0].mxu0 %v2387
      %v2576 = vpop.f32.mrb[0].mxu0
      %v2577 = vadd.f32 %v2341, %v2576
      %v2578 = vpop.f32.mrb[0].mxu0
      %2579 = vmatprep.mubr.f32.mxu0 0.0
      %2580 = vmatmul.mubr.f32.gmra.mrb[0].mxu0 %v2390
      %v2581 = vpop.f32.mrb[0].mxu0
      %v2582 = vadd.f32 %v2341, %v2581
      %v2583 = vpop.f32.mrb[0].mxu0
      %2584 = vmatprep.mubr.f32.mxu0 0.0
      %2585 = vmatmul.mubr.f32.gmra.mrb[0].mxu0 %v2393
      %v2586 = vpop.f32.mrb[0].mxu0
      %v2587 = vadd.f32 %v2341, %v2586
      %v2588 = vpop.f32.mrb[0].mxu0
      %2589 = vmatprep.mubr.f32.mxu0 0.0
      %2590 = vmatmul.mubr.f32.gmra.mrb[0].mxu0 %v2396
      %v2591 = vpop.f32.mrb[0].mxu0
      %v2592 = vadd.f32 %v2341, %v2591
      %v2593 = vpop.f32.mrb[0].mxu0
      %2594 = vmatprep.mubr.f32.mxu0 0.0
      %2595 = vmatmul.mubr.f32.gmra.mrb[0].mxu0 %v2399
      %v2596 = vpop.f32.mrb[0].mxu0
      %v2597 = vadd.f32 %v2341, %v2596
      %v2598 = vpop.f32.mrb[0].mxu0
      %2599 = vmatprep.mubr.f32.mxu0 0.0
      %2600 = vmatmul.mubr.f32.gmra.mrb[0].mxu0 %v2402
      %v2601 = vpop.f32.mrb[0].mxu0
      %v2602 = vadd.f32 %v2341, %v2601
      %v2603 = vpop.f32.mrb[0].mxu0
      %2604 = vmatprep.mubr.f32.mxu0 0.0
      %2605 = vmatmul.mubr.f32.gmra.mrb[0].mxu0 %v2405
      %v2606 = vpop.f32.mrb[0].mxu0
      %v2607 = vadd.f32 %v2341, %v2606
      %v2608 = vpop.f32.mrb[0].mxu0
      %2609 = vmatprep.mubr.f32.mxu0 0.0
      %2610 = vmatmul.mubr.f32.gmra.mrb[0].mxu0 %v2408
      %v2611 = vpop.f32.mrb[0].mxu0
      %v2612 = vadd.f32 %v2341, %v2611
      %v2613 = vpop.f32.mrb[0].mxu0
      %2614 = vmatprep.mubr.f32.mxu0 0.0
      %2615 = vmatmul.mubr.f32.gmra.mrb[0].mxu0 %v2411
      %v2616 = vpop.f32.mrb[0].mxu0
      %v2617 = vadd.f32 %v2341, %v2616
      %v2618 = vpop.f32.mrb[0].mxu0
      %2619 = vmatprep.mubr.f32.mxu0 0.0
      %2620 = vmatmul.mubr.f32.gmra.mrb[0].mxu0 %v2414
      %v2621 = vpop.f32.mrb[0].mxu0
      %v2622 = vadd.f32 %v2341, %v2621
      %v2623 = vpop.f32.mrb[0].mxu0
      %2624 = vmatprep.mubr.f32.mxu0 0.0
      %2625 = vmatmul.mubr.f32.gmra.mrb[0].mxu0 %v2417
      %v2626 = vpop.f32.mrb[0].mxu0
      %v2627 = vadd.f32 %v2341, %v2626
      %v2628 = vpop.f32.mrb[0].mxu0
      %2629 = vmatprep.mubr.f32.mxu0 0.0
      %2630 = vmatmul.mubr.f32.gmra.mrb[0].mxu0 %v2420
      %v2631 = vpop.f32.mrb[0].mxu0
      %v2632 = vadd.f32 %v2341, %v2631
      %v2633 = vpop.f32.mrb[0].mxu0
      %2634 = vmatprep.mubr.f32.mxu0 0.0
      %2635 = vmatmul.mubr.f32.gmra.mrb[0].mxu0 %v2423
      %v2636 = vpop.f32.mrb[0].mxu0
      %v2637 = vadd.f32 %v2341, %v2636
      %v2638 = vpop.f32.mrb[0].mxu0
      %2639 = vmatprep.mubr.f32.mxu0 0.0
      %2640 = vmatmul.mubr.f32.gmra.mrb[0].mxu0 %v2426
      %v2641 = vpop.f32.mrb[0].mxu0
      %v2642 = vadd.f32 %v2341, %v2641
      %v2643 = vpop.f32.mrb[0].mxu0
      %2644 = vmatprep.mubr.f32.mxu0 0.0
      %2645 = vmatmul.mubr.f32.gmra.mrb[0].mxu0 %v2429
      %v2646 = vpop.f32.mrb[0].mxu0
      %v2647 = vadd.f32 %v2341, %v2646
      %v2648 = vpop.f32.mrb[0].mxu0
      %2649 = vmatprep.mubr.f32.mxu0 0.0
      %2650 = vmatmul.mubr.f32.gmra.mrb[0].mxu0 %v2432
      %v2651 = vpop.f32.mrb[0].mxu0
      %v2652 = vadd.f32 %v2341, %v2651
      %v2653 = vpop.f32.mrb[0].mxu0
      %2654 = vmatprep.mubr.f32.mxu0 0.0
      %2655 = vmatmul.mubr.f32.gmra.mrb[0].mxu0 %v2435
      %v2656 = vpop.f32.mrb[0].mxu0
      %v2657 = vadd.f32 %v2341, %v2656
      %v2658 = vpop.f32.mrb[0].mxu0
      %2659 = vmatprep.mubr.f32.mxu0 0.0
      %2660 = vmatmul.mubr.f32.gmra.mrb[0].mxu0 %v2438
      %v2661 = vpop.f32.mrb[0].mxu0
      %v2662 = vadd.f32 %v2341, %v2661
      %v2663 = vpop.f32.mrb[0].mxu0
      %2664 = vdwg.mxu0
      %v2665 = vmul.f32 %v2507, 0.5
      %v2666 = vmul.f32 %v2512, 0.5
      %v2667 = vmul.f32 %v2517, 0.5
      %v2668 = vmul.f32 %v2522, 0.5
      %v2669 = vmul.f32 %v2527, 0.5
      %v2670 = vmul.f32 %v2532, 0.5
      %v2671 = vmul.f32 %v2537, 0.5
      %v2672 = vmul.f32 %v2542, 0.5
      %v2673 = vmul.f32 %v2547, 0.5
      %v2674 = vmul.f32 %v2552, 0.5
      %v2675 = vmul.f32 %v2557, 0.5
      %v2676 = vmul.f32 %v2562, 0.5
      %v2677 = vmul.f32 %v2567, 0.5
      %v2678 = vmul.f32 %v2572, 0.5
      %v2679 = vmul.f32 %v2577, 0.5
      %v2680 = vmul.f32 %v2582, 0.5
      %v2681 = vmul.f32 %v2587, 0.5
      %v2682 = vmul.f32 %v2592, 0.5
      %v2683 = vmul.f32 %v2597, 0.5
      %v2684 = vmul.f32 %v2602, 0.5
      %v2685 = vmul.f32 %v2607, 0.5
      %v2686 = vmul.f32 %v2612, 0.5
      %v2687 = vmul.f32 %v2617, 0.5
      %v2688 = vmul.f32 %v2622, 0.5
      %v2689 = vmul.f32 %v2627, 0.5
      %v2690 = vmul.f32 %v2632, 0.5
      %v2691 = vmul.f32 %v2637, 0.5
      %v2692 = vmul.f32 %v2642, 0.5
      %v2693 = vmul.f32 %v2647, 0.5
      %v2694 = vmul.f32 %v2652, 0.5
      %v2695 = vmul.f32 %v2657, 0.5
      %v2696 = vmul.f32 %v2662, 0.5
      %v2697 = vmul.f32 %v2507, 0.70710677
      %v2698 = vmul.f32 %v2512, 0.70710677
      %v2699 = vmul.f32 %v2517, 0.70710677
      %v2700 = vmul.f32 %v2522, 0.70710677
      %v2701 = vmul.f32 %v2527, 0.70710677
      %v2702 = vmul.f32 %v2532, 0.70710677
      %v2703 = vmul.f32 %v2537, 0.70710677
      %v2704 = vmul.f32 %v2542, 0.70710677
      %v2705 = vmul.f32 %v2547, 0.70710677
      %v2706 = vmul.f32 %v2552, 0.70710677
      %v2707 = vmul.f32 %v2557, 0.70710677
      %v2708 = vmul.f32 %v2562, 0.70710677
      %v2709 = vmul.f32 %v2567, 0.70710677
      %v2710 = vmul.f32 %v2572, 0.70710677
      %v2711 = vmul.f32 %v2577, 0.70710677
      %v2712 = vmul.f32 %v2582, 0.70710677
      %v2713 = vmul.f32 %v2587, 0.70710677
      %v2714 = vmul.f32 %v2592, 0.70710677
      %v2715 = vmul.f32 %v2597, 0.70710677
      %v2716 = vmul.f32 %v2602, 0.70710677
      %v2717 = vmul.f32 %v2607, 0.70710677
      %v2718 = vmul.f32 %v2612, 0.70710677
      %v2719 = vmul.f32 %v2617, 0.70710677
      %v2720 = vmul.f32 %v2622, 0.70710677
      %v2721 = vmul.f32 %v2627, 0.70710677
      %v2722 = vmul.f32 %v2632, 0.70710677
      %v2723 = vmul.f32 %v2637, 0.70710677
      %v2724 = vmul.f32 %v2642, 0.70710677
      %v2725 = vmul.f32 %v2647, 0.70710677
      %v2726 = vmul.f32 %v2652, 0.70710677
      %v2727 = vmul.f32 %v2657, 0.70710677
      %v2728 = vmul.f32 %v2662, 0.70710677
      %v2729 = vand.u32 2147483647, %v2697
      %v2730 = vand.u32 2147483647, %v2698
      %v2731 = vand.u32 2147483647, %v2699
      %v2732 = vand.u32 2147483647, %v2700
      %v2733 = vand.u32 2147483647, %v2701
      %v2734 = vand.u32 2147483647, %v2702
      %v2735 = vand.u32 2147483647, %v2703
      %v2736 = vand.u32 2147483647, %v2704
      %v2737 = vand.u32 2147483647, %v2705
      %v2738 = vand.u32 2147483647, %v2706
      %v2739 = vand.u32 2147483647, %v2707
      %v2740 = vand.u32 2147483647, %v2708
      %v2741 = vand.u32 2147483647, %v2709
      %v2742 = vand.u32 2147483647, %v2710
      %v2743 = vand.u32 2147483647, %v2711
      %v2744 = vand.u32 2147483647, %v2712
      %v2745 = vand.u32 2147483647, %v2713
      %v2746 = vand.u32 2147483647, %v2714
      %v2747 = vand.u32 2147483647, %v2715
      %v2748 = vand.u32 2147483647, %v2716
      %v2749 = vand.u32 2147483647, %v2717
      %v2750 = vand.u32 2147483647, %v2718
      %v2751 = vand.u32 2147483647, %v2719
      %v2752 = vand.u32 2147483647, %v2720
      %v2753 = vand.u32 2147483647, %v2721
      %v2754 = vand.u32 2147483647, %v2722
      %v2755 = vand.u32 2147483647, %v2723
      %v2756 = vand.u32 2147483647, %v2724
      %v2757 = vand.u32 2147483647, %v2725
      %v2758 = vand.u32 2147483647, %v2726
      %v2759 = vand.u32 2147483647, %v2727
      %v2760 = vand.u32 2147483647, %v2728
      %v2761 = vmul.f32 %v2729, 0.3275911
      %v2762 = vmul.f32 %v2730, 0.3275911
      %v2763 = vmul.f32 %v2731, 0.3275911
      %v2764 = vmul.f32 %v2732, 0.3275911
      %v2765 = vmul.f32 %v2733, 0.3275911
      %v2766 = vmul.f32 %v2734, 0.3275911
      %v2767 = vmul.f32 %v2735, 0.3275911
      %v2768 = vmul.f32 %v2736, 0.3275911
      %v2769 = vmul.f32 %v2737, 0.3275911
      %v2770 = vmul.f32 %v2738, 0.3275911
      %v2771 = vmul.f32 %v2739, 0.3275911
      %v2772 = vmul.f32 %v2740, 0.3275911
      %v2773 = vmul.f32 %v2741, 0.3275911
      %v2774 = vmul.f32 %v2742, 0.3275911
      %v2775 = vmul.f32 %v2743, 0.3275911
      %v2776 = vmul.f32 %v2744, 0.3275911
      %v2777 = vmul.f32 %v2745, 0.3275911
      %v2778 = vmul.f32 %v2746, 0.3275911
      %v2779 = vmul.f32 %v2747, 0.3275911
      %v2780 = vmul.f32 %v2748, 0.3275911
      %v2781 = vmul.f32 %v2749, 0.3275911
      %v2782 = vmul.f32 %v2750, 0.3275911
      %v2783 = vmul.f32 %v2751, 0.3275911
      %v2784 = vmul.f32 %v2752, 0.3275911
      %v2785 = vmul.f32 %v2753, 0.3275911
      %v2786 = vmul.f32 %v2754, 0.3275911
      %v2787 = vmul.f32 %v2755, 0.3275911
      %v2788 = vmul.f32 %v2756, 0.3275911
      %v2789 = vmul.f32 %v2757, 0.3275911
      %v2790 = vmul.f32 %v2758, 0.3275911
      %v2791 = vmul.f32 %v2759, 0.3275911
      %v2792 = vmul.f32 %v2760, 0.3275911
      %v2793 = vadd.f32 %v2761, 1.0
      %v2794 = vadd.f32 %v2762, 1.0
      %v2795 = vadd.f32 %v2763, 1.0
      %v2796 = vadd.f32 %v2764, 1.0
      %v2797 = vadd.f32 %v2765, 1.0
      %v2798 = vadd.f32 %v2766, 1.0
      %v2799 = vadd.f32 %v2767, 1.0
      %v2800 = vadd.f32 %v2768, 1.0
      %v2801 = vadd.f32 %v2769, 1.0
      %v2802 = vadd.f32 %v2770, 1.0
      %v2803 = vadd.f32 %v2771, 1.0
      %v2804 = vadd.f32 %v2772, 1.0
      %v2805 = vadd.f32 %v2773, 1.0
      %v2806 = vadd.f32 %v2774, 1.0
      %v2807 = vadd.f32 %v2775, 1.0
      %v2808 = vadd.f32 %v2776, 1.0
      %v2809 = vadd.f32 %v2777, 1.0
      %v2810 = vadd.f32 %v2778, 1.0
      %v2811 = vadd.f32 %v2779, 1.0
      %v2812 = vadd.f32 %v2780, 1.0
      %v2813 = vadd.f32 %v2781, 1.0
      %v2814 = vadd.f32 %v2782, 1.0
      %v2815 = vadd.f32 %v2783, 1.0
      %v2816 = vadd.f32 %v2784, 1.0
      %v2817 = vadd.f32 %v2785, 1.0
      %v2818 = vadd.f32 %v2786, 1.0
      %v2819 = vadd.f32 %v2787, 1.0
      %v2820 = vadd.f32 %v2788, 1.0
      %v2821 = vadd.f32 %v2789, 1.0
      %v2822 = vadd.f32 %v2790, 1.0
      %v2823 = vadd.f32 %v2791, 1.0
      %v2824 = vadd.f32 %v2792, 1.0
      %v2825 = vrcp.pop %v2793
      %v2826 = vmul.f32 1.0, %v2825
      %v2827 = vrcp.pop %v2794
      %v2828 = vmul.f32 1.0, %v2827
      %v2829 = vrcp.pop %v2795
      %v2830 = vmul.f32 1.0, %v2829
      %v2831 = vrcp.pop %v2796
      %v2832 = vmul.f32 1.0, %v2831
      %v2833 = vrcp.pop %v2797
      %v2834 = vmul.f32 1.0, %v2833
      %v2835 = vrcp.pop %v2798
      %v2836 = vmul.f32 1.0, %v2835
      %v2837 = vrcp.pop %v2799
      %v2838 = vmul.f32 1.0, %v2837
      %v2839 = vrcp.pop %v2800
      %v2840 = vmul.f32 1.0, %v2839
      %v2841 = vrcp.pop %v2801
      %v2842 = vmul.f32 1.0, %v2841
      %v2843 = vrcp.pop %v2802
      %v2844 = vmul.f32 1.0, %v2843
      %v2845 = vrcp.pop %v2803
      %v2846 = vmul.f32 1.0, %v2845
      %v2847 = vrcp.pop %v2804
      %v2848 = vmul.f32 1.0, %v2847
      %v2849 = vrcp.pop %v2805
      %v2850 = vmul.f32 1.0, %v2849
      %v2851 = vrcp.pop %v2806
      %v2852 = vmul.f32 1.0, %v2851
      %v2853 = vrcp.pop %v2807
      %v2854 = vmul.f32 1.0, %v2853
      %v2855 = vrcp.pop %v2808
      %v2856 = vmul.f32 1.0, %v2855
      %v2857 = vrcp.pop %v2809
      %v2858 = vmul.f32 1.0, %v2857
      %v2859 = vrcp.pop %v2810
      %v2860 = vmul.f32 1.0, %v2859
      %v2861 = vrcp.pop %v2811
      %v2862 = vmul.f32 1.0, %v2861
      %v2863 = vrcp.pop %v2812
      %v2864 = vmul.f32 1.0, %v2863
      %v2865 = vrcp.pop %v2813
      %v2866 = vmul.f32 1.0, %v2865
      %v2867 = vrcp.pop %v2814
      %v2868 = vmul.f32 1.0, %v2867
      %v2869 = vrcp.pop %v2815
      %v2870 = vmul.f32 1.0, %v2869
      %v2871 = vrcp.pop %v2816
      %v2872 = vmul.f32 1.0, %v2871
      %v2873 = vrcp.pop %v2817
      %v2874 = vmul.f32 1.0, %v2873
      %v2875 = vrcp.pop %v2818
      %v2876 = vmul.f32 1.0, %v2875
      %v2877 = vrcp.pop %v2819
      %v2878 = vmul.f32 1.0, %v2877
      %v2879 = vrcp.pop %v2820
      %v2880 = vmul.f32 1.0, %v2879
      %v2881 = vrcp.pop %v2821
      %v2882 = vmul.f32 1.0, %v2881
      %v2883 = vrcp.pop %v2822
      %v2884 = vmul.f32 1.0, %v2883
      %v2885 = vrcp.pop %v2823
      %v2886 = vmul.f32 1.0, %v2885
      %v2887 = vrcp.pop %v2824
      %v2888 = vmul.f32 1.0, %v2887
      %v2889 = vmul.f32 %v2826, 1.0614054
      %v2890 = vmul.f32 %v2828, 1.0614054
      %v2891 = vmul.f32 %v2830, 1.0614054
      %v2892 = vmul.f32 %v2832, 1.0614054
      %v2893 = vmul.f32 %v2834, 1.0614054
      %v2894 = vmul.f32 %v2836, 1.0614054
      %v2895 = vmul.f32 %v2838, 1.0614054
      %v2896 = vmul.f32 %v2840, 1.0614054
      %v2897 = vmul.f32 %v2842, 1.0614054
      %v2898 = vmul.f32 %v2844, 1.0614054
      %v2899 = vmul.f32 %v2846, 1.0614054
      %v2900 = vmul.f32 %v2848, 1.0614054
      %v2901 = vmul.f32 %v2850, 1.0614054
      %v2902 = vmul.f32 %v2852, 1.0614054
      %v2903 = vmul.f32 %v2854, 1.0614054
      %v2904 = vmul.f32 %v2856, 1.0614054
      %v2905 = vmul.f32 %v2858, 1.0614054
      %v2906 = vmul.f32 %v2860, 1.0614054
      %v2907 = vmul.f32 %v2862, 1.0614054
      %v2908 = vmul.f32 %v2864, 1.0614054
      %v2909 = vmul.f32 %v2866, 1.0614054
      %v2910 = vmul.f32 %v2868, 1.0614054
      %v2911 = vmul.f32 %v2870, 1.0614054
      %v2912 = vmul.f32 %v2872, 1.0614054
      %v2913 = vmul.f32 %v2874, 1.0614054
      %v2914 = vmul.f32 %v2876, 1.0614054
      %v2915 = vmul.f32 %v2878, 1.0614054
      %v2916 = vmul.f32 %v2880, 1.0614054
      %v2917 = vmul.f32 %v2882, 1.0614054
      %v2918 = vmul.f32 %v2884, 1.0614054
      %v2919 = vmul.f32 %v2886, 1.0614054
      %v2920 = vmul.f32 %v2888, 1.0614054
      %v2921 = vadd.f32 %v2889, -1.4531521
      %v2922 = vadd.f32 %v2890, -1.4531521
      %v2923 = vadd.f32 %v2891, -1.4531521
      %v2924 = vadd.f32 %v2892, -1.4531521
      %v2925 = vadd.f32 %v2893, -1.4531521
      %v2926 = vadd.f32 %v2894, -1.4531521
      %v2927 = vadd.f32 %v2895, -1.4531521
      %v2928 = vadd.f32 %v2896, -1.4531521
      %v2929 = vadd.f32 %v2897, -1.4531521
      %v2930 = vadd.f32 %v2898, -1.4531521
      %v2931 = vadd.f32 %v2899, -1.4531521
      %v2932 = vadd.f32 %v2900, -1.4531521
      %v2933 = vadd.f32 %v2901, -1.4531521
      %v2934 = vadd.f32 %v2902, -1.4531521
      %v2935 = vadd.f32 %v2903, -1.4531521
      %v2936 = vadd.f32 %v2904, -1.4531521
      %v2937 = vadd.f32 %v2905, -1.4531521
      %v2938 = vadd.f32 %v2906, -1.4531521
      %v2939 = vadd.f32 %v2907, -1.4531521
      %v2940 = vadd.f32 %v2908, -1.4531521
      %v2941 = vadd.f32 %v2909, -1.4531521
      %v2942 = vadd.f32 %v2910, -1.4531521
      %v2943 = vadd.f32 %v2911, -1.4531521
      %v2944 = vadd.f32 %v2912, -1.4531521
      %v2945 = vadd.f32 %v2913, -1.4531521
      %v2946 = vadd.f32 %v2914, -1.4531521
      %v2947 = vadd.f32 %v2915, -1.4531521
      %v2948 = vadd.f32 %v2916, -1.4531521
      %v2949 = vadd.f32 %v2917, -1.4531521
      %v2950 = vadd.f32 %v2918, -1.4531521
      %v2951 = vadd.f32 %v2919, -1.4531521
      %v2952 = vadd.f32 %v2920, -1.4531521
      %v2953 = vmul.f32 %v2826, %v2921
      %v2954 = vmul.f32 %v2828, %v2922
      %v2955 = vmul.f32 %v2830, %v2923
      %v2956 = vmul.f32 %v2832, %v2924
      %v2957 = vmul.f32 %v2834, %v2925
      %v2958 = vmul.f32 %v2836, %v2926
      %v2959 = vmul.f32 %v2838, %v2927
      %v2960 = vmul.f32 %v2840, %v2928
      %v2961 = vmul.f32 %v2842, %v2929
      %v2962 = vmul.f32 %v2844, %v2930
      %v2963 = vmul.f32 %v2846, %v2931
      %v2964 = vmul.f32 %v2848, %v2932
      %v2965 = vmul.f32 %v2850, %v2933
      %v2966 = vmul.f32 %v2852, %v2934
      %v2967 = vmul.f32 %v2854, %v2935
      %v2968 = vmul.f32 %v2856, %v2936
      %v2969 = vmul.f32 %v2858, %v2937
      %v2970 = vmul.f32 %v2860, %v2938
      %v2971 = vmul.f32 %v2862, %v2939
      %v2972 = vmul.f32 %v2864, %v2940
      %v2973 = vmul.f32 %v2866, %v2941
      %v2974 = vmul.f32 %v2868, %v2942
      %v2975 = vmul.f32 %v2870, %v2943
      %v2976 = vmul.f32 %v2872, %v2944
      %v2977 = vmul.f32 %v2874, %v2945
      %v2978 = vmul.f32 %v2876, %v2946
      %v2979 = vmul.f32 %v2878, %v2947
      %v2980 = vmul.f32 %v2880, %v2948
      %v2981 = vmul.f32 %v2882, %v2949
      %v2982 = vmul.f32 %v2884, %v2950
      %v2983 = vmul.f32 %v2886, %v2951
      %v2984 = vmul.f32 %v2888, %v2952
      %v2985 = vadd.f32 %v2953, 1.4214138
      %v2986 = vadd.f32 %v2954, 1.4214138
      %v2987 = vadd.f32 %v2955, 1.4214138
      %v2988 = vadd.f32 %v2956, 1.4214138
      %v2989 = vadd.f32 %v2957, 1.4214138
      %v2990 = vadd.f32 %v2958, 1.4214138
      %v2991 = vadd.f32 %v2959, 1.4214138
      %v2992 = vadd.f32 %v2960, 1.4214138
      %v2993 = vadd.f32 %v2961, 1.4214138
      %v2994 = vadd.f32 %v2962, 1.4214138
      %v2995 = vadd.f32 %v2963, 1.4214138
      %v2996 = vadd.f32 %v2964, 1.4214138
      %v2997 = vadd.f32 %v2965, 1.4214138
      %v2998 = vadd.f32 %v2966, 1.4214138
      %v2999 = vadd.f32 %v2967, 1.4214138
      %v3000 = vadd.f32 %v2968, 1.4214138
      %v3001 = vadd.f32 %v2969, 1.4214138
      %v3002 = vadd.f32 %v2970, 1.4214138
      %v3003 = vadd.f32 %v2971, 1.4214138
      %v3004 = vadd.f32 %v2972, 1.4214138
      %v3005 = vadd.f32 %v2973, 1.4214138
      %v3006 = vadd.f32 %v2974, 1.4214138
      %v3007 = vadd.f32 %v2975, 1.4214138
      %v3008 = vadd.f32 %v2976, 1.4214138
      %v3009 = vadd.f32 %v2977, 1.4214138
      %v3010 = vadd.f32 %v2978, 1.4214138
      %v3011 = vadd.f32 %v2979, 1.4214138
      %v3012 = vadd.f32 %v2980, 1.4214138
      %v3013 = vadd.f32 %v2981, 1.4214138
      %v3014 = vadd.f32 %v2982, 1.4214138
      %v3015 = vadd.f32 %v2983, 1.4214138
      %v3016 = vadd.f32 %v2984, 1.4214138
      %v3017 = vmul.f32 %v2826, %v2985
      %v3018 = vmul.f32 %v2828, %v2986
      %v3019 = vmul.f32 %v2830, %v2987
      %v3020 = vmul.f32 %v2832, %v2988
      %v3021 = vmul.f32 %v2834, %v2989
      %v3022 = vmul.f32 %v2836, %v2990
      %v3023 = vmul.f32 %v2838, %v2991
      %v3024 = vmul.f32 %v2840, %v2992
      %v3025 = vmul.f32 %v2842, %v2993
      %v3026 = vmul.f32 %v2844, %v2994
      %v3027 = vmul.f32 %v2846, %v2995
      %v3028 = vmul.f32 %v2848, %v2996
      %v3029 = vmul.f32 %v2850, %v2997
      %v3030 = vmul.f32 %v2852, %v2998
      %v3031 = vmul.f32 %v2854, %v2999
      %v3032 = vmul.f32 %v2856, %v3000
      %v3033 = vmul.f32 %v2858, %v3001
      %v3034 = vmul.f32 %v2860, %v3002
      %v3035 = vmul.f32 %v2862, %v3003
      %v3036 = vmul.f32 %v2864, %v3004
      %v3037 = vmul.f32 %v2866, %v3005
      %v3038 = vmul.f32 %v2868, %v3006
      %v3039 = vmul.f32 %v2870, %v3007
      %v3040 = vmul.f32 %v2872, %v3008
      %v3041 = vmul.f32 %v2874, %v3009
      %v3042 = vmul.f32 %v2876, %v3010
      %v3043 = vmul.f32 %v2878, %v3011
      %v3044 = vmul.f32 %v2880, %v3012
      %v3045 = vmul.f32 %v2882, %v3013
      %v3046 = vmul.f32 %v2884, %v3014
      %v3047 = vmul.f32 %v2886, %v3015
      %v3048 = vmul.f32 %v2888, %v3016
      %v3049 = vadd.f32 %v3017, -0.28449672
      %v3050 = vadd.f32 %v3018, -0.28449672
      %v3051 = vadd.f32 %v3019, -0.28449672
      %v3052 = vadd.f32 %v3020, -0.28449672
      %v3053 = vadd.f32 %v3021, -0.28449672
      %v3054 = vadd.f32 %v3022, -0.28449672
      %v3055 = vadd.f32 %v3023, -0.28449672
      %v3056 = vadd.f32 %v3024, -0.28449672
      %v3057 = vadd.f32 %v3025, -0.28449672
      %v3058 = vadd.f32 %v3026, -0.28449672
      %v3059 = vadd.f32 %v3027, -0.28449672
      %v3060 = vadd.f32 %v3028, -0.28449672
      %v3061 = vadd.f32 %v3029, -0.28449672
      %v3062 = vadd.f32 %v3030, -0.28449672
      %v3063 = vadd.f32 %v3031, -0.28449672
      %v3064 = vadd.f32 %v3032, -0.28449672
      %v3065 = vadd.f32 %v3033, -0.28449672
      %v3066 = vadd.f32 %v3034, -0.28449672
      %v3067 = vadd.f32 %v3035, -0.28449672
      %v3068 = vadd.f32 %v3036, -0.28449672
      %v3069 = vadd.f32 %v3037, -0.28449672
      %v3070 = vadd.f32 %v3038, -0.28449672
      %v3071 = vadd.f32 %v3039, -0.28449672
      %v3072 = vadd.f32 %v3040, -0.28449672
      %v3073 = vadd.f32 %v3041, -0.28449672
      %v3074 = vadd.f32 %v3042, -0.28449672
      %v3075 = vadd.f32 %v3043, -0.28449672
      %v3076 = vadd.f32 %v3044, -0.28449672
      %v3077 = vadd.f32 %v3045, -0.28449672
      %v3078 = vadd.f32 %v3046, -0.28449672
      %v3079 = vadd.f32 %v3047, -0.28449672
      %v3080 = vadd.f32 %v3048, -0.28449672
      %v3081 = vmul.f32 %v2826, %v3049
      %v3082 = vmul.f32 %v2828, %v3050
      %v3083 = vmul.f32 %v2830, %v3051
      %v3084 = vmul.f32 %v2832, %v3052
      %v3085 = vmul.f32 %v2834, %v3053
      %v3086 = vmul.f32 %v2836, %v3054
      %v3087 = vmul.f32 %v2838, %v3055
      %v3088 = vmul.f32 %v2840, %v3056
      %v3089 = vmul.f32 %v2842, %v3057
      %v3090 = vmul.f32 %v2844, %v3058
      %v3091 = vmul.f32 %v2846, %v3059
      %v3092 = vmul.f32 %v2848, %v3060
      %v3093 = vmul.f32 %v2850, %v3061
      %v3094 = vmul.f32 %v2852, %v3062
      %v3095 = vmul.f32 %v2854, %v3063
      %v3096 = vmul.f32 %v2856, %v3064
      %v3097 = vmul.f32 %v2858, %v3065
      %v3098 = vmul.f32 %v2860, %v3066
      %v3099 = vmul.f32 %v2862, %v3067
      %v3100 = vmul.f32 %v2864, %v3068
      %v3101 = vmul.f32 %v2866, %v3069
      %v3102 = vmul.f32 %v2868, %v3070
      %v3103 = vmul.f32 %v2870, %v3071
      %v3104 = vmul.f32 %v2872, %v3072
      %v3105 = vmul.f32 %v2874, %v3073
      %v3106 = vmul.f32 %v2876, %v3074
      %v3107 = vmul.f32 %v2878, %v3075
      %v3108 = vmul.f32 %v2880, %v3076
      %v3109 = vmul.f32 %v2882, %v3077
      %v3110 = vmul.f32 %v2884, %v3078
      %v3111 = vmul.f32 %v2886, %v3079
      %v3112 = vmul.f32 %v2888, %v3080
      %v3113 = vadd.f32 %v3081, 0.2548296
      %v3114 = vadd.f32 %v3082, 0.2548296
      %v3115 = vadd.f32 %v3083, 0.2548296
      %v3116 = vadd.f32 %v3084, 0.2548296
      %v3117 = vadd.f32 %v3085, 0.2548296
      %v3118 = vadd.f32 %v3086, 0.2548296
      %v3119 = vadd.f32 %v3087, 0.2548296
      %v3120 = vadd.f32 %v3088, 0.2548296
      %v3121 = vadd.f32 %v3089, 0.2548296
      %v3122 = vadd.f32 %v3090, 0.2548296
      %v3123 = vadd.f32 %v3091, 0.2548296
      %v3124 = vadd.f32 %v3092, 0.2548296
      %v3125 = vadd.f32 %v3093, 0.2548296
      %v3126 = vadd.f32 %v3094, 0.2548296
      %v3127 = vadd.f32 %v3095, 0.2548296
      %v3128 = vadd.f32 %v3096, 0.2548296
      %v3129 = vadd.f32 %v3097, 0.2548296
      %v3130 = vadd.f32 %v3098, 0.2548296
      %v3131 = vadd.f32 %v3099, 0.2548296
      %v3132 = vadd.f32 %v3100, 0.2548296
      %v3133 = vadd.f32 %v3101, 0.2548296
      %v3134 = vadd.f32 %v3102, 0.2548296
      %v3135 = vadd.f32 %v3103, 0.2548296
      %v3136 = vadd.f32 %v3104, 0.2548296
      %v3137 = vadd.f32 %v3105, 0.2548296
      %v3138 = vadd.f32 %v3106, 0.2548296
      %v3139 = vadd.f32 %v3107, 0.2548296
      %v3140 = vadd.f32 %v3108, 0.2548296
      %v3141 = vadd.f32 %v3109, 0.2548296
      %v3142 = vadd.f32 %v3110, 0.2548296
      %v3143 = vadd.f32 %v3111, 0.2548296
      %v3144 = vadd.f32 %v3112, 0.2548296
      %v3145 = vmul.f32 %v2826, %v3113
      %v3146 = vmul.f32 %v2828, %v3114
      %v3147 = vmul.f32 %v2830, %v3115
      %v3148 = vmul.f32 %v2832, %v3116
      %v3149 = vmul.f32 %v2834, %v3117
      %v3150 = vmul.f32 %v2836, %v3118
      %v3151 = vmul.f32 %v2838, %v3119
      %v3152 = vmul.f32 %v2840, %v3120
      %v3153 = vmul.f32 %v2842, %v3121
      %v3154 = vmul.f32 %v2844, %v3122
      %v3155 = vmul.f32 %v2846, %v3123
      %v3156 = vmul.f32 %v2848, %v3124
      %v3157 = vmul.f32 %v2850, %v3125
      %v3158 = vmul.f32 %v2852, %v3126
      %v3159 = vmul.f32 %v2854, %v3127
      %v3160 = vmul.f32 %v2856, %v3128
      %v3161 = vmul.f32 %v2858, %v3129
      %v3162 = vmul.f32 %v2860, %v3130
      %v3163 = vmul.f32 %v2862, %v3131
      %v3164 = vmul.f32 %v2864, %v3132
      %v3165 = vmul.f32 %v2866, %v3133
      %v3166 = vmul.f32 %v2868, %v3134
      %v3167 = vmul.f32 %v2870, %v3135
      %v3168 = vmul.f32 %v2872, %v3136
      %v3169 = vmul.f32 %v2874, %v3137
      %v3170 = vmul.f32 %v2876, %v3138
      %v3171 = vmul.f32 %v2878, %v3139
      %v3172 = vmul.f32 %v2880, %v3140
      %v3173 = vmul.f32 %v2882, %v3141
      %v3174 = vmul.f32 %v2884, %v3142
      %v3175 = vmul.f32 %v2886, %v3143
      %v3176 = vmul.f32 %v2888, %v3144
      %v3177 = vsub.f32 0.0, %v2729
      %v3178 = vsub.f32 0.0, %v2730
      %v3179 = vsub.f32 0.0, %v2731
      %v3180 = vsub.f32 0.0, %v2732
      %v3181 = vsub.f32 0.0, %v2733
      %v3182 = vsub.f32 0.0, %v2734
      %v3183 = vsub.f32 0.0, %v2735
      %v3184 = vsub.f32 0.0, %v2736
      %v3185 = vsub.f32 0.0, %v2737
      %v3186 = vsub.f32 0.0, %v2738
      %v3187 = vsub.f32 0.0, %v2739
      %v3188 = vsub.f32 0.0, %v2740
      %v3189 = vsub.f32 0.0, %v2741
      %v3190 = vsub.f32 0.0, %v2742
      %v3191 = vsub.f32 0.0, %v2743
      %v3192 = vsub.f32 0.0, %v2744
      %v3193 = vsub.f32 0.0, %v2745
      %v3194 = vsub.f32 0.0, %v2746
      %v3195 = vsub.f32 0.0, %v2747
      %v3196 = vsub.f32 0.0, %v2748
      %v3197 = vsub.f32 0.0, %v2749
      %v3198 = vsub.f32 0.0, %v2750
      %v3199 = vsub.f32 0.0, %v2751
      %v3200 = vsub.f32 0.0, %v2752
      %v3201 = vsub.f32 0.0, %v2753
      %v3202 = vsub.f32 0.0, %v2754
      %v3203 = vsub.f32 0.0, %v2755
      %v3204 = vsub.f32 0.0, %v2756
      %v3205 = vsub.f32 0.0, %v2757
      %v3206 = vsub.f32 0.0, %v2758
      %v3207 = vsub.f32 0.0, %v2759
      %v3208 = vsub.f32 0.0, %v2760
      %v3209 = vmul.f32 %v3177, %v2729
      %v3210 = vmul.f32 %v3178, %v2730
      %v3211 = vmul.f32 %v3179, %v2731
      %v3212 = vmul.f32 %v3180, %v2732
      %v3213 = vmul.f32 %v3181, %v2733
      %v3214 = vmul.f32 %v3182, %v2734
      %v3215 = vmul.f32 %v3183, %v2735
      %v3216 = vmul.f32 %v3184, %v2736
      %v3217 = vmul.f32 %v3185, %v2737
      %v3218 = vmul.f32 %v3186, %v2738
      %v3219 = vmul.f32 %v3187, %v2739
      %v3220 = vmul.f32 %v3188, %v2740
      %v3221 = vmul.f32 %v3189, %v2741
      %v3222 = vmul.f32 %v3190, %v2742
      %v3223 = vmul.f32 %v3191, %v2743
      %v3224 = vmul.f32 %v3192, %v2744
      %v3225 = vmul.f32 %v3193, %v2745
      %v3226 = vmul.f32 %v3194, %v2746
      %v3227 = vmul.f32 %v3195, %v2747
      %v3228 = vmul.f32 %v3196, %v2748
      %v3229 = vmul.f32 %v3197, %v2749
      %v3230 = vmul.f32 %v3198, %v2750
      %v3231 = vmul.f32 %v3199, %v2751
      %v3232 = vmul.f32 %v3200, %v2752
      %v3233 = vmul.f32 %v3201, %v2753
      %v3234 = vmul.f32 %v3202, %v2754
      %v3235 = vmul.f32 %v3203, %v2755
      %v3236 = vmul.f32 %v3204, %v2756
      %v3237 = vmul.f32 %v3205, %v2757
      %v3238 = vmul.f32 %v3206, %v2758
      %v3239 = vmul.f32 %v3207, %v2759
      %v3240 = vmul.f32 %v3208, %v2760
      %v3241 = vmul.f32 %v3209, 1.442695
      %v3242 = vpow.pop %v3241
      %v3243 = vmul.f32 %v3210, 1.442695
      %v3244 = vpow.pop %v3243
      %v3245 = vmul.f32 %v3211, 1.442695
      %v3246 = vpow.pop %v3245
      %v3247 = vmul.f32 %v3212, 1.442695
      %v3248 = vpow.pop %v3247
      %v3249 = vmul.f32 %v3213, 1.442695
      %v3250 = vpow.pop %v3249
      %v3251 = vmul.f32 %v3214, 1.442695
      %v3252 = vpow.pop %v3251
      %v3253 = vmul.f32 %v3215, 1.442695
      %v3254 = vpow.pop %v3253
      %v3255 = vmul.f32 %v3216, 1.442695
      %v3256 = vpow.pop %v3255
      %v3257 = vmul.f32 %v3217, 1.442695
      %v3258 = vpow.pop %v3257
      %v3259 = vmul.f32 %v3218, 1.442695
      %v3260 = vpow.pop %v3259
      %v3261 = vmul.f32 %v3219, 1.442695
      %v3262 = vpow.pop %v3261
      %v3263 = vmul.f32 %v3220, 1.442695
      %v3264 = vpow.pop %v3263
      %v3265 = vmul.f32 %v3221, 1.442695
      %v3266 = vpow.pop %v3265
      %v3267 = vmul.f32 %v3222, 1.442695
      %v3268 = vpow.pop %v3267
      %v3269 = vmul.f32 %v3223, 1.442695
      %v3270 = vpow.pop %v3269
      %v3271 = vmul.f32 %v3224, 1.442695
      %v3272 = vpow.pop %v3271
      %v3273 = vmul.f32 %v3225, 1.442695
      %v3274 = vpow.pop %v3273
      %v3275 = vmul.f32 %v3226, 1.442695
      %v3276 = vpow.pop %v3275
      %v3277 = vmul.f32 %v3227, 1.442695
      %v3278 = vpow.pop %v3277
      %v3279 = vmul.f32 %v3228, 1.442695
      %v3280 = vpow.pop %v3279
      %v3281 = vmul.f32 %v3229, 1.442695
      %v3282 = vpow.pop %v3281
      %v3283 = vmul.f32 %v3230, 1.442695
      %v3284 = vpow.pop %v3283
      %v3285 = vmul.f32 %v3231, 1.442695
      %v3286 = vpow.pop %v3285
      %v3287 = vmul.f32 %v3232, 1.442695
      %v3288 = vpow.pop %v3287
      %v3289 = vmul.f32 %v3233, 1.442695
      %v3290 = vpow.pop %v3289
      %v3291 = vmul.f32 %v3234, 1.442695
      %v3292 = vpow.pop %v3291
      %v3293 = vmul.f32 %v3235, 1.442695
      %v3294 = vpow.pop %v3293
      %v3295 = vmul.f32 %v3236, 1.442695
      %v3296 = vpow.pop %v3295
      %v3297 = vmul.f32 %v3237, 1.442695
      %v3298 = vpow.pop %v3297
      %v3299 = vmul.f32 %v3238, 1.442695
      %v3300 = vpow.pop %v3299
      %v3301 = vmul.f32 %v3239, 1.442695
      %v3302 = vpow.pop %v3301
      %v3303 = vmul.f32 %v3240, 1.442695
      %v3304 = vpow.pop %v3303
      %v3305 = vmul.f32 %v3145, %v3242
      %v3306 = vmul.f32 %v3146, %v3244
      %v3307 = vmul.f32 %v3147, %v3246
      %v3308 = vmul.f32 %v3148, %v3248
      %v3309 = vmul.f32 %v3149, %v3250
      %v3310 = vmul.f32 %v3150, %v3252
      %v3311 = vmul.f32 %v3151, %v3254
      %v3312 = vmul.f32 %v3152, %v3256
      %v3313 = vmul.f32 %v3153, %v3258
      %v3314 = vmul.f32 %v3154, %v3260
      %v3315 = vmul.f32 %v3155, %v3262
      %v3316 = vmul.f32 %v3156, %v3264
      %v3317 = vmul.f32 %v3157, %v3266
      %v3318 = vmul.f32 %v3158, %v3268
      %v3319 = vmul.f32 %v3159, %v3270
      %v3320 = vmul.f32 %v3160, %v3272
      %v3321 = vmul.f32 %v3161, %v3274
      %v3322 = vmul.f32 %v3162, %v3276
      %v3323 = vmul.f32 %v3163, %v3278
      %v3324 = vmul.f32 %v3164, %v3280
      %v3325 = vmul.f32 %v3165, %v3282
      %v3326 = vmul.f32 %v3166, %v3284
      %v3327 = vmul.f32 %v3167, %v3286
      %v3328 = vmul.f32 %v3168, %v3288
      %v3329 = vmul.f32 %v3169, %v3290
      %v3330 = vmul.f32 %v3170, %v3292
      %v3331 = vmul.f32 %v3171, %v3294
      %v3332 = vmul.f32 %v3172, %v3296
      %v3333 = vmul.f32 %v3173, %v3298
      %v3334 = vmul.f32 %v3174, %v3300
      %v3335 = vmul.f32 %v3175, %v3302
      %v3336 = vmul.f32 %v3176, %v3304
      %v3337 = vsub.f32 1.0, %v3305
      %v3338 = vsub.f32 1.0, %v3306
      %v3339 = vsub.f32 1.0, %v3307
      %v3340 = vsub.f32 1.0, %v3308
      %v3341 = vsub.f32 1.0, %v3309
      %v3342 = vsub.f32 1.0, %v3310
      %v3343 = vsub.f32 1.0, %v3311
      %v3344 = vsub.f32 1.0, %v3312
      %v3345 = vsub.f32 1.0, %v3313
      %v3346 = vsub.f32 1.0, %v3314
      %v3347 = vsub.f32 1.0, %v3315
      %v3348 = vsub.f32 1.0, %v3316
      %v3349 = vsub.f32 1.0, %v3317
      %v3350 = vsub.f32 1.0, %v3318
      %v3351 = vsub.f32 1.0, %v3319
      %v3352 = vsub.f32 1.0, %v3320
      %v3353 = vsub.f32 1.0, %v3321
      %v3354 = vsub.f32 1.0, %v3322
      %v3355 = vsub.f32 1.0, %v3323
      %v3356 = vsub.f32 1.0, %v3324
      %v3357 = vsub.f32 1.0, %v3325
      %v3358 = vsub.f32 1.0, %v3326
      %v3359 = vsub.f32 1.0, %v3327
      %v3360 = vsub.f32 1.0, %v3328
      %v3361 = vsub.f32 1.0, %v3329
      %v3362 = vsub.f32 1.0, %v3330
      %v3363 = vsub.f32 1.0, %v3331
      %v3364 = vsub.f32 1.0, %v3332
      %v3365 = vsub.f32 1.0, %v3333
      %v3366 = vsub.f32 1.0, %v3334
      %v3367 = vsub.f32 1.0, %v3335
      %v3368 = vsub.f32 1.0, %v3336
      %vm3369 = vcmp.lt.f32.partialorder %v2697, 0.0
      %vm3370 = vcmp.lt.f32.partialorder %v2698, 0.0
      %vm3371 = vcmp.lt.f32.partialorder %v2699, 0.0
      %vm3372 = vcmp.lt.f32.partialorder %v2700, 0.0
      %vm3373 = vcmp.lt.f32.partialorder %v2701, 0.0
      %vm3374 = vcmp.lt.f32.partialorder %v2702, 0.0
      %vm3375 = vcmp.lt.f32.partialorder %v2703, 0.0
      %vm3376 = vcmp.lt.f32.partialorder %v2704, 0.0
      %vm3377 = vcmp.lt.f32.partialorder %v2705, 0.0
      %vm3378 = vcmp.lt.f32.partialorder %v2706, 0.0
      %vm3379 = vcmp.lt.f32.partialorder %v2707, 0.0
      %vm3380 = vcmp.lt.f32.partialorder %v2708, 0.0
      %vm3381 = vcmp.lt.f32.partialorder %v2709, 0.0
      %vm3382 = vcmp.lt.f32.partialorder %v2710, 0.0
      %vm3383 = vcmp.lt.f32.partialorder %v2711, 0.0
      %vm3384 = vcmp.lt.f32.partialorder %v2712, 0.0
      %vm3385 = vcmp.lt.f32.partialorder %v2713, 0.0
      %vm3386 = vcmp.lt.f32.partialorder %v2714, 0.0
      %vm3387 = vcmp.lt.f32.partialorder %v2715, 0.0
      %vm3388 = vcmp.lt.f32.partialorder %v2716, 0.0
      %vm3389 = vcmp.lt.f32.partialorder %v2717, 0.0
      %vm3390 = vcmp.lt.f32.partialorder %v2718, 0.0
      %vm3391 = vcmp.lt.f32.partialorder %v2719, 0.0
      %vm3392 = vcmp.lt.f32.partialorder %v2720, 0.0
      %vm3393 = vcmp.lt.f32.partialorder %v2721, 0.0
      %vm3394 = vcmp.lt.f32.partialorder %v2722, 0.0
      %vm3395 = vcmp.lt.f32.partialorder %v2723, 0.0
      %vm3396 = vcmp.lt.f32.partialorder %v2724, 0.0
      %vm3397 = vcmp.lt.f32.partialorder %v2725, 0.0
      %vm3398 = vcmp.lt.f32.partialorder %v2726, 0.0
      %vm3399 = vcmp.lt.f32.partialorder %v2727, 0.0
      %vm3400 = vcmp.lt.f32.partialorder %v2728, 0.0
      %v3401 = vsub.f32 0.0, %v3337
      %v3402 = vsub.f32 0.0, %v3338
      %v3403 = vsub.f32 0.0, %v3339
      %v3404 = vsub.f32 0.0, %v3340
      %v3405 = vsub.f32 0.0, %v3341
      %v3406 = vsub.f32 0.0, %v3342
      %v3407 = vsub.f32 0.0, %v3343
      %v3408 = vsub.f32 0.0, %v3344
      %v3409 = vsub.f32 0.0, %v3345
      %v3410 = vsub.f32 0.0, %v3346
      %v3411 = vsub.f32 0.0, %v3347
      %v3412 = vsub.f32 0.0, %v3348
      %v3413 = vsub.f32 0.0, %v3349
      %v3414 = vsub.f32 0.0, %v3350
      %v3415 = vsub.f32 0.0, %v3351
      %v3416 = vsub.f32 0.0, %v3352
      %v3417 = vsub.f32 0.0, %v3353
      %v3418 = vsub.f32 0.0, %v3354
      %v3419 = vsub.f32 0.0, %v3355
      %v3420 = vsub.f32 0.0, %v3356
      %v3421 = vsub.f32 0.0, %v3357
      %v3422 = vsub.f32 0.0, %v3358
      %v3423 = vsub.f32 0.0, %v3359
      %v3424 = vsub.f32 0.0, %v3360
      %v3425 = vsub.f32 0.0, %v3361
      %v3426 = vsub.f32 0.0, %v3362
      %v3427 = vsub.f32 0.0, %v3363
      %v3428 = vsub.f32 0.0, %v3364
      %v3429 = vsub.f32 0.0, %v3365
      %v3430 = vsub.f32 0.0, %v3366
      %v3431 = vsub.f32 0.0, %v3367
      %v3432 = vsub.f32 0.0, %v3368
      %v3433 = vsel %vm3369, %v3401, %v3337
      %v3434 = vsel %vm3370, %v3402, %v3338
      %v3435 = vsel %vm3371, %v3403, %v3339
      %v3436 = vsel %vm3372, %v3404, %v3340
      %v3437 = vsel %vm3373, %v3405, %v3341
      %v3438 = vsel %vm3374, %v3406, %v3342
      %v3439 = vsel %vm3375, %v3407, %v3343
      %v3440 = vsel %vm3376, %v3408, %v3344
      %v3441 = vsel %vm3377, %v3409, %v3345
      %v3442 = vsel %vm3378, %v3410, %v3346
      %v3443 = vsel %vm3379, %v3411, %v3347
      %v3444 = vsel %vm3380, %v3412, %v3348
      %v3445 = vsel %vm3381, %v3413, %v3349
      %v3446 = vsel %vm3382, %v3414, %v3350
      %v3447 = vsel %vm3383, %v3415, %v3351
      %v3448 = vsel %vm3384, %v3416, %v3352
      %v3449 = vsel %vm3385, %v3417, %v3353
      %v3450 = vsel %vm3386, %v3418, %v3354
      %v3451 = vsel %vm3387, %v3419, %v3355
      %v3452 = vsel %vm3388, %v3420, %v3356
      %v3453 = vsel %vm3389, %v3421, %v3357
      %v3454 = vsel %vm3390, %v3422, %v3358
      %v3455 = vsel %vm3391, %v3423, %v3359
      %v3456 = vsel %vm3392, %v3424, %v3360
      %v3457 = vsel %vm3393, %v3425, %v3361
      %v3458 = vsel %vm3394, %v3426, %v3362
      %v3459 = vsel %vm3395, %v3427, %v3363
      %v3460 = vsel %vm3396, %v3428, %v3364
      %v3461 = vsel %vm3397, %v3429, %v3365
      %v3462 = vsel %vm3398, %v3430, %v3366
      %v3463 = vsel %vm3399, %v3431, %v3367
      %v3464 = vsel %vm3400, %v3432, %v3368
      %v3465 = vadd.f32 %v3433, 1.0
      %v3466 = vadd.f32 %v3434, 1.0
      %v3467 = vadd.f32 %v3435, 1.0
      %v3468 = vadd.f32 %v3436, 1.0
      %v3469 = vadd.f32 %v3437, 1.0
      %v3470 = vadd.f32 %v3438, 1.0
      %v3471 = vadd.f32 %v3439, 1.0
      %v3472 = vadd.f32 %v3440, 1.0
      %v3473 = vadd.f32 %v3441, 1.0
      %v3474 = vadd.f32 %v3442, 1.0
      %v3475 = vadd.f32 %v3443, 1.0
      %v3476 = vadd.f32 %v3444, 1.0
      %v3477 = vadd.f32 %v3445, 1.0
      %v3478 = vadd.f32 %v3446, 1.0
      %v3479 = vadd.f32 %v3447, 1.0
      %v3480 = vadd.f32 %v3448, 1.0
      %v3481 = vadd.f32 %v3449, 1.0
      %v3482 = vadd.f32 %v3450, 1.0
      %v3483 = vadd.f32 %v3451, 1.0
      %v3484 = vadd.f32 %v3452, 1.0
      %v3485 = vadd.f32 %v3453, 1.0
      %v3486 = vadd.f32 %v3454, 1.0
      %v3487 = vadd.f32 %v3455, 1.0
      %v3488 = vadd.f32 %v3456, 1.0
      %v3489 = vadd.f32 %v3457, 1.0
      %v3490 = vadd.f32 %v3458, 1.0
      %v3491 = vadd.f32 %v3459, 1.0
      %v3492 = vadd.f32 %v3460, 1.0
      %v3493 = vadd.f32 %v3461, 1.0
      %v3494 = vadd.f32 %v3462, 1.0
      %v3495 = vadd.f32 %v3463, 1.0
      %v3496 = vadd.f32 %v3464, 1.0
      %v3497 = vmul.f32 %v2665, %v3465
      %v3498 = vmul.f32 %v2666, %v3466
      %v3499 = vmul.f32 %v2667, %v3467
      %v3500 = vmul.f32 %v2668, %v3468
      %v3501 = vmul.f32 %v2669, %v3469
      %v3502 = vmul.f32 %v2670, %v3470
      %v3503 = vmul.f32 %v2671, %v3471
      %v3504 = vmul.f32 %v2672, %v3472
      %v3505 = vmul.f32 %v2673, %v3473
      %v3506 = vmul.f32 %v2674, %v3474
      %v3507 = vmul.f32 %v2675, %v3475
      %v3508 = vmul.f32 %v2676, %v3476
      %v3509 = vmul.f32 %v2677, %v3477
      %v3510 = vmul.f32 %v2678, %v3478
      %v3511 = vmul.f32 %v2679, %v3479
      %v3512 = vmul.f32 %v2680, %v3480
      %v3513 = vmul.f32 %v2681, %v3481
      %v3514 = vmul.f32 %v2682, %v3482
      %v3515 = vmul.f32 %v2683, %v3483
      %v3516 = vmul.f32 %v2684, %v3484
      %v3517 = vmul.f32 %v2685, %v3485
      %v3518 = vmul.f32 %v2686, %v3486
      %v3519 = vmul.f32 %v2687, %v3487
      %v3520 = vmul.f32 %v2688, %v3488
      %v3521 = vmul.f32 %v2689, %v3489
      %v3522 = vmul.f32 %v2690, %v3490
      %v3523 = vmul.f32 %v2691, %v3491
      %v3524 = vmul.f32 %v2692, %v3492
      %v3525 = vmul.f32 %v2693, %v3493
      %v3526 = vmul.f32 %v2694, %v3494
      %v3527 = vmul.f32 %v2695, %v3495
      %v3528 = vmul.f32 %v2696, %v3496
      %v3529 = vld [vmem:[%s10] sm:$0xff]
      %v3530 = vld [vmem:[%s10 + $0x8] sm:$0xff]
      %v3531 = vld [vmem:[%s10 + $0x10] sm:$0xff]
      %v3532 = vld [vmem:[%s10 + $0x18] sm:$0xff]
      %v3533 = vld [vmem:[%s11] sm:$0x1]
      %v3535 = vlaneseq
      %v3536 = vshrl.u32 %v3535, 7
      %v3537 = vsub.s32 0, %v3536
      %v3538 = vrot.slane %v3533, %v3537
      %v3541 = vsel %vm2343, %v3497, 0
      %v3544 = vsel %vm2343, %v3498, 0
      %v3547 = vsel %vm2343, %v3499, 0
      %v3550 = vsel %vm2343, %v3500, 0
      %v3553 = vsel %vm2343, %v3501, 0
      %v3556 = vsel %vm2343, %v3502, 0
      %v3559 = vsel %vm2343, %v3503, 0
      %v3562 = vsel %vm2343, %v3504, 0
      %v3565 = vsel %vm2343, %v3505, 0
      %v3568 = vsel %vm2343, %v3506, 0
      %v3571 = vsel %vm2343, %v3507, 0
      %v3574 = vsel %vm2343, %v3508, 0
      %v3577 = vsel %vm2343, %v3509, 0
      %v3580 = vsel %vm2343, %v3510, 0
      %v3583 = vsel %vm2343, %v3511, 0
      %v3586 = vsel %vm2343, %v3512, 0
      %v3589 = vsel %vm2343, %v3513, 0
      %v3592 = vsel %vm2343, %v3514, 0
      %v3595 = vsel %vm2343, %v3515, 0
      %v3598 = vsel %vm2343, %v3516, 0
      %v3601 = vsel %vm2343, %v3517, 0
      %v3604 = vsel %vm2343, %v3518, 0
      %v3607 = vsel %vm2343, %v3519, 0
      %v3610 = vsel %vm2343, %v3520, 0
      %v3613 = vsel %vm2343, %v3521, 0
      %v3616 = vsel %vm2343, %v3522, 0
      %v3619 = vsel %vm2343, %v3523, 0
      %v3622 = vsel %vm2343, %v3524, 0
      %v3625 = vsel %vm2343, %v3525, 0
      %v3628 = vsel %vm2343, %v3526, 0
      %v3631 = vsel %vm2343, %v3527, 0
      %v3634 = vsel %vm2343, %v3528, 0
      %3636 = vmatprep.subr.mxu0 0.0
      %3637 = vmatpush1.msra.mxu0 %v3529
      %3638 = vmatprep.subr.mxu0 0.0
      %3639 = vmatpush1.msra.mxu0 %v3530
      %3640 = vmatprep.subr.mxu0 0.0
      %3641 = vmatpush1.msra.mxu0 %v3531
      %3642 = vmatprep.subr.mxu0 0.0
      %3643 = vmatpush1.msra.mxu0 %v3532
      %3644 = vmatprep.subr.mxu0 0.0
      %3645 = vmatpush1.msra.mxu0 0.0
      %3646 = vmatprep.subr.mxu0 0.0
      %3647 = vmatpush1.msra.mxu0 0.0
      %3648 = vmatprep.subr.mxu0 0.0
      %3649 = vmatpush1.msra.mxu0 0.0
      %3650 = vmatprep.subr.mxu0 0.0
      %3651 = vmatpush1.msra.mxu0 0.0
      %3652 = vmatprep.subr.mxu0 0.0
      %3653 = vmatpush1.msra.mxu0 0.0
      %3654 = vmatprep.subr.mxu0 0.0
      %3655 = vmatpush1.msra.mxu0 0.0
      %3656 = vmatprep.subr.mxu0 0.0
      %3657 = vmatpush1.msra.mxu0 0.0
      %3658 = vmatprep.subr.mxu0 0.0
      %3659 = vmatpush1.msra.mxu0 0.0
      %3660 = vmatprep.subr.mxu0 0.0
      %3661 = vmatpush1.msra.mxu0 0.0
      %3662 = vmatprep.subr.mxu0 0.0
      %3663 = vmatpush1.msra.mxu0 0.0
      %3664 = vmatprep.subr.mxu0 0.0
      %3665 = vmatpush1.msra.mxu0 0.0
      %3666 = vmatprep.subr.mxu0 0.0
      %3667 = vmatpush1.msra.mxu0 0.0
      %3668 = vmatprep.subr.mxu0 0.0
      %3669 = vmatpush1.msra.mxu0 0.0
      %3670 = vmatprep.subr.mxu0 0.0
      %3671 = vmatpush1.msra.mxu0 0.0
      %3672 = vmatprep.subr.mxu0 0.0
      %3673 = vmatpush1.msra.mxu0 0.0
      %3674 = vmatprep.subr.mxu0 0.0
      %3675 = vmatpush1.msra.mxu0 0.0
      %3676 = vmatprep.subr.mxu0 0.0
      %3677 = vmatpush1.msra.mxu0 0.0
      %3678 = vmatprep.subr.mxu0 0.0
      %3679 = vmatpush1.msra.mxu0 0.0
      %3680 = vmatprep.subr.mxu0 0.0
      %3681 = vmatpush1.msra.mxu0 0.0
      %3682 = vmatprep.subr.mxu0 0.0
      %3683 = vmatpush1.msra.mxu0 0.0
      %3684 = vmatprep.subr.mxu0 0.0
      %3685 = vmatpush1.msra.mxu0 0.0
      %3686 = vmatprep.subr.mxu0 0.0
      %3687 = vmatpush1.msra.mxu0 0.0
      %3688 = vmatprep.subr.mxu0 0.0
      %3689 = vmatpush1.msra.mxu0 0.0
      %3690 = vmatprep.subr.mxu0 0.0
      %3691 = vmatpush1.msra.mxu0 0.0
      %3692 = vmatprep.subr.mxu0 0.0
      %3693 = vmatpush1.msra.mxu0 0.0
      %3694 = vmatprep.subr.mxu0 0.0
      %3695 = vmatpush1.msra.mxu0 0.0
      %3696 = vmatprep.subr.mxu0 0.0
      %3697 = vmatpush1.msra.mxu0 0.0
      %3698 = vmatprep.subr.mxu0 0.0
      %3699 = vmatpush1.msra.mxu0 0.0
      %3700 = vmatprep.mubr.f32.mxu0 0.0
      %3701 = vmatmul.mubr.f32.gmra.mrb[0].mxu0 %v3541
      %v3702 = vpop.f32.mrb[0].mxu0
      %v3703 = vadd.f32 %v3538, %v3702
      %v3704 = vpop.f32.mrb[0].mxu0
      %3705 = vmatprep.mubr.f32.mxu0 0.0
      %3706 = vmatmul.mubr.f32.gmra.mrb[0].mxu0 %v3544
      %v3707 = vpop.f32.mrb[0].mxu0
      %v3708 = vadd.f32 %v3538, %v3707
      %v3709 = vpop.f32.mrb[0].mxu0
      %3710 = vmatprep.mubr.f32.mxu0 0.0
      %3711 = vmatmul.mubr.f32.gmra.mrb[0].mxu0 %v3547
      %v3712 = vpop.f32.mrb[0].mxu0
      %v3713 = vadd.f32 %v3538, %v3712
      %v3714 = vpop.f32.mrb[0].mxu0
      %3715 = vmatprep.mubr.f32.mxu0 0.0
      %3716 = vmatmul.mubr.f32.gmra.mrb[0].mxu0 %v3550
      %v3717 = vpop.f32.mrb[0].mxu0
      %v3718 = vadd.f32 %v3538, %v3717
      %v3719 = vpop.f32.mrb[0].mxu0
      %3720 = vmatprep.mubr.f32.mxu0 0.0
      %3721 = vmatmul.mubr.f32.gmra.mrb[0].mxu0 %v3553
      %v3722 = vpop.f32.mrb[0].mxu0
      %v3723 = vadd.f32 %v3538, %v3722
      %v3724 = vpop.f32.mrb[0].mxu0
      %3725 = vmatprep.mubr.f32.mxu0 0.0
      %3726 = vmatmul.mubr.f32.gmra.mrb[0].mxu0 %v3556
      %v3727 = vpop.f32.mrb[0].mxu0
      %v3728 = vadd.f32 %v3538, %v3727
      %v3729 = vpop.f32.mrb[0].mxu0
      %3730 = vmatprep.mubr.f32.mxu0 0.0
      %3731 = vmatmul.mubr.f32.gmra.mrb[0].mxu0 %v3559
      %v3732 = vpop.f32.mrb[0].mxu0
      %v3733 = vadd.f32 %v3538, %v3732
      %v3734 = vpop.f32.mrb[0].mxu0
      %3735 = vmatprep.mubr.f32.mxu0 0.0
      %3736 = vmatmul.mubr.f32.gmra.mrb[0].mxu0 %v3562
      %v3737 = vpop.f32.mrb[0].mxu0
      %v3738 = vadd.f32 %v3538, %v3737
      %v3739 = vpop.f32.mrb[0].mxu0
      %3740 = vmatprep.mubr.f32.mxu0 0.0
      %3741 = vmatmul.mubr.f32.gmra.mrb[0].mxu0 %v3565
      %v3742 = vpop.f32.mrb[0].mxu0
      %v3743 = vadd.f32 %v3538, %v3742
      %v3744 = vpop.f32.mrb[0].mxu0
      %3745 = vmatprep.mubr.f32.mxu0 0.0
      %3746 = vmatmul.mubr.f32.gmra.mrb[0].mxu0 %v3568
      %v3747 = vpop.f32.mrb[0].mxu0
      %v3748 = vadd.f32 %v3538, %v3747
      %v3749 = vpop.f32.mrb[0].mxu0
      %3750 = vmatprep.mubr.f32.mxu0 0.0
      %3751 = vmatmul.mubr.f32.gmra.mrb[0].mxu0 %v3571
      %v3752 = vpop.f32.mrb[0].mxu0
      %v3753 = vadd.f32 %v3538, %v3752
      %v3754 = vpop.f32.mrb[0].mxu0
      %3755 = vmatprep.mubr.f32.mxu0 0.0
      %3756 = vmatmul.mubr.f32.gmra.mrb[0].mxu0 %v3574
      %v3757 = vpop.f32.mrb[0].mxu0
      %v3758 = vadd.f32 %v3538, %v3757
      %v3759 = vpop.f32.mrb[0].mxu0
      %3760 = vmatprep.mubr.f32.mxu0 0.0
      %3761 = vmatmul.mubr.f32.gmra.mrb[0].mxu0 %v3577
      %v3762 = vpop.f32.mrb[0].mxu0
      %v3763 = vadd.f32 %v3538, %v3762
      %v3764 = vpop.f32.mrb[0].mxu0
      %3765 = vmatprep.mubr.f32.mxu0 0.0
      %3766 = vmatmul.mubr.f32.gmra.mrb[0].mxu0 %v3580
      %v3767 = vpop.f32.mrb[0].mxu0
      %v3768 = vadd.f32 %v3538, %v3767
      %v3769 = vpop.f32.mrb[0].mxu0
      %3770 = vmatprep.mubr.f32.mxu0 0.0
      %3771 = vmatmul.mubr.f32.gmra.mrb[0].mxu0 %v3583
      %v3772 = vpop.f32.mrb[0].mxu0
      %v3773 = vadd.f32 %v3538, %v3772
      %v3774 = vpop.f32.mrb[0].mxu0
      %3775 = vmatprep.mubr.f32.mxu0 0.0
      %3776 = vmatmul.mubr.f32.gmra.mrb[0].mxu0 %v3586
      %v3777 = vpop.f32.mrb[0].mxu0
      %v3778 = vadd.f32 %v3538, %v3777
      %v3779 = vpop.f32.mrb[0].mxu0
      %3780 = vmatprep.mubr.f32.mxu0 0.0
      %3781 = vmatmul.mubr.f32.gmra.mrb[0].mxu0 %v3589
      %v3782 = vpop.f32.mrb[0].mxu0
      %v3783 = vadd.f32 %v3538, %v3782
      %v3784 = vpop.f32.mrb[0].mxu0
      %3785 = vmatprep.mubr.f32.mxu0 0.0
      %3786 = vmatmul.mubr.f32.gmra.mrb[0].mxu0 %v3592
      %v3787 = vpop.f32.mrb[0].mxu0
      %v3788 = vadd.f32 %v3538, %v3787
      %v3789 = vpop.f32.mrb[0].mxu0
      %3790 = vmatprep.mubr.f32.mxu0 0.0
      %3791 = vmatmul.mubr.f32.gmra.mrb[0].mxu0 %v3595
      %v3792 = vpop.f32.mrb[0].mxu0
      %v3793 = vadd.f32 %v3538, %v3792
      %v3794 = vpop.f32.mrb[0].mxu0
      %3795 = vmatprep.mubr.f32.mxu0 0.0
      %3796 = vmatmul.mubr.f32.gmra.mrb[0].mxu0 %v3598
      %v3797 = vpop.f32.mrb[0].mxu0
      %v3798 = vadd.f32 %v3538, %v3797
      %v3799 = vpop.f32.mrb[0].mxu0
      %3800 = vmatprep.mubr.f32.mxu0 0.0
      %3801 = vmatmul.mubr.f32.gmra.mrb[0].mxu0 %v3601
      %v3802 = vpop.f32.mrb[0].mxu0
      %v3803 = vadd.f32 %v3538, %v3802
      %v3804 = vpop.f32.mrb[0].mxu0
      %3805 = vmatprep.mubr.f32.mxu0 0.0
      %3806 = vmatmul.mubr.f32.gmra.mrb[0].mxu0 %v3604
      %v3807 = vpop.f32.mrb[0].mxu0
      %v3808 = vadd.f32 %v3538, %v3807
      %v3809 = vpop.f32.mrb[0].mxu0
      %3810 = vmatprep.mubr.f32.mxu0 0.0
      %3811 = vmatmul.mubr.f32.gmra.mrb[0].mxu0 %v3607
      %v3812 = vpop.f32.mrb[0].mxu0
      %v3813 = vadd.f32 %v3538, %v3812
      %v3814 = vpop.f32.mrb[0].mxu0
      %3815 = vmatprep.mubr.f32.mxu0 0.0
      %3816 = vmatmul.mubr.f32.gmra.mrb[0].mxu0 %v3610
      %v3817 = vpop.f32.mrb[0].mxu0
      %v3818 = vadd.f32 %v3538, %v3817
      %v3819 = vpop.f32.mrb[0].mxu0
      %3820 = vmatprep.mubr.f32.mxu0 0.0
      %3821 = vmatmul.mubr.f32.gmra.mrb[0].mxu0 %v3613
      %v3822 = vpop.f32.mrb[0].mxu0
      %v3823 = vadd.f32 %v3538, %v3822
      %v3824 = vpop.f32.mrb[0].mxu0
      %3825 = vmatprep.mubr.f32.mxu0 0.0
      %3826 = vmatmul.mubr.f32.gmra.mrb[0].mxu0 %v3616
      %v3827 = vpop.f32.mrb[0].mxu0
      %v3828 = vadd.f32 %v3538, %v3827
      %v3829 = vpop.f32.mrb[0].mxu0
      %3830 = vmatprep.mubr.f32.mxu0 0.0
      %3831 = vmatmul.mubr.f32.gmra.mrb[0].mxu0 %v3619
      %v3832 = vpop.f32.mrb[0].mxu0
      %v3833 = vadd.f32 %v3538, %v3832
      %v3834 = vpop.f32.mrb[0].mxu0
      %3835 = vmatprep.mubr.f32.mxu0 0.0
      %3836 = vmatmul.mubr.f32.gmra.mrb[0].mxu0 %v3622
      %v3837 = vpop.f32.mrb[0].mxu0
      %v3838 = vadd.f32 %v3538, %v3837
      %v3839 = vpop.f32.mrb[0].mxu0
      %3840 = vmatprep.mubr.f32.mxu0 0.0
      %3841 = vmatmul.mubr.f32.gmra.mrb[0].mxu0 %v3625
      %v3842 = vpop.f32.mrb[0].mxu0
      %v3843 = vadd.f32 %v3538, %v3842
      %v3844 = vpop.f32.mrb[0].mxu0
      %3845 = vmatprep.mubr.f32.mxu0 0.0
      %3846 = vmatmul.mubr.f32.gmra.mrb[0].mxu0 %v3628
      %v3847 = vpop.f32.mrb[0].mxu0
      %v3848 = vadd.f32 %v3538, %v3847
      %v3849 = vpop.f32.mrb[0].mxu0
      %3850 = vmatprep.mubr.f32.mxu0 0.0
      %3851 = vmatmul.mubr.f32.gmra.mrb[0].mxu0 %v3631
      %v3852 = vpop.f32.mrb[0].mxu0
      %v3853 = vadd.f32 %v3538, %v3852
      %v3854 = vpop.f32.mrb[0].mxu0
      %3855 = vmatprep.mubr.f32.mxu0 0.0
      %3856 = vmatmul.mubr.f32.gmra.mrb[0].mxu0 %v3634
      %v3857 = vpop.f32.mrb[0].mxu0
      %v3858 = vadd.f32 %v3538, %v3857
      %v3859 = vpop.f32.mrb[0].mxu0
      %3860 = vdwg.mxu0
      %vm3861 = vcmp.gt.f32.partialorder %v615, 0.5
      %vm3862 = vcmp.gt.f32.partialorder %v616, 0.5
      %vm3863 = vcmp.gt.f32.partialorder %v617, 0.5
      %vm3864 = vcmp.gt.f32.partialorder %v618, 0.5
      %vm3865 = vcmp.gt.f32.partialorder %v619, 0.5
      %vm3866 = vcmp.gt.f32.partialorder %v620, 0.5
      %vm3867 = vcmp.gt.f32.partialorder %v621, 0.5
      %vm3868 = vcmp.gt.f32.partialorder %v622, 0.5
      %vm3869 = vcmp.gt.f32.partialorder %v623, 0.5
      %vm3870 = vcmp.gt.f32.partialorder %v624, 0.5
      %vm3871 = vcmp.gt.f32.partialorder %v625, 0.5
      %vm3872 = vcmp.gt.f32.partialorder %v626, 0.5
      %vm3873 = vcmp.gt.f32.partialorder %v627, 0.5
      %vm3874 = vcmp.gt.f32.partialorder %v628, 0.5
      %vm3875 = vcmp.gt.f32.partialorder %v629, 0.5
      %vm3876 = vcmp.gt.f32.partialorder %v630, 0.5
      %vm3877 = vcmp.gt.f32.partialorder %v631, 0.5
      %vm3878 = vcmp.gt.f32.partialorder %v632, 0.5
      %vm3879 = vcmp.gt.f32.partialorder %v633, 0.5
      %vm3880 = vcmp.gt.f32.partialorder %v634, 0.5
      %vm3881 = vcmp.gt.f32.partialorder %v635, 0.5
      %vm3882 = vcmp.gt.f32.partialorder %v636, 0.5
      %vm3883 = vcmp.gt.f32.partialorder %v637, 0.5
      %vm3884 = vcmp.gt.f32.partialorder %v638, 0.5
      %vm3885 = vcmp.gt.f32.partialorder %v639, 0.5
      %vm3886 = vcmp.gt.f32.partialorder %v640, 0.5
      %vm3887 = vcmp.gt.f32.partialorder %v641, 0.5
      %vm3888 = vcmp.gt.f32.partialorder %v642, 0.5
      %vm3889 = vcmp.gt.f32.partialorder %v643, 0.5
      %vm3890 = vcmp.gt.f32.partialorder %v644, 0.5
      %vm3891 = vcmp.gt.f32.partialorder %v645, 0.5
      %vm3892 = vcmp.gt.f32.partialorder %v646, 0.5
      %v3893 = vsel %vm3861, 1, 0
      %v3894 = vsel %vm3862, 1, 0
      %v3895 = vsel %vm3863, 1, 0
      %v3896 = vsel %vm3864, 1, 0
      %v3897 = vsel %vm3865, 1, 0
      %v3898 = vsel %vm3866, 1, 0
      %v3899 = vsel %vm3867, 1, 0
      %v3900 = vsel %vm3868, 1, 0
      %v3901 = vsel %vm3869, 1, 0
      %v3902 = vsel %vm3870, 1, 0
      %v3903 = vsel %vm3871, 1, 0
      %v3904 = vsel %vm3872, 1, 0
      %v3905 = vsel %vm3873, 1, 0
      %v3906 = vsel %vm3874, 1, 0
      %v3907 = vsel %vm3875, 1, 0
      %v3908 = vsel %vm3876, 1, 0
      %v3909 = vsel %vm3877, 1, 0
      %v3910 = vsel %vm3878, 1, 0
      %v3911 = vsel %vm3879, 1, 0
      %v3912 = vsel %vm3880, 1, 0
      %v3913 = vsel %vm3881, 1, 0
      %v3914 = vsel %vm3882, 1, 0
      %v3915 = vsel %vm3883, 1, 0
      %v3916 = vsel %vm3884, 1, 0
      %v3917 = vsel %vm3885, 1, 0
      %v3918 = vsel %vm3886, 1, 0
      %v3919 = vsel %vm3887, 1, 0
      %v3920 = vsel %vm3888, 1, 0
      %v3921 = vsel %vm3889, 1, 0
      %v3922 = vsel %vm3890, 1, 0
      %v3923 = vsel %vm3891, 1, 0
      %v3924 = vsel %vm3892, 1, 0
      %3925 = vset.pattern.permute.xlu0 2
      %3926 = vperm.xlu0 %3925, %v3893
      %v3927 = vpop.permute.xlu0 %3926
      %3928 = vset.pattern.permute.xlu0 2
      %3929 = vperm.xlu0 %3928, %v3894
      %v3930 = vpop.permute.xlu0 %3929
      %3931 = vset.pattern.permute.xlu0 2
      %3932 = vperm.xlu0 %3931, %v3895
      %v3933 = vpop.permute.xlu0 %3932
      %3934 = vset.pattern.permute.xlu0 2
      %3935 = vperm.xlu0 %3934, %v3896
      %v3936 = vpop.permute.xlu0 %3935
      %3937 = vset.pattern.permute.xlu0 2
      %3938 = vperm.xlu0 %3937, %v3897
      %v3939 = vpop.permute.xlu0 %3938
      %3940 = vset.pattern.permute.xlu0 2
      %3941 = vperm.xlu0 %3940, %v3898
      %v3942 = vpop.permute.xlu0 %3941
      %3943 = vset.pattern.permute.xlu0 2
      %3944 = vperm.xlu0 %3943, %v3899
      %v3945 = vpop.permute.xlu0 %3944
      %3946 = vset.pattern.permute.xlu0 2
      %3947 = vperm.xlu0 %3946, %v3900
      %v3948 = vpop.permute.xlu0 %3947
      %3949 = vset.pattern.permute.xlu0 2
      %3950 = vperm.xlu0 %3949, %v3901
      %v3951 = vpop.permute.xlu0 %3950
      %3952 = vset.pattern.permute.xlu0 2
      %3953 = vperm.xlu0 %3952, %v3902
      %v3954 = vpop.permute.xlu0 %3953
      %3955 = vset.pattern.permute.xlu0 2
      %3956 = vperm.xlu0 %3955, %v3903
      %v3957 = vpop.permute.xlu0 %3956
      %3958 = vset.pattern.permute.xlu0 2
      %3959 = vperm.xlu0 %3958, %v3904
      %v3960 = vpop.permute.xlu0 %3959
      %3961 = vset.pattern.permute.xlu0 2
      %3962 = vperm.xlu0 %3961, %v3905
      %v3963 = vpop.permute.xlu0 %3962
      %3964 = vset.pattern.permute.xlu0 2
      %3965 = vperm.xlu0 %3964, %v3906
      %v3966 = vpop.permute.xlu0 %3965
      %3967 = vset.pattern.permute.xlu0 2
      %3968 = vperm.xlu0 %3967, %v3907
      %v3969 = vpop.permute.xlu0 %3968
      %3970 = vset.pattern.permute.xlu0 2
      %3971 = vperm.xlu0 %3970, %v3908
      %v3972 = vpop.permute.xlu0 %3971
      %3973 = vset.pattern.permute.xlu0 2
      %3974 = vperm.xlu0 %3973, %v3909
      %v3975 = vpop.permute.xlu0 %3974
      %3976 = vset.pattern.permute.xlu0 2
      %3977 = vperm.xlu0 %3976, %v3910
      %v3978 = vpop.permute.xlu0 %3977
      %3979 = vset.pattern.permute.xlu0 2
      %3980 = vperm.xlu0 %3979, %v3911
      %v3981 = vpop.permute.xlu0 %3980
      %3982 = vset.pattern.permute.xlu0 2
      %3983 = vperm.xlu0 %3982, %v3912
      %v3984 = vpop.permute.xlu0 %3983
      %3985 = vset.pattern.permute.xlu0 2
      %3986 = vperm.xlu0 %3985, %v3913
      %v3987 = vpop.permute.xlu0 %3986
      %3988 = vset.pattern.permute.xlu0 2
      %3989 = vperm.xlu0 %3988, %v3914
      %v3990 = vpop.permute.xlu0 %3989
      %3991 = vset.pattern.permute.xlu0 2
      %3992 = vperm.xlu0 %3991, %v3915
      %v3993 = vpop.permute.xlu0 %3992
      %3994 = vset.pattern.permute.xlu0 2
      %3995 = vperm.xlu0 %3994, %v3916
      %v3996 = vpop.permute.xlu0 %3995
      %3997 = vset.pattern.permute.xlu0 2
      %3998 = vperm.xlu0 %3997, %v3917
      %v3999 = vpop.permute.xlu0 %3998
      %4000 = vset.pattern.permute.xlu0 2
      %4001 = vperm.xlu0 %4000, %v3918
      %v4002 = vpop.permute.xlu0 %4001
      %4003 = vset.pattern.permute.xlu0 2
      %4004 = vperm.xlu0 %4003, %v3919
      %v4005 = vpop.permute.xlu0 %4004
      %4006 = vset.pattern.permute.xlu0 2
      %4007 = vperm.xlu0 %4006, %v3920
      %v4008 = vpop.permute.xlu0 %4007
      %4009 = vset.pattern.permute.xlu0 2
      %4010 = vperm.xlu0 %4009, %v3921
      %v4011 = vpop.permute.xlu0 %4010
      %4012 = vset.pattern.permute.xlu0 2
      %4013 = vperm.xlu0 %4012, %v3922
      %v4014 = vpop.permute.xlu0 %4013
      %4015 = vset.pattern.permute.xlu0 2
      %4016 = vperm.xlu0 %4015, %v3923
      %v4017 = vpop.permute.xlu0 %4016
      %4018 = vset.pattern.permute.xlu0 2
      %4019 = vperm.xlu0 %4018, %v3924
      %v4020 = vpop.permute.xlu0 %4019
      %vm4021 = vcmp.eq.s32.totalorder %v3927, 1
      %vm4022 = vcmp.eq.s32.totalorder %v3930, 1
      %vm4023 = vcmp.eq.s32.totalorder %v3933, 1
      %vm4024 = vcmp.eq.s32.totalorder %v3936, 1
      %vm4025 = vcmp.eq.s32.totalorder %v3939, 1
      %vm4026 = vcmp.eq.s32.totalorder %v3942, 1
      %vm4027 = vcmp.eq.s32.totalorder %v3945, 1
      %vm4028 = vcmp.eq.s32.totalorder %v3948, 1
      %vm4029 = vcmp.eq.s32.totalorder %v3951, 1
      %vm4030 = vcmp.eq.s32.totalorder %v3954, 1
      %vm4031 = vcmp.eq.s32.totalorder %v3957, 1
      %vm4032 = vcmp.eq.s32.totalorder %v3960, 1
      %vm4033 = vcmp.eq.s32.totalorder %v3963, 1
      %vm4034 = vcmp.eq.s32.totalorder %v3966, 1
      %vm4035 = vcmp.eq.s32.totalorder %v3969, 1
      %vm4036 = vcmp.eq.s32.totalorder %v3972, 1
      %vm4037 = vcmp.eq.s32.totalorder %v3975, 1
      %vm4038 = vcmp.eq.s32.totalorder %v3978, 1
      %vm4039 = vcmp.eq.s32.totalorder %v3981, 1
      %vm4040 = vcmp.eq.s32.totalorder %v3984, 1
      %vm4041 = vcmp.eq.s32.totalorder %v3987, 1
      %vm4042 = vcmp.eq.s32.totalorder %v3990, 1
      %vm4043 = vcmp.eq.s32.totalorder %v3993, 1
      %vm4044 = vcmp.eq.s32.totalorder %v3996, 1
      %vm4045 = vcmp.eq.s32.totalorder %v3999, 1
      %vm4046 = vcmp.eq.s32.totalorder %v4002, 1
      %vm4047 = vcmp.eq.s32.totalorder %v4005, 1
      %vm4048 = vcmp.eq.s32.totalorder %v4008, 1
      %vm4049 = vcmp.eq.s32.totalorder %v4011, 1
      %vm4050 = vcmp.eq.s32.totalorder %v4014, 1
      %vm4051 = vcmp.eq.s32.totalorder %v4017, 1
      %vm4052 = vcmp.eq.s32.totalorder %v4020, 1
      %v4053 = vsel %vm4021, -inf, %v3703
      %v4054 = vsel %vm4022, -inf, %v3708
      %v4055 = vsel %vm4023, -inf, %v3713
      %v4056 = vsel %vm4024, -inf, %v3718
      %v4057 = vsel %vm4025, -inf, %v3723
      %v4058 = vsel %vm4026, -inf, %v3728
      %v4059 = vsel %vm4027, -inf, %v3733
      %v4060 = vsel %vm4028, -inf, %v3738
      %v4061 = vsel %vm4029, -inf, %v3743
      %v4062 = vsel %vm4030, -inf, %v3748
      %v4063 = vsel %vm4031, -inf, %v3753
      %v4064 = vsel %vm4032, -inf, %v3758
      %v4065 = vsel %vm4033, -inf, %v3763
      %v4066 = vsel %vm4034, -inf, %v3768
      %v4067 = vsel %vm4035, -inf, %v3773
      %v4068 = vsel %vm4036, -inf, %v3778
      %v4069 = vsel %vm4037, -inf, %v3783
      %v4070 = vsel %vm4038, -inf, %v3788
      %v4071 = vsel %vm4039, -inf, %v3793
      %v4072 = vsel %vm4040, -inf, %v3798
      %v4073 = vsel %vm4041, -inf, %v3803
      %v4074 = vsel %vm4042, -inf, %v3808
      %v4075 = vsel %vm4043, -inf, %v3813
      %v4076 = vsel %vm4044, -inf, %v3818
      %v4077 = vsel %vm4045, -inf, %v3823
      %v4078 = vsel %vm4046, -inf, %v3828
      %v4079 = vsel %vm4047, -inf, %v3833
      %v4080 = vsel %vm4048, -inf, %v3838
      %v4081 = vsel %vm4049, -inf, %v3843
      %v4082 = vsel %vm4050, -inf, %v3848
      %v4083 = vsel %vm4051, -inf, %v3853
      %v4084 = vsel %vm4052, -inf, %v3858
      %4085 = vset.pattern.permute.xlu0 3
      %4086 = vperm.xlu0 %4085, %v3893
      %v4087 = vpop.permute.xlu0 %4086
      %4088 = vset.pattern.permute.xlu0 3
      %4089 = vperm.xlu0 %4088, %v3894
      %v4090 = vpop.permute.xlu0 %4089
      %4091 = vset.pattern.permute.xlu0 3
      %4092 = vperm.xlu0 %4091, %v3895
      %v4093 = vpop.permute.xlu0 %4092
      %4094 = vset.pattern.permute.xlu0 3
      %4095 = vperm.xlu0 %4094, %v3896
      %v4096 = vpop.permute.xlu0 %4095
      %4097 = vset.pattern.permute.xlu0 3
      %4098 = vperm.xlu0 %4097, %v3897
      %v4099 = vpop.permute.xlu0 %4098
      %4100 = vset.pattern.permute.xlu0 3
      %4101 = vperm.xlu0 %4100, %v3898
      %v4102 = vpop.permute.xlu0 %4101
      %4103 = vset.pattern.permute.xlu0 3
      %4104 = vperm.xlu0 %4103, %v3899
      %v4105 = vpop.permute.xlu0 %4104
      %4106 = vset.pattern.permute.xlu0 3
      %4107 = vperm.xlu0 %4106, %v3900
      %v4108 = vpop.permute.xlu0 %4107
      %4109 = vset.pattern.permute.xlu0 3
      %4110 = vperm.xlu0 %4109, %v3901
      %v4111 = vpop.permute.xlu0 %4110
      %4112 = vset.pattern.permute.xlu0 3
      %4113 = vperm.xlu0 %4112, %v3902
      %v4114 = vpop.permute.xlu0 %4113
      %4115 = vset.pattern.permute.xlu0 3
      %4116 = vperm.xlu0 %4115, %v3903
      %v4117 = vpop.permute.xlu0 %4116
      %4118 = vset.pattern.permute.xlu0 3
      %4119 = vperm.xlu0 %4118, %v3904
      %v4120 = vpop.permute.xlu0 %4119
      %4121 = vset.pattern.permute.xlu0 3
      %4122 = vperm.xlu0 %4121, %v3905
      %v4123 = vpop.permute.xlu0 %4122
      %4124 = vset.pattern.permute.xlu0 3
      %4125 = vperm.xlu0 %4124, %v3906
      %v4126 = vpop.permute.xlu0 %4125
      %4127 = vset.pattern.permute.xlu0 3
      %4128 = vperm.xlu0 %4127, %v3907
      %v4129 = vpop.permute.xlu0 %4128
      %4130 = vset.pattern.permute.xlu0 3
      %4131 = vperm.xlu0 %4130, %v3908
      %v4132 = vpop.permute.xlu0 %4131
      %4133 = vset.pattern.permute.xlu0 3
      %4134 = vperm.xlu0 %4133, %v3909
      %v4135 = vpop.permute.xlu0 %4134
      %4136 = vset.pattern.permute.xlu0 3
      %4137 = vperm.xlu0 %4136, %v3910
      %v4138 = vpop.permute.xlu0 %4137
      %4139 = vset.pattern.permute.xlu0 3
      %4140 = vperm.xlu0 %4139, %v3911
      %v4141 = vpop.permute.xlu0 %4140
      %4142 = vset.pattern.permute.xlu0 3
      %4143 = vperm.xlu0 %4142, %v3912
      %v4144 = vpop.permute.xlu0 %4143
      %4145 = vset.pattern.permute.xlu0 3
      %4146 = vperm.xlu0 %4145, %v3913
      %v4147 = vpop.permute.xlu0 %4146
      %4148 = vset.pattern.permute.xlu0 3
      %4149 = vperm.xlu0 %4148, %v3914
      %v4150 = vpop.permute.xlu0 %4149
      %4151 = vset.pattern.permute.xlu0 3
      %4152 = vperm.xlu0 %4151, %v3915
      %v4153 = vpop.permute.xlu0 %4152
      %4154 = vset.pattern.permute.xlu0 3
      %4155 = vperm.xlu0 %4154, %v3916
      %v4156 = vpop.permute.xlu0 %4155
      %4157 = vset.pattern.permute.xlu0 3
      %4158 = vperm.xlu0 %4157, %v3917
      %v4159 = vpop.permute.xlu0 %4158
      %4160 = vset.pattern.permute.xlu0 3
      %4161 = vperm.xlu0 %4160, %v3918
      %v4162 = vpop.permute.xlu0 %4161
      %4163 = vset.pattern.permute.xlu0 3
      %4164 = vperm.xlu0 %4163, %v3919
      %v4165 = vpop.permute.xlu0 %4164
      %4166 = vset.pattern.permute.xlu0 3
      %4167 = vperm.xlu0 %4166, %v3920
      %v4168 = vpop.permute.xlu0 %4167
      %4169 = vset.pattern.permute.xlu0 3
      %4170 = vperm.xlu0 %4169, %v3921
      %v4171 = vpop.permute.xlu0 %4170
      %4172 = vset.pattern.permute.xlu0 3
      %4173 = vperm.xlu0 %4172, %v3922
      %v4174 = vpop.permute.xlu0 %4173
      %4175 = vset.pattern.permute.xlu0 3
      %4176 = vperm.xlu0 %4175, %v3923
      %v4177 = vpop.permute.xlu0 %4176
      %4178 = vset.pattern.permute.xlu0 3
      %4179 = vperm.xlu0 %4178, %v3924
      %v4180 = vpop.permute.xlu0 %4179
      %vm4181 = vcmp.eq.s32.totalorder %v4087, 1
      %vm4182 = vcmp.eq.s32.totalorder %v4090, 1
      %vm4183 = vcmp.eq.s32.totalorder %v4093, 1
      %vm4184 = vcmp.eq.s32.totalorder %v4096, 1
      %vm4185 = vcmp.eq.s32.totalorder %v4099, 1
      %vm4186 = vcmp.eq.s32.totalorder %v4102, 1
      %vm4187 = vcmp.eq.s32.totalorder %v4105, 1
      %vm4188 = vcmp.eq.s32.totalorder %v4108, 1
      %vm4189 = vcmp.eq.s32.totalorder %v4111, 1
      %vm4190 = vcmp.eq.s32.totalorder %v4114, 1
      %vm4191 = vcmp.eq.s32.totalorder %v4117, 1
      %vm4192 = vcmp.eq.s32.totalorder %v4120, 1
      %vm4193 = vcmp.eq.s32.totalorder %v4123, 1
      %vm4194 = vcmp.eq.s32.totalorder %v4126, 1
      %vm4195 = vcmp.eq.s32.totalorder %v4129, 1
      %vm4196 = vcmp.eq.s32.totalorder %v4132, 1
      %vm4197 = vcmp.eq.s32.totalorder %v4135, 1
      %vm4198 = vcmp.eq.s32.totalorder %v4138, 1
      %vm4199 = vcmp.eq.s32.totalorder %v4141, 1
      %vm4200 = vcmp.eq.s32.totalorder %v4144, 1
      %vm4201 = vcmp.eq.s32.totalorder %v4147, 1
      %vm4202 = vcmp.eq.s32.totalorder %v4150, 1
      %vm4203 = vcmp.eq.s32.totalorder %v4153, 1
      %vm4204 = vcmp.eq.s32.totalorder %v4156, 1
      %vm4205 = vcmp.eq.s32.totalorder %v4159, 1
      %vm4206 = vcmp.eq.s32.totalorder %v4162, 1
      %vm4207 = vcmp.eq.s32.totalorder %v4165, 1
      %vm4208 = vcmp.eq.s32.totalorder %v4168, 1
      %vm4209 = vcmp.eq.s32.totalorder %v4171, 1
      %vm4210 = vcmp.eq.s32.totalorder %v4174, 1
      %vm4211 = vcmp.eq.s32.totalorder %v4177, 1
      %vm4212 = vcmp.eq.s32.totalorder %v4180, 1
      %v4213 = vsel %vm4181, 0.0, %v4053
      %v4214 = vsel %vm4182, 0.0, %v4054
      %v4215 = vsel %vm4183, 0.0, %v4055
      %v4216 = vsel %vm4184, 0.0, %v4056
      %v4217 = vsel %vm4185, 0.0, %v4057
      %v4218 = vsel %vm4186, 0.0, %v4058
      %v4219 = vsel %vm4187, 0.0, %v4059
      %v4220 = vsel %vm4188, 0.0, %v4060
      %v4221 = vsel %vm4189, 0.0, %v4061
      %v4222 = vsel %vm4190, 0.0, %v4062
      %v4223 = vsel %vm4191, 0.0, %v4063
      %v4224 = vsel %vm4192, 0.0, %v4064
      %v4225 = vsel %vm4193, 0.0, %v4065
      %v4226 = vsel %vm4194, 0.0, %v4066
      %v4227 = vsel %vm4195, 0.0, %v4067
      %v4228 = vsel %vm4196, 0.0, %v4068
      %v4229 = vsel %vm4197, 0.0, %v4069
      %v4230 = vsel %vm4198, 0.0, %v4070
      %v4231 = vsel %vm4199, 0.0, %v4071
      %v4232 = vsel %vm4200, 0.0, %v4072
      %v4233 = vsel %vm4201, 0.0, %v4073
      %v4234 = vsel %vm4202, 0.0, %v4074
      %v4235 = vsel %vm4203, 0.0, %v4075
      %v4236 = vsel %vm4204, 0.0, %v4076
      %v4237 = vsel %vm4205, 0.0, %v4077
      %v4238 = vsel %vm4206, 0.0, %v4078
      %v4239 = vsel %vm4207, 0.0, %v4079
      %v4240 = vsel %vm4208, 0.0, %v4080
      %v4241 = vsel %vm4209, 0.0, %v4081
      %v4242 = vsel %vm4210, 0.0, %v4082
      %v4243 = vsel %vm4211, 0.0, %v4083
      %v4244 = vsel %vm4212, 0.0, %v4084
      %vm4245 = vcmask 64512
      %4246 = vst.msk [vmem:[%s609] sm:$0xff] %vm4245, %v4213
      %4247 = vst.msk [vmem:[%s609 + $0x8] sm:$0xff] %vm4245, %v4214
      %4248 = vst.msk [vmem:[%s609 + $0x10] sm:$0xff] %vm4245, %v4215
      %4249 = vst.msk [vmem:[%s609 + $0x18] sm:$0xff] %vm4245, %v4216
      %4250 = vst.msk [vmem:[%s609 + $0x20] sm:$0xff] %vm4245, %v4217
      %4251 = vst.msk [vmem:[%s609 + $0x28] sm:$0xff] %vm4245, %v4218
      %4252 = vst.msk [vmem:[%s609 + $0x30] sm:$0xff] %vm4245, %v4219
      %4253 = vst.msk [vmem:[%s609 + $0x38] sm:$0xff] %vm4245, %v4220
      %4254 = vst.msk [vmem:[%s609 + $0x40] sm:$0xff] %vm4245, %v4221
      %4255 = vst.msk [vmem:[%s609 + $0x48] sm:$0xff] %vm4245, %v4222
      %4256 = vst.msk [vmem:[%s609 + $0x50] sm:$0xff] %vm4245, %v4223
      %4257 = vst.msk [vmem:[%s609 + $0x58] sm:$0xff] %vm4245, %v4224
      %4258 = vst.msk [vmem:[%s609 + $0x60] sm:$0xff] %vm4245, %v4225
      %4259 = vst.msk [vmem:[%s609 + $0x68] sm:$0xff] %vm4245, %v4226
      %4260 = vst.msk [vmem:[%s609 + $0x70] sm:$0xff] %vm4245, %v4227
      %4261 = vst.msk [vmem:[%s609 + $0x78] sm:$0xff] %vm4245, %v4228
      %4262 = vst.msk [vmem:[%s609 + $0x80] sm:$0xff] %vm4245, %v4229
      %4263 = vst.msk [vmem:[%s609 + $0x88] sm:$0xff] %vm4245, %v4230
      %4264 = vst.msk [vmem:[%s609 + $0x90] sm:$0xff] %vm4245, %v4231
      %4265 = vst.msk [vmem:[%s609 + $0x98] sm:$0xff] %vm4245, %v4232
      %4266 = vst.msk [vmem:[%s609 + $0xa0] sm:$0xff] %vm4245, %v4233
      %4267 = vst.msk [vmem:[%s609 + $0xa8] sm:$0xff] %vm4245, %v4234
      %4268 = vst.msk [vmem:[%s609 + $0xb0] sm:$0xff] %vm4245, %v4235
      %4269 = vst.msk [vmem:[%s609 + $0xb8] sm:$0xff] %vm4245, %v4236
      %4270 = vst.msk [vmem:[%s609 + $0xc0] sm:$0xff] %vm4245, %v4237
      %4271 = vst.msk [vmem:[%s609 + $0xc8] sm:$0xff] %vm4245, %v4238
      %4272 = vst.msk [vmem:[%s609 + $0xd0] sm:$0xff] %vm4245, %v4239
      %4273 = vst.msk [vmem:[%s609 + $0xd8] sm:$0xff] %vm4245, %v4240
      %4274 = vst.msk [vmem:[%s609 + $0xe0] sm:$0xff] %vm4245, %v4241
      %4275 = vst.msk [vmem:[%s609 + $0xe8] sm:$0xff] %vm4245, %v4242
      %4276 = vst.msk [vmem:[%s609 + $0xf0] sm:$0xff] %vm4245, %v4243
      %4277 = vst.msk [vmem:[%s609 + $0xf8] sm:$0xff] %vm4245, %v4244
      %v4278 = vld [vmem:[%s589] sm:$0xff]
      %v4279 = vld [vmem:[%s589 + $0x8] sm:$0xff]
      %v4280 = vld [vmem:[%s589 + $0x10] sm:$0xff]
      %v4281 = vld [vmem:[%s589 + $0x18] sm:$0xff]
      %4282 = vmatprep.subr.mxu0 0.0
      %4283 = vmatpush1.msra.mxu0 %v2300
      %4284 = vmatprep.subr.mxu0 0.0
      %4285 = vmatpush1.msra.mxu0 %v2301
      %4286 = vmatprep.subr.mxu0 0.0
      %4287 = vmatpush1.msra.mxu0 %v2302
      %4288 = vmatprep.subr.mxu0 0.0
      %4289 = vmatpush1.msra.mxu0 %v2303
      %4290 = vmatprep.subr.mxu0 0.0
      %4291 = vmatpush1.msra.mxu0 %v2304
      %4292 = vmatprep.subr.mxu0 0.0
      %4293 = vmatpush1.msra.mxu0 %v2305
      %4294 = vmatprep.subr.mxu0 0.0
      %4295 = vmatpush1.msra.mxu0 %v2306
      %4296 = vmatprep.subr.mxu0 0.0
      %4297 = vmatpush1.msra.mxu0 %v2307
      %4298 = vmatprep.subr.mxu0 0.0
      %4299 = vmatpush1.msra.mxu0 %v2308
      %4300 = vmatprep.subr.mxu0 0.0
      %4301 = vmatpush1.msra.mxu0 %v2309
      %4302 = vmatprep.subr.mxu0 0.0
      %4303 = vmatpush1.msra.mxu0 %v2310
      %4304 = vmatprep.subr.mxu0 0.0
      %4305 = vmatpush1.msra.mxu0 %v2311
      %4306 = vmatprep.subr.mxu0 0.0
      %4307 = vmatpush1.msra.mxu0 %v2312
      %4308 = vmatprep.subr.mxu0 0.0
      %4309 = vmatpush1.msra.mxu0 %v2313
      %4310 = vmatprep.subr.mxu0 0.0
      %4311 = vmatpush1.msra.mxu0 %v2314
      %4312 = vmatprep.subr.mxu0 0.0
      %4313 = vmatpush1.msra.mxu0 %v2315
      %4314 = vmatprep.subr.mxu0 0.0
      %4315 = vmatpush1.msra.mxu0 %v2316
      %4316 = vmatprep.subr.mxu0 0.0
      %4317 = vmatpush1.msra.mxu0 %v2317
      %4318 = vmatprep.subr.mxu0 0.0
      %4319 = vmatpush1.msra.mxu0 %v2318
      %4320 = vmatprep.subr.mxu0 0.0
      %4321 = vmatpush1.msra.mxu0 %v2319
      %4322 = vmatprep.subr.mxu0 0.0
      %4323 = vmatpush1.msra.mxu0 %v2320
      %4324 = vmatprep.subr.mxu0 0.0
      %4325 = vmatpush1.msra.mxu0 %v2321
      %4326 = vmatprep.subr.mxu0 0.0
      %4327 = vmatpush1.msra.mxu0 %v2322
      %4328 = vmatprep.subr.mxu0 0.0
      %4329 = vmatpush1.msra.mxu0 %v2323
      %4330 = vmatprep.subr.mxu0 0.0
      %4331 = vmatpush1.msra.mxu0 %v2324
      %4332 = vmatprep.subr.mxu0 0.0
      %4333 = vmatpush1.msra.mxu0 %v2325
      %4334 = vmatprep.subr.mxu0 0.0
      %4335 = vmatpush1.msra.mxu0 %v2326
      %4336 = vmatprep.subr.mxu0 0.0
      %4337 = vmatpush1.msra.mxu0 %v2327
      %4338 = vmatprep.subr.mxu0 0.0
      %4339 = vmatpush1.msra.mxu0 %v2328
      %4340 = vmatprep.subr.mxu0 0.0
      %4341 = vmatpush1.msra.mxu0 %v2329
      %4342 = vmatprep.subr.mxu0 0.0
      %4343 = vmatpush1.msra.mxu0 %v2330
      %4344 = vmatprep.subr.mxu0 0.0
      %4345 = vmatpush1.msra.mxu0 %v2331
      %4346 = vmatprep.mubr.f32.mxu0 %v4279
      %4347 = vmatmul.mubr.f32.gmra.mrb[0].mxu0 %v4278
      %v4348 = vpop.f32.mrb[0].mxu0
      %v4349 = vadd.f32 0.0, %v4348
      %v4350 = vpop.f32.mrb[0].mxu0
      %4351 = vmatprep.mubr.f32.mxu0 %v4281
      %4352 = vmatmul.mubr.f32.gmra.mrb[0].mxu0 %v4280
      %v4353 = vpop.f32.mrb[0].mxu0
      %v4354 = vadd.f32 0.0, %v4353
      %v4355 = vpop.f32.mrb[0].mxu0
      %4356 = vdwg.mxu0
      %4358 = vset.pattern.permute.xlu0 8
      %4359 = vperm.xlu0 %4358, %v3703
      %v4360 = vpop.permute.xlu0 %4359
      %4363 = vset.pattern.permute.xlu0 8
      %4364 = vperm.xlu0 %4363, %v3708
      %v4365 = vpop.permute.xlu0 %4364
      %4368 = vset.pattern.permute.xlu0 8
      %4369 = vperm.xlu0 %4368, %v3713
      %v4370 = vpop.permute.xlu0 %4369
      %4373 = vset.pattern.permute.xlu0 8
      %4374 = vperm.xlu0 %4373, %v3718
      %v4375 = vpop.permute.xlu0 %4374
      %4378 = vset.pattern.permute.xlu0 8
      %4379 = vperm.xlu0 %4378, %v3723
      %v4380 = vpop.permute.xlu0 %4379
      %4383 = vset.pattern.permute.xlu0 8
      %4384 = vperm.xlu0 %4383, %v3728
      %v4385 = vpop.permute.xlu0 %4384
      %4388 = vset.pattern.permute.xlu0 8
      %4389 = vperm.xlu0 %4388, %v3733
      %v4390 = vpop.permute.xlu0 %4389
      %4393 = vset.pattern.permute.xlu0 8
      %4394 = vperm.xlu0 %4393, %v3738
      %v4395 = vpop.permute.xlu0 %4394
      %4398 = vset.pattern.permute.xlu0 8
      %4399 = vperm.xlu0 %4398, %v3743
      %v4400 = vpop.permute.xlu0 %4399
      %4403 = vset.pattern.permute.xlu0 8
      %4404 = vperm.xlu0 %4403, %v3748
      %v4405 = vpop.permute.xlu0 %4404
      %4408 = vset.pattern.permute.xlu0 8
      %4409 = vperm.xlu0 %4408, %v3753
      %v4410 = vpop.permute.xlu0 %4409
      %4413 = vset.pattern.permute.xlu0 8
      %4414 = vperm.xlu0 %4413, %v3758
      %v4415 = vpop.permute.xlu0 %4414
      %4418 = vset.pattern.permute.xlu0 8
      %4419 = vperm.xlu0 %4418, %v3763
      %v4420 = vpop.permute.xlu0 %4419
      %4423 = vset.pattern.permute.xlu0 8
      %4424 = vperm.xlu0 %4423, %v3768
      %v4425 = vpop.permute.xlu0 %4424
      %4428 = vset.pattern.permute.xlu0 8
      %4429 = vperm.xlu0 %4428, %v3773
      %v4430 = vpop.permute.xlu0 %4429
      %4433 = vset.pattern.permute.xlu0 8
      %4434 = vperm.xlu0 %4433, %v3778
      %v4435 = vpop.permute.xlu0 %4434
      %4438 = vset.pattern.permute.xlu0 8
      %4439 = vperm.xlu0 %4438, %v3783
      %v4440 = vpop.permute.xlu0 %4439
      %4443 = vset.pattern.permute.xlu0 8
      %4444 = vperm.xlu0 %4443, %v3788
      %v4445 = vpop.permute.xlu0 %4444
      %4448 = vset.pattern.permute.xlu0 8
      %4449 = vperm.xlu0 %4448, %v3793
      %v4450 = vpop.permute.xlu0 %4449
      %4453 = vset.pattern.permute.xlu0 8
      %4454 = vperm.xlu0 %4453, %v3798
      %v4455 = vpop.permute.xlu0 %4454
      %4458 = vset.pattern.permute.xlu0 8
      %4459 = vperm.xlu0 %4458, %v3803
      %v4460 = vpop.permute.xlu0 %4459
      %4463 = vset.pattern.permute.xlu0 8
      %4464 = vperm.xlu0 %4463, %v3808
      %v4465 = vpop.permute.xlu0 %4464
      %4468 = vset.pattern.permute.xlu0 8
      %4469 = vperm.xlu0 %4468, %v3813
      %v4470 = vpop.permute.xlu0 %4469
      %4473 = vset.pattern.permute.xlu0 8
      %4474 = vperm.xlu0 %4473, %v3818
      %v4475 = vpop.permute.xlu0 %4474
      %4478 = vset.pattern.permute.xlu0 8
      %4479 = vperm.xlu0 %4478, %v3823
      %v4480 = vpop.permute.xlu0 %4479
      %4483 = vset.pattern.permute.xlu0 8
      %4484 = vperm.xlu0 %4483, %v3828
      %v4485 = vpop.permute.xlu0 %4484
      %4488 = vset.pattern.permute.xlu0 8
      %4489 = vperm.xlu0 %4488, %v3833
      %v4490 = vpop.permute.xlu0 %4489
      %4493 = vset.pattern.permute.xlu0 8
      %4494 = vperm.xlu0 %4493, %v3838
      %v4495 = vpop.permute.xlu0 %4494
      %4498 = vset.pattern.permute.xlu0 8
      %4499 = vperm.xlu0 %4498, %v3843
      %v4500 = vpop.permute.xlu0 %4499
      %4503 = vset.pattern.permute.xlu0 8
      %4504 = vperm.xlu0 %4503, %v3848
      %v4505 = vpop.permute.xlu0 %4504
      %4508 = vset.pattern.permute.xlu0 8
      %4509 = vperm.xlu0 %4508, %v3853
      %v4510 = vpop.permute.xlu0 %4509
      %4513 = vset.pattern.permute.xlu0 8
      %4514 = vperm.xlu0 %4513, %v3858
      %v4515 = vpop.permute.xlu0 %4514
      %v4517 = vmul.f32 %v4360, %v681
      %v4518 = vmul.f32 %v4365, %v682
      %v4519 = vmul.f32 %v4370, %v683
      %v4520 = vmul.f32 %v4375, %v684
      %v4521 = vmul.f32 %v4380, %v685
      %v4522 = vmul.f32 %v4385, %v686
      %v4523 = vmul.f32 %v4390, %v687
      %v4524 = vmul.f32 %v4395, %v688
      %v4525 = vmul.f32 %v4400, %v689
      %v4526 = vmul.f32 %v4405, %v690
      %v4527 = vmul.f32 %v4410, %v691
      %v4528 = vmul.f32 %v4415, %v692
      %v4529 = vmul.f32 %v4420, %v693
      %v4530 = vmul.f32 %v4425, %v694
      %v4531 = vmul.f32 %v4430, %v695
      %v4532 = vmul.f32 %v4435, %v696
      %v4533 = vmul.f32 %v4440, %v697
      %v4534 = vmul.f32 %v4445, %v698
      %v4535 = vmul.f32 %v4450, %v699
      %v4536 = vmul.f32 %v4455, %v700
      %v4537 = vmul.f32 %v4460, %v701
      %v4538 = vmul.f32 %v4465, %v702
      %v4539 = vmul.f32 %v4470, %v703
      %v4540 = vmul.f32 %v4475, %v704
      %v4541 = vmul.f32 %v4480, %v705
      %v4542 = vmul.f32 %v4485, %v706
      %v4543 = vmul.f32 %v4490, %v707
      %v4544 = vmul.f32 %v4495, %v708
      %v4545 = vmul.f32 %v4500, %v709
      %v4546 = vmul.f32 %v4505, %v710
      %v4547 = vmul.f32 %v4510, %v711
      %v4548 = vmul.f32 %v4515, %v712
      %4549 = vmatprep.subr.mxu0 0.0
      %4550 = vmatpush1.msra.mxu0 %v4517
      %4551 = vmatprep.subr.mxu0 0.0
      %4552 = vmatpush1.msra.mxu0 %v4518
      %4553 = vmatprep.subr.mxu0 0.0
      %4554 = vmatpush1.msra.mxu0 %v4519
      %4555 = vmatprep.subr.mxu0 0.0
      %4556 = vmatpush1.msra.mxu0 %v4520
      %4557 = vmatprep.subr.mxu0 0.0
      %4558 = vmatpush1.msra.mxu0 %v4521
      %4559 = vmatprep.subr.mxu0 0.0
      %4560 = vmatpush1.msra.mxu0 %v4522
      %4561 = vmatprep.subr.mxu0 0.0
      %4562 = vmatpush1.msra.mxu0 %v4523
      %4563 = vmatprep.subr.mxu0 0.0
      %4564 = vmatpush1.msra.mxu0 %v4524
      %4565 = vmatprep.subr.mxu0 0.0
      %4566 = vmatpush1.msra.mxu0 %v4525
      %4567 = vmatprep.subr.mxu0 0.0
      %4568 = vmatpush1.msra.mxu0 %v4526
      %4569 = vmatprep.subr.mxu0 0.0
      %4570 = vmatpush1.msra.mxu0 %v4527
      %4571 = vmatprep.subr.mxu0 0.0
      %4572 = vmatpush1.msra.mxu0 %v4528
      %4573 = vmatprep.subr.mxu0 0.0
      %4574 = vmatpush1.msra.mxu0 %v4529
      %4575 = vmatprep.subr.mxu0 0.0
      %4576 = vmatpush1.msra.mxu0 %v4530
      %4577 = vmatprep.subr.mxu0 0.0
      %4578 = vmatpush1.msra.mxu0 %v4531
      %4579 = vmatprep.subr.mxu0 0.0
      %4580 = vmatpush1.msra.mxu0 %v4532
      %4581 = vmatprep.subr.mxu0 0.0
      %4582 = vmatpush1.msra.mxu0 %v4533
      %4583 = vmatprep.subr.mxu0 0.0
      %4584 = vmatpush1.msra.mxu0 %v4534
      %4585 = vmatprep.subr.mxu0 0.0
      %4586 = vmatpush1.msra.mxu0 %v4535
      %4587 = vmatprep.subr.mxu0 0.0
      %4588 = vmatpush1.msra.mxu0 %v4536
      %4589 = vmatprep.subr.mxu0 0.0
      %4590 = vmatpush1.msra.mxu0 %v4537
      %4591 = vmatprep.subr.mxu0 0.0
      %4592 = vmatpush1.msra.mxu0 %v4538
      %4593 = vmatprep.subr.mxu0 0.0
      %4594 = vmatpush1.msra.mxu0 %v4539
      %4595 = vmatprep.subr.mxu0 0.0
      %4596 = vmatpush1.msra.mxu0 %v4540
      %4597 = vmatprep.subr.mxu0 0.0
      %4598 = vmatpush1.msra.mxu0 %v4541
      %4599 = vmatprep.subr.mxu0 0.0
      %4600 = vmatpush1.msra.mxu0 %v4542
      %4601 = vmatprep.subr.mxu0 0.0
      %4602 = vmatpush1.msra.mxu0 %v4543
      %4603 = vmatprep.subr.mxu0 0.0
      %4604 = vmatpush1.msra.mxu0 %v4544
      %4605 = vmatprep.subr.mxu0 0.0
      %4606 = vmatpush1.msra.mxu0 %v4545
      %4607 = vmatprep.subr.mxu0 0.0
      %4608 = vmatpush1.msra.mxu0 %v4546
      %4609 = vmatprep.subr.mxu0 0.0
      %4610 = vmatpush1.msra.mxu0 %v4547
      %4611 = vmatprep.subr.mxu0 0.0
      %4612 = vmatpush1.msra.mxu0 %v4548
      %4613 = vmatprep.mubr.f32.mxu0 %v4279
      %4614 = vmatmul.mubr.f32.gmra.mrb[0].mxu0 %v4278
      %v4615 = vpop.f32.mrb[0].mxu0
      %v4616 = vadd.f32 0.0, %v4615
      %v4617 = vpop.f32.mrb[0].mxu0
      %4618 = vmatprep.mubr.f32.mxu0 %v4281
      %4619 = vmatmul.mubr.f32.gmra.mrb[0].mxu0 %v4280
      %v4620 = vpop.f32.mrb[0].mxu0
      %v4621 = vadd.f32 0.0, %v4620
      %v4622 = vpop.f32.mrb[0].mxu0
      %4623 = vdwg.mxu0
      %v4624 = vld [vmem:[%s594] sm:$0xff]
      %v4625 = vld [vmem:[%s594 + $0x8] sm:$0xff]
      %vm4626 = vcmp.gt.f32.partialorder %v4624, 0.5
      %vm4627 = vcmp.gt.f32.partialorder %v4625, 0.5
      %v4628 = vsel %vm4626, -3.4028235e+38, %v4616
      %v4629 = vsel %vm4627, -3.4028235e+38, %v4621
      %v4630 = vmul.f32 %v4628, 0.17677669
      %v4631 = vmul.f32 %v4629, 0.17677669
      %v4632 = vsel %vm713, %v4630, -inf
      %4633 = vmax.xlane.f32.xlu0 %v4632
      %v4634 = vpop.xlane.xlu0 %4633
      %v4635 = vsel %vm713, %v4631, -inf
      %4636 = vmax.xlane.f32.xlu0 %v4635
      %v4637 = vpop.xlane.xlu0 %4636
      %v4638 = vsub.f32 %v4630, %v4634
      %v4639 = vsub.f32 %v4631, %v4637
      %v4640 = vmul.f32 %v4638, 1.442695
      %v4641 = vpow.pop %v4640
      %v4642 = vmul.f32 %v4639, 1.442695
      %v4643 = vpow.pop %v4642
      %v4644 = vsel %vm713, %v4641, 0.0
      %4645 = vadd.xlane.f32.xlu0 %v4644
      %v4646 = vpop.xlane.xlu0 %4645
      %v4647 = vsel %vm713, %v4643, 0.0
      %4648 = vadd.xlane.f32.xlu0 %v4647
      %v4649 = vpop.xlane.xlu0 %4648
      %v4650 = vrcp.pop %v4646
      %v4651 = vmul.f32 %v4641, %v4650
      %v4652 = vrcp.pop %v4649
      %v4653 = vmul.f32 %v4643, %v4652
      %v4654 = vld [vmem:[%s604] sm:$0xff]
      %v4655 = vld [vmem:[%s604 + $0x8] sm:$0xff]
      %v4656 = vld [vmem:[%s12] sm:$0x7]
      %4658 = vset.pattern.permute.xlu0 0
      %4659 = vperm.xlu0 %4658, %v647
      %v4660 = vpop.permute.xlu0 %4659
      %4663 = vset.pattern.permute.xlu0 0
      %4664 = vperm.xlu0 %4663, %v648
      %v4665 = vpop.permute.xlu0 %4664
      %v4667 = vlaneseq
      %v4668 = vshrl.u32 %v4667, 7
      %v4669 = vsub.s32 0, %v4668
      %v4670 = vrot.slane %v4656, %v4669
      %v4671 = vmul.f32 %v4660, %v4670
      %v4672 = vmul.f32 %v4665, %v4670
      %4673 = vset.pattern.permute.xlu0 1
      %4674 = vperm.xlu0 %4673, %v647
      %v4675 = vpop.permute.xlu0 %4674
      %4677 = vset.pattern.permute.xlu0 1
      %4678 = vperm.xlu0 %4677, %v648
      %v4679 = vpop.permute.xlu0 %4678
      %v4681 = vlaneseq
      %v4682 = vshrl.u32 %v4681, 7
      %v4683 = vsub.s32 1, %v4682
      %v4684 = vrot.slane %v4656, %v4683
      %v4685 = vmul.f32 %v4675, %v4684
      %v4686 = vmul.f32 %v4679, %v4684
      %v4687 = vadd.f32 %v4671, %v4685
      %v4688 = vadd.f32 %v4672, %v4686
      %4689 = vset.pattern.permute.xlu0 2
      %4690 = vperm.xlu0 %4689, %v647
      %v4691 = vpop.permute.xlu0 %4690
      %4693 = vset.pattern.permute.xlu0 2
      %4694 = vperm.xlu0 %4693, %v648
      %v4695 = vpop.permute.xlu0 %4694
      %v4697 = vlaneseq
      %v4698 = vshrl.u32 %v4697, 7
      %v4699 = vsub.s32 2, %v4698
      %v4700 = vrot.slane %v4656, %v4699
      %v4701 = vmul.f32 %v4691, %v4700
      %v4702 = vmul.f32 %v4695, %v4700
      %v4703 = vadd.f32 %v4687, %v4701
      %v4704 = vadd.f32 %v4688, %v4702
      %v4705 = vsub.f32 1.0, %v4654
      %v4706 = vsub.f32 1.0, %v4655
      %4708 = vset.pattern.permute.xlu0 0
      %4709 = vperm.xlu0 %4708, %v4705
      %v4710 = vpop.permute.xlu0 %4709
      %4713 = vset.pattern.permute.xlu0 0
      %4714 = vperm.xlu0 %4713, %v4706
      %v4715 = vpop.permute.xlu0 %4714
      %v4717 = vmul.f32 %v4703, %v4710
      %v4718 = vmul.f32 %v4704, %v4715
      %v4720 = vsel %vm713, %v4651, 0
      %v4723 = vsel %vm713, %v4653, 0
      %4725 = vmatprep.subr.mxu0 0.0
      %4726 = vmatpush1.msra.mxu0 %v4717
      %4727 = vmatprep.subr.mxu0 0.0
      %4728 = vmatpush1.msra.mxu0 %v4718
      %4729 = vmatprep.subr.mxu0 0.0
      %4730 = vmatpush1.msra.mxu0 0.0
      %4731 = vmatprep.subr.mxu0 0.0
      %4732 = vmatpush1.msra.mxu0 0.0
      %4733 = vmatprep.subr.mxu0 0.0
      %4734 = vmatpush1.msra.mxu0 0.0
      %4735 = vmatprep.subr.mxu0 0.0
      %4736 = vmatpush1.msra.mxu0 0.0
      %4737 = vmatprep.subr.mxu0 0.0
      %4738 = vmatpush1.msra.mxu0 0.0
      %4739 = vmatprep.subr.mxu0 0.0
      %4740 = vmatpush1.msra.mxu0 0.0
      %4741 = vmatprep.subr.mxu0 0.0
      %4742 = vmatpush1.msra.mxu0 0.0
      %4743 = vmatprep.subr.mxu0 0.0
      %4744 = vmatpush1.msra.mxu0 0.0
      %4745 = vmatprep.subr.mxu0 0.0
      %4746 = vmatpush1.msra.mxu0 0.0
      %4747 = vmatprep.subr.mxu0 0.0
      %4748 = vmatpush1.msra.mxu0 0.0
      %4749 = vmatprep.subr.mxu0 0.0
      %4750 = vmatpush1.msra.mxu0 0.0
      %4751 = vmatprep.subr.mxu0 0.0
      %4752 = vmatpush1.msra.mxu0 0.0
      %4753 = vmatprep.subr.mxu0 0.0
      %4754 = vmatpush1.msra.mxu0 0.0
      %4755 = vmatprep.subr.mxu0 0.0
      %4756 = vmatpush1.msra.mxu0 0.0
      %4757 = vmatprep.subr.mxu0 0.0
      %4758 = vmatpush1.msra.mxu0 0.0
      %4759 = vmatprep.subr.mxu0 0.0
      %4760 = vmatpush1.msra.mxu0 0.0
      %4761 = vmatprep.subr.mxu0 0.0
      %4762 = vmatpush1.msra.mxu0 0.0
      %4763 = vmatprep.subr.mxu0 0.0
      %4764 = vmatpush1.msra.mxu0 0.0
      %4765 = vmatprep.subr.mxu0 0.0
      %4766 = vmatpush1.msra.mxu0 0.0
      %4767 = vmatprep.subr.mxu0 0.0
      %4768 = vmatpush1.msra.mxu0 0.0
      %4769 = vmatprep.subr.mxu0 0.0
      %4770 = vmatpush1.msra.mxu0 0.0
      %4771 = vmatprep.subr.mxu0 0.0
      %4772 = vmatpush1.msra.mxu0 0.0
      %4773 = vmatprep.subr.mxu0 0.0
      %4774 = vmatpush1.msra.mxu0 0.0
      %4775 = vmatprep.subr.mxu0 0.0
      %4776 = vmatpush1.msra.mxu0 0.0
      %4777 = vmatprep.subr.mxu0 0.0
      %4778 = vmatpush1.msra.mxu0 0.0
      %4779 = vmatprep.subr.mxu0 0.0
      %4780 = vmatpush1.msra.mxu0 0.0
      %4781 = vmatprep.subr.mxu0 0.0
      %4782 = vmatpush1.msra.mxu0 0.0
      %4783 = vmatprep.subr.mxu0 0.0
      %4784 = vmatpush1.msra.mxu0 0.0
      %4785 = vmatprep.subr.mxu0 0.0
      %4786 = vmatpush1.msra.mxu0 0.0
      %4787 = vmatprep.subr.mxu0 0.0
      %4788 = vmatpush1.msra.mxu0 0.0
      %4789 = vmatprep.mubr.f32.mxu0 0.0
      %4790 = vmatmul.mubr.f32.gmra.mrb[0].mxu0 %v4720
      %v4791 = vpop.f32.mrb[0].mxu0
      %v4792 = vadd.f32 0.0, %v4791
      %v4793 = vpop.f32.mrb[0].mxu0
      %4794 = vmatprep.mubr.f32.mxu0 0.0
      %4795 = vmatmul.mubr.f32.gmra.mrb[0].mxu0 %v4723
      %v4796 = vpop.f32.mrb[0].mxu0
      %v4797 = vadd.f32 0.0, %v4796
      %v4798 = vpop.f32.mrb[0].mxu0
      %4799 = vdwg.mxu0
      %4800 = vst.msk [vmem:[#allocation2] sm:$0xff] %vm2343, %v4792
      %4801 = vst.msk [vmem:[#allocation2 + $0x8] sm:$0xff] %vm2343, %v4797
      %4804 = vrot.lane.b32.xlu0 %v4349, 32
      %v4805 = vpop.permute.xlu0 %4804
      %4806 = vrot.lane.b32.xlu0 %v4354, 32
      %v4807 = vpop.permute.xlu0 %4806
      %vm4810 = vcmask 523520
      %4811 = vst.msk [vmem:[#allocation2] sm:$0xff] %vm4810, %v4805
      %4812 = vst.msk [vmem:[#allocation2 + $0x8] sm:$0xff] %vm4810, %v4807
      %v4813 = vld [vmem:[#allocation2] sm:$0xff]
      %v4814 = vld [vmem:[#allocation2 + $0x8] sm:$0xff]
      %v4815 = vld [vmem:[%s13] sm:$0xff]
      %v4816 = vld [vmem:[%s13 + $0x8] sm:$0xff]
      %v4817 = vld [vmem:[%s13 + $0x10] sm:$0xff]
      %v4818 = vld [vmem:[%s13 + $0x18] sm:$0xff]
      %v4819 = vld [vmem:[%s13 + $0x20] sm:$0xff]
      %v4820 = vld [vmem:[%s13 + $0x28] sm:$0xff]
      %v4821 = vld [vmem:[%s13 + $0x30] sm:$0xff]
      %v4822 = vld [vmem:[%s13 + $0x38] sm:$0xff]
      %v4823 = vld [vmem:[%s14] sm:$0x1]
      %v4825 = vlaneseq
      %v4826 = vshrl.u32 %v4825, 7
      %v4827 = vsub.s32 0, %v4826
      %v4828 = vrot.slane %v4823, %v4827
      %vm4830 = vcmask 523264
      %v4832 = vsel %vm4830, %v4813, 0
      %v4835 = vsel %vm4830, %v4814, 0
      %4837 = vmatprep.subr.mxu0 0.0
      %4838 = vmatpush1.msra.mxu0 %v4815
      %4839 = vmatprep.subr.mxu0 0.0
      %4840 = vmatpush1.msra.mxu0 %v4816
      %4841 = vmatprep.subr.mxu0 0.0
      %4842 = vmatpush1.msra.mxu0 %v4817
      %4843 = vmatprep.subr.mxu0 0.0
      %4844 = vmatpush1.msra.mxu0 %v4818
      %4845 = vmatprep.subr.mxu0 0.0
      %4846 = vmatpush1.msra.mxu0 %v4819
      %4847 = vmatprep.subr.mxu0 0.0
      %4848 = vmatpush1.msra.mxu0 %v4820
      %4849 = vmatprep.subr.mxu0 0.0
      %4850 = vmatpush1.msra.mxu0 %v4821
      %4851 = vmatprep.subr.mxu0 0.0
      %4852 = vmatpush1.msra.mxu0 %v4822
      %4853 = vmatprep.subr.mxu0 0.0
      %4854 = vmatpush1.msra.mxu0 0.0
      %4855 = vmatprep.subr.mxu0 0.0
      %4856 = vmatpush1.msra.mxu0 0.0
      %4857 = vmatprep.subr.mxu0 0.0
      %4858 = vmatpush1.msra.mxu0 0.0
      %4859 = vmatprep.subr.mxu0 0.0
      %4860 = vmatpush1.msra.mxu0 0.0
      %4861 = vmatprep.subr.mxu0 0.0
      %4862 = vmatpush1.msra.mxu0 0.0
      %4863 = vmatprep.subr.mxu0 0.0
      %4864 = vmatpush1.msra.mxu0 0.0
      %4865 = vmatprep.subr.mxu0 0.0
      %4866 = vmatpush1.msra.mxu0 0.0
      %4867 = vmatprep.subr.mxu0 0.0
      %4868 = vmatpush1.msra.mxu0 0.0
      %4869 = vmatprep.subr.mxu0 0.0
      %4870 = vmatpush1.msra.mxu0 0.0
      %4871 = vmatprep.subr.mxu0 0.0
      %4872 = vmatpush1.msra.mxu0 0.0
      %4873 = vmatprep.subr.mxu0 0.0
      %4874 = vmatpush1.msra.mxu0 0.0
      %4875 = vmatprep.subr.mxu0 0.0
      %4876 = vmatpush1.msra.mxu0 0.0
      %4877 = vmatprep.subr.mxu0 0.0
      %4878 = vmatpush1.msra.mxu0 0.0
      %4879 = vmatprep.subr.mxu0 0.0
      %4880 = vmatpush1.msra.mxu0 0.0
      %4881 = vmatprep.subr.mxu0 0.0
      %4882 = vmatpush1.msra.mxu0 0.0
      %4883 = vmatprep.subr.mxu0 0.0
      %4884 = vmatpush1.msra.mxu0 0.0
      %4885 = vmatprep.subr.mxu0 0.0
      %4886 = vmatpush1.msra.mxu0 0.0
      %4887 = vmatprep.subr.mxu0 0.0
      %4888 = vmatpush1.msra.mxu0 0.0
      %4889 = vmatprep.subr.mxu0 0.0
      %4890 = vmatpush1.msra.mxu0 0.0
      %4891 = vmatprep.subr.mxu0 0.0
      %4892 = vmatpush1.msra.mxu0 0.0
      %4893 = vmatprep.subr.mxu0 0.0
      %4894 = vmatpush1.msra.mxu0 0.0
      %4895 = vmatprep.subr.mxu0 0.0
      %4896 = vmatpush1.msra.mxu0 0.0
      %4897 = vmatprep.subr.mxu0 0.0
      %4898 = vmatpush1.msra.mxu0 0.0
      %4899 = vmatprep.subr.mxu0 0.0
      %4900 = vmatpush1.msra.mxu0 0.0
      %4901 = vmatprep.mubr.f32.mxu0 0.0
      %4902 = vmatmul.mubr.f32.gmra.mrb[0].mxu0 %v4832
      %v4903 = vpop.f32.mrb[0].mxu0
      %v4904 = vadd.f32 %v4828, %v4903
      %v4905 = vpop.f32.mrb[0].mxu0
      %4906 = vmatprep.mubr.f32.mxu0 0.0
      %4907 = vmatmul.mubr.f32.gmra.mrb[0].mxu0 %v4835
      %v4908 = vpop.f32.mrb[0].mxu0
      %v4909 = vadd.f32 %v4828, %v4908
      %v4910 = vpop.f32.mrb[0].mxu0
      %4911 = vdwg.mxu0
      %v4912 = vmul.f32 %v4904, %v4710
      %v4913 = vmul.f32 %v4909, %v4715
      %4914 = vst.msk [vmem:[%s614] sm:$0xff] %vm2343, %v4912
      %4915 = vst.msk [vmem:[%s614 + $0x8] sm:$0xff] %vm2343, %v4913
      %p4916 = scmp.lt.s32.totalorder %s28, 1
      %s4917 = scalar_select %p4916, %s28, 1
      %s4918 = smul.addr %s4917, 32
      %s4919 = smul.addr %s4918, 8
      %s4920 = scalar_lea.vmem %s15, %s4919
      %p4921 = scmp.lt.s32.totalorder %s28, 1
      %s4922 = scalar_select %p4921, %s28, 1
      %s4923 = smul.addr %s4922, 2
      %s4924 = smul.addr %s4923, 8
      %s4925 = scalar_lea.vmem %s16, %s4924
      // Predicated region
      $region81: #{psm_mix3d_embedding_forward.1} parent=79 // pred_check
        %p4926 = pneg %p386
      $region82: #{psm_mix3d_embedding_forward.1} parent=79 // pred_check_branch
        %4928 = sbr.rel (%p4926) target = $region84
      $region83: #{psm_mix3d_embedding_forward.1} parent=79 // pred_region
        _
      $region84: #{psm_mix3d_embedding_forward.1} parent=79 // pred_fallthru
        _
      // Predicated region
      $region85: #{psm_mix3d_embedding_forward.1} parent=79 // pred_check
        %p4929 = pneg %p412
      $region86: #{psm_mix3d_embedding_forward.1} parent=79 // pred_check_branch
        %4931 = sbr.rel (%p4929) target = $region88
      $region87: #{psm_mix3d_embedding_forward.1} parent=79 // pred_region
        _
      $region88: #{psm_mix3d_embedding_forward.1} parent=79 // pred_fallthru
        _
    $region80: #{psm_mix3d_embedding_forward.1} parent=5 // pred_fallthru
      _
    %p4932 = scmp.le.s32.totalorder 2, %s23
    // Predicated region
    $region89: #{psm_mix3d_embedding_forward.1} parent=5 // pred_check
      %p4933 = pneg %p4932
    $region90: #{psm_mix3d_embedding_forward.1} parent=5 // pred_check_branch
      %4935 = sbr.rel (%p4933) target = $region92
    $region91: #{psm_mix3d_embedding_forward.1} parent=5 // pred_region
      %s4936 = ssub.s32 %s23, 2
      // Predicated region
      $region93: #{psm_mix3d_embedding_forward.1} parent=91 // pred_check
        %p4937 = pneg %p392
      $region94: #{psm_mix3d_embedding_forward.1} parent=91 // pred_check_branch
        %4939 = sbr.rel (%p4937) target = $region96
      $region95: #{psm_mix3d_embedding_forward.1} parent=91 // pred_region
        %p4940 = scmp.lt.s32.totalorder %s29, 1
        %s4941 = scalar_select %p4940, %s29, 1
        %s4942 = smul.addr %s4941, 32
        %s4943 = smul.addr %s4942, 8
        %s4944 = scalar_lea.vmem %s15, %s4943
      $region96: #{psm_mix3d_embedding_forward.1} parent=91 // pred_fallthru
        _
      // Predicated region
      $region97: #{psm_mix3d_embedding_forward.1} parent=91 // pred_check
        %p4945 = pneg %p418
      $region98: #{psm_mix3d_embedding_forward.1} parent=91 // pred_check_branch
        %4947 = sbr.rel (%p4945) target = $region100
      $region99: #{psm_mix3d_embedding_forward.1} parent=91 // pred_region
        %p4948 = scmp.lt.s32.totalorder %s29, 1
        %s4949 = scalar_select %p4948, %s29, 1
        %s4950 = smul.addr %s4949, 2
        %s4951 = smul.addr %s4950, 8
        %s4952 = scalar_lea.vmem %s16, %s4951
      $region100: #{psm_mix3d_embedding_forward.1} parent=91 // pred_fallthru
        _
    $region92: #{psm_mix3d_embedding_forward.1} parent=5 // pred_fallthru
      _
  $region6: #{psm_mix3d_embedding_forward.1} parent=0 // loop_footer
    %s27 = sadd.s32 1, %s23
  $region7: #{psm_mix3d_embedding_forward.1} parent=0 // loop_footer_branch
    %22 = sbr.rel target = $region3
  $region8: #{psm_mix3d_embedding_forward.1} parent=0 // loop_exit
    _

</llo_original>
